<compile_context>
chip_gen: v6e
topology: v6e:2x2x1
jax: 0.10.0
libtpu: 0.0.40
codegen_flags: <defaults>
</compile_context>

<pallas_src>
import numpy as np
import jax
import jax.numpy as jnp
from jax.experimental import pallas as pl
from jax.experimental.pallas import tpu as pltpu


def _round_up(x, m):
    return (x + m - 1) // m * m


def _bilinear_matrix(in_size, out_size):
    """Interpolation matrix matching nn.Upsample(bilinear, align_corners=False)."""
    U = np.zeros((out_size, in_size), dtype=np.float32)
    scale = in_size / out_size
    for o in range(out_size):
        src = max((o + 0.5) * scale - 0.5, 0.0)
        i0 = int(np.floor(src))
        i1 = min(i0 + 1, in_size - 1)
        lam = src - i0
        U[o, i0] += 1.0 - lam
        U[o, i1] += lam
    return U


# ---------------- K1: bilinear 2x upsample (+ conv W zero-pad), bf16 ----------------
def _upsample_kernel(x_ref, uh_ref, uwt_ref, o_ref):
    # x_ref: (1, bc, H, W) f32 ; uh_ref: (H2, H) bf16 ; uwt_ref: (W, W2p) bf16
    # o_ref: (1, bc, H2, W2p) bf16
    bc = x_ref.shape[1]
    for c in range(bc):
        xc = x_ref[0, c].astype(jnp.bfloat16)                               # (H, W)
        t = jnp.dot(uh_ref[...], xc, preferred_element_type=jnp.float32)    # (H2, W)
        o = jnp.dot(t.astype(jnp.bfloat16), uwt_ref[...],
                    preferred_element_type=jnp.float32)                     # (H2, W2p)
        o_ref[0, c] = o.astype(jnp.bfloat16)


def bilinear_upsample_2x_padded(x, W2p):
    """(N, Cin, H, W) f32 -> (N, Cin, 2H, W2p) bf16, with the conv's zero columns
    (col 0 and col 2W+1) and lane-alignment zeros already folded in."""
    N, Cin, H, W = x.shape
    H2, W2 = 2 * H, 2 * W
    uh = jnp.asarray(_bilinear_matrix(H, H2), dtype=jnp.bfloat16)           # (H2, H)
    uwt_np = np.zeros((W, W2p), dtype=np.float32)
    uwt_np[:, 1:W2 + 1] = _bilinear_matrix(W, W2).T
    uwt = jnp.asarray(uwt_np, dtype=jnp.bfloat16)                           # (W, W2p)
    bc = max(d for d in (16, 8, 4, 2, 1) if Cin % d == 0)
    return pl.pallas_call(
        _upsample_kernel,
        out_shape=jax.ShapeDtypeStruct((N, Cin, H2, W2p), jnp.bfloat16),
        grid=(N, Cin // bc),
        in_specs=[
            pl.BlockSpec((1, bc, H, W), lambda n, c: (n, c, 0, 0)),
            pl.BlockSpec((H2, H), lambda n, c: (0, 0)),
            pl.BlockSpec((W, W2p), lambda n, c: (0, 0)),
        ],
        out_specs=pl.BlockSpec((1, bc, H2, W2p), lambda n, c: (n, c, 0, 0)),
        compiler_params=pltpu.CompilerParams(
            dimension_semantics=("parallel", "parallel")),
    )(x, uh, uwt)


# -------- K2: 3x3 conv (9 shifted MXU matmuls, no HBM im2col) + partial BN sums -----
def conv3x3_partial_stats(xpu, wt_bf, W2, th):
    """xpu: (N, Cin, H2, W2p) bf16 upsampled + W-padded.  Returns:
       y  : (N, Cout, H2*W2p) f32 conv output (columns >= W2 of each row are
            don't-care 'overhang' values, dropped later),
       st : (N, R, Cout, 2) f32 per-tile partial (sum, sum_sq) over valid cols."""
    N, Cin, H2, W2p = xpu.shape
    Cout = wt_bf.shape[1]
    R = H2 // th
    tmp = th * W2p                      # flat tile width (128-multiple or full dim)
    hb = th // 8                        # halo block index stride (8-row blocks)
    xpu_flat = xpu.reshape(N, Cin, H2 * W2p)
    vmask = jnp.asarray(((np.arange(tmp) % W2p) < W2).astype(np.float32)[None, :])

    def kernel(wt_ref, mask_ref, ctr_ref, top_ref, bot_ref, y_ref, st_ref, slab_ref):
        r = pl.program_id(1)
        last = pl.num_programs(1) - 1
        zrow = jnp.zeros((Cin, W2p), dtype=jnp.bfloat16)
        top = jnp.where(r == 0, zrow, top_ref[0][:, 7, :])     # conv zero row above
        bot = jnp.where(r == last, zrow, bot_ref[0][:, 0, :])  # conv zero row below
        # Stage the (th + 2)-row slab contiguously (flat row-major, stride W2p).
        slab_ref[:, 0:W2p] = top
        slab_ref[:, W2p:W2p + tmp] = ctr_ref[0]
        slab_ref[:, W2p + tmp:2 * W2p + tmp] = bot
        slab_ref[:, 2 * W2p + tmp:] = jnp.zeros((Cin, 128), dtype=jnp.bfloat16)
        # 3x3 conv = 9 shifted (Cout, Cin) @ (Cin, th*W2p) bf16 matmuls, f32 accum.
        acc = jnp.zeros((Cout, tmp), dtype=jnp.float32)
        for t in range(9):
            dy, dx = divmod(t, 3)
            off = dy * W2p + dx
            acc = acc + jnp.dot(wt_ref[t], slab_ref[:, off:off + tmp],
                                preferred_element_type=jnp.float32)
        y_ref[0] = acc
        # Partial BN sums over the valid (non-overhang) columns of this tile.
        zm = acc * mask_ref[...]
        s1 = jnp.sum(zm, axis=1, keepdims=True)
        s2 = jnp.sum(zm * zm, axis=1, keepdims=True)
        st_ref[0, 0] = jnp.concatenate([s1, s2], axis=1)

    y, st = pl.pallas_call(
        kernel,
        out_shape=(jax.ShapeDtypeStruct((N, Cout, H2 * W2p), jnp.float32),
                   jax.ShapeDtypeStruct((N, R, Cout, 2), jnp.float32)),
        grid=(N, R),
        in_specs=[
            pl.BlockSpec((9, Cout, Cin), lambda n, r: (0, 0, 0)),
            pl.BlockSpec((1, tmp), lambda n, r: (0, 0)),
            pl.BlockSpec((1, Cin, tmp), lambda n, r: (n, 0, r)),
            pl.BlockSpec((1, Cin, 8, W2p),
                         lambda n, r: (n, 0, jnp.maximum(r * hb - 1, 0), 0)),
            pl.BlockSpec((1, Cin, 8, W2p),
                         lambda n, r: (n, 0, jnp.minimum((r + 1) * hb, H2 // 8 - 1), 0)),
        ],
        out_specs=(pl.BlockSpec((1, Cout, tmp), lambda n, r: (n, 0, r)),
                   pl.BlockSpec((1, 1, Cout, 2), lambda n, r: (n, r, 0, 0))),
        scratch_shapes=[pltpu.VMEM((Cin, tmp + 2 * W2p + 128), jnp.bfloat16)],
        compiler_params=pltpu.CompilerParams(
            dimension_semantics=("parallel", "parallel"),
            vmem_limit_bytes=64 * 1024 * 1024),
    )(wt_bf, vmask, xpu_flat, xpu, xpu)
    return y, st


# ---------------- K3: folded BN scale/shift + ReLU, written directly as NCHW --------
def bn_relu_nchw(y4, scale_full, shift_full, th):
    N, Cout, H2, W2p = y4.shape
    W2 = scale_full.shape[1]
    R = H2 // th

    def kernel(scale_ref, shift_ref, y_ref, o_ref):
        for c in range(Cout):
            v = y_ref[0, c]                                          # (th, W2p)
            v = v[:, :W2] * scale_ref[c:c + 1, :] + shift_ref[c:c + 1, :]
            o_ref[0, c] = jnp.maximum(v, 0.0)

    return pl.pallas_call(
        kernel,
        out_shape=jax.ShapeDtypeStruct((N, Cout, H2, W2), jnp.float32),
        grid=(N, R),
        in_specs=[
            pl.BlockSpec((Cout, W2), lambda n, r: (0, 0)),
            pl.BlockSpec((Cout, W2), lambda n, r: (0, 0)),
            pl.BlockSpec((1, Cout, th, W2p), lambda n, r: (n, 0, r, 0)),
        ],
        out_specs=pl.BlockSpec((1, Cout, th, W2), lambda n, r: (n, 0, r, 0)),
        compiler_params=pltpu.CompilerParams(
            dimension_semantics=("parallel", "parallel"),
            vmem_limit_bytes=64 * 1024 * 1024),
    )(scale_full, shift_full, y4)


# ---------------- row-block (tile height) selection ----------------
def _pick_th(H2, W2p, Cin, Cout):
    """Largest multiple-of-16 divisor of H2 whose K2 tile fits a VMEM budget.
    (Bigger th -> larger MXU matmul N-dim, fewer grid steps / less per-step
    overhead.)  Falls back to th = H2 when H2 is not a multiple of 16 (then the
    flat tile equals the full array dim, which is always a legal block)."""
    if H2 % 16 != 0:
        return H2
    budget = 12 * 1024 * 1024
    # bytes per flat tile column: ctr (bf16, double-buffered) + y out (f32,
    # double-buffered) + slab scratch (bf16) + mask (f32).
    per_col = (2 * Cin * 2) + (2 * Cout * 4) + (Cin * 2) + 4
    best = 16
    for th in range(16, H2 + 1, 16):
        if H2 % th == 0 and th * W2p * per_col <= budget:
            best = th
    return best


# ---------------- public forward ----------------
@jax.jit
def up_conv_forward(x, params):
    N, Cin, H, W = x.shape
    Cout = params["w"].shape[0]
    H2, W2 = 2 * H, 2 * W
    assert H2 % 8 == 0, "H must be a multiple of 4 for this tiling"
    W2p = _round_up(W2 + 2, 8)                 # padded row width (lane-aligned)
    th = _pick_th(H2, W2p, Cin, Cout)          # row block; th*W2p is 128-mult/full

    # 1) bilinear 2x upsample fused with the conv's width zero-padding (bf16).
    xpu = bilinear_upsample_2x_padded(x, W2p)

    # 2) conv3x3 (bias omitted -- exactly cancelled by train-mode BN) + partial sums.
    wt = params["w"].transpose(2, 3, 0, 1).reshape(9, Cout, Cin).astype(jnp.bfloat16)
    y, st = conv3x3_partial_stats(xpu, wt, W2, th)

    # 3) finalize BatchNorm constants from global partial sums (tiny, plain JAX).
    s = st.sum(axis=(0, 1))                    # (Cout, 2)
    cnt = float(N * H2 * W2)
    mean = s[:, 0] / cnt
    var = s[:, 1] / cnt - mean * mean          # biased variance (train-mode BN)
    inv = jax.lax.rsqrt(var + 1e-5)
    scale = params["gamma"] * inv
    shift = params["beta"] - mean * scale
    # TODO(synk): BatchNorm running_mean/var momentum (EMA) updates not produced.

    # 4) normalize + ReLU; output is already NCHW (no transpose pass).
    scale_full = jnp.broadcast_to(scale[:, None], (Cout, W2))
    shift_full = jnp.broadcast_to(shift[:, None], (Cout, W2))
    y4 = y.reshape(N, Cout, H2, W2p)
    return bn_relu_nchw(y4, scale_full, shift_full, th)


# ---------------- pure-JAX reference (for in-script validation) ----------------
def up_conv_reference(x, params):
    N, C, H, W = x.shape
    uh = jnp.asarray(_bilinear_matrix(H, 2 * H))
    uw = jnp.asarray(_bilinear_matrix(W, 2 * W))
    up = jnp.einsum('ih,nchw,jw->ncij', uh, x, uw)
    y = jax.lax.conv_general_dilated(
        up, params["w"], window_strides=(1, 1), padding=((1, 1), (1, 1)),
        dimension_numbers=('NCHW', 'OIHW', 'NCHW')) + params["b"][None, :, None, None]
    mean = y.mean(axis=(0, 2, 3), keepdims=True)
    var = ((y - mean) ** 2).mean(axis=(0, 2, 3), keepdims=True)
    yhat = (y - mean) * jax.lax.rsqrt(var + 1e-5)
    yhat = yhat * params["gamma"][None, :, None, None] + params["beta"][None, :, None, None]
    return jnp.maximum(yhat, 0.0)


if __name__ == "__main__":
    in_ch, out_ch = 4, 8
    N, H, W = 2, 16, 16

    key = jax.random.PRNGKey(0)
    kx, kw, kb, kg, kbeta = jax.random.split(key, 5)
    x = jax.random.normal(kx, (N, in_ch, H, W), dtype=jnp.float32)
    params = {
        "w": 0.1 * jax.random.normal(kw, (out_ch, in_ch, 3, 3), dtype=jnp.float32),
        "b": 0.1 * jax.random.normal(kb, (out_ch,), dtype=jnp.float32),
        "gamma": 1.0 + 0.1 * jax.random.normal(kg, (out_ch,), dtype=jnp.float32),
        "beta": 0.1 * jax.random.normal(kbeta, (out_ch,), dtype=jnp.float32),
    }

    y = jax.block_until_ready(up_conv_forward(x, params))
    assert y.shape == (N, out_ch, 2 * H, 2 * W), y.shape

    y_ref = jax.block_until_ready(up_conv_reference(x, params))
    # Tolerance loosened because MXU operands (upsampled activations / weights)
    # are bf16 while the reference is pure f32.
    assert bool(jnp.allclose(y, y_ref, atol=6e-2, rtol=5e-2)), (
        "mismatch vs pure-JAX reference: max abs err = %f"
        % float(jnp.max(jnp.abs(y - y_ref))))

    print("KERNEL_OK")
</pallas_src>

<mosaic_0001>
module attributes {stable_mosaic.version = 11 : i64} {
  func.func @_upsample_kernel(%arg0: i32, %arg1: i32, %arg2: memref<1x4x16x16xf32, #tpu.memory_space<vmem>>, %arg3: memref<32x16xbf16, #tpu.memory_space<vmem>>, %arg4: memref<16x40xbf16, #tpu.memory_space<vmem>>, %arg5: memref<1x4x32x40xbf16, #tpu.memory_space<vmem>>) attributes {dimension_semantics = [#tpu.dimension_semantics<parallel>, #tpu.dimension_semantics<parallel>], iteration_bounds = array<i64: 2, 1>, scalar_prefetch = 0 : i64, scratch_operands = 0 : i64, tpu.core_type = #tpu.core_type<tc>, window_params = [{transform_indices = @transform_0, window_bounds = array<i64: 1, 4, 16, 16>}, {pipeline_mode = #tpu.pipeline_mode<synchronous>, transform_indices = @transform_1, window_bounds = array<i64: 32, 16>}, {pipeline_mode = #tpu.pipeline_mode<synchronous>, transform_indices = @transform_2, window_bounds = array<i64: 16, 40>}, {transform_indices = @transform_3, window_bounds = array<i64: 1, 4, 32, 40>}]} {
    %c0 = arith.constant 0 : index
    %c0_0 = arith.constant 0 : index
    %c0_1 = arith.constant 0 : index
    %c0_2 = arith.constant 0 : index
    %0 = vector.load %arg2[%c0, %c0_0, %c0_1, %c0_2] : memref<1x4x16x16xf32, #tpu.memory_space<vmem>>, vector<1x1x16x16xf32>
    %1 = vector.shape_cast %0 : vector<1x1x16x16xf32> to vector<16x16xf32>
    %2 = arith.truncf %1 : vector<16x16xf32> to vector<16x16xbf16>
    %c0_3 = arith.constant 0 : index
    %c0_4 = arith.constant 0 : index
    %3 = vector.load %arg3[%c0_3, %c0_4] : memref<32x16xbf16, #tpu.memory_space<vmem>>, vector<32x16xbf16>
    %cst = arith.constant dense<0.000000e+00> : vector<32x16xf32>
    %4 = tpu.matmul %3, %2, %cst {dimension_numbers = #tpu.dot_dimension_numbers<[1], [0], [0], [1], [0, 0, 1, 1], [], []>} : vector<32x16xbf16>, vector<16x16xbf16>, vector<32x16xf32> -> vector<32x16xf32>
    %5 = arith.truncf %4 : vector<32x16xf32> to vector<32x16xbf16>
    %c0_5 = arith.constant 0 : index
    %c0_6 = arith.constant 0 : index
    %6 = vector.load %arg4[%c0_5, %c0_6] : memref<16x40xbf16, #tpu.memory_space<vmem>>, vector<16x40xbf16>
    %cst_7 = arith.constant dense<0.000000e+00> : vector<32x40xf32>
    %7 = tpu.matmul %5, %6, %cst_7 {dimension_numbers = #tpu.dot_dimension_numbers<[1], [0], [0], [1], [0, 0, 1, 1], [], []>} : vector<32x16xbf16>, vector<16x40xbf16>, vector<32x40xf32> -> vector<32x40xf32>
    %8 = arith.truncf %7 : vector<32x40xf32> to vector<32x40xbf16>
    %c0_8 = arith.constant 0 : index
    %c0_9 = arith.constant 0 : index
    %c0_10 = arith.constant 0 : index
    %c0_11 = arith.constant 0 : index
    %9 = vector.load %arg5[%c0_8, %c0_9, %c0_10, %c0_11] : memref<1x4x32x40xbf16, #tpu.memory_space<vmem>>, vector<1x1x32x40xbf16>
    %10 = vector.shape_cast %9 : vector<1x1x32x40xbf16> to vector<32x40xbf16>
    %11 = vector.shape_cast %8 : vector<32x40xbf16> to vector<1x1x32x40xbf16>
    tpu.vector_store %arg5[%c0_8, %c0_9, %c0_10, %c0_11], %11 {strides = array<i32>} : memref<1x4x32x40xbf16, #tpu.memory_space<vmem>>, vector<1x1x32x40xbf16>,
    %c0_12 = arith.constant 0 : index
    %c1 = arith.constant 1 : index
    %c0_13 = arith.constant 0 : index
    %c0_14 = arith.constant 0 : index
    %12 = vector.load %arg2[%c0_12, %c1, %c0_13, %c0_14] : memref<1x4x16x16xf32, #tpu.memory_space<vmem>>, vector<1x1x16x16xf32>
    %13 = vector.shape_cast %12 : vector<1x1x16x16xf32> to vector<16x16xf32>
    %14 = arith.truncf %13 : vector<16x16xf32> to vector<16x16xbf16>
    %c0_15 = arith.constant 0 : index
    %c0_16 = arith.constant 0 : index
    %15 = vector.load %arg3[%c0_15, %c0_16] : memref<32x16xbf16, #tpu.memory_space<vmem>>, vector<32x16xbf16>
    %cst_17 = arith.constant dense<0.000000e+00> : vector<32x16xf32>
    %16 = tpu.matmul %15, %14, %cst_17 {dimension_numbers = #tpu.dot_dimension_numbers<[1], [0], [0], [1], [0, 0, 1, 1], [], []>} : vector<32x16xbf16>, vector<16x16xbf16>, vector<32x16xf32> -> vector<32x16xf32>
    %17 = arith.truncf %16 : vector<32x16xf32> to vector<32x16xbf16>
    %c0_18 = arith.constant 0 : index
    %c0_19 = arith.constant 0 : index
    %18 = vector.load %arg4[%c0_18, %c0_19] : memref<16x40xbf16, #tpu.memory_space<vmem>>, vector<16x40xbf16>
    %cst_20 = arith.constant dense<0.000000e+00> : vector<32x40xf32>
    %19 = tpu.matmul %17, %18, %cst_20 {dimension_numbers = #tpu.dot_dimension_numbers<[1], [0], [0], [1], [0, 0, 1, 1], [], []>} : vector<32x16xbf16>, vector<16x40xbf16>, vector<32x40xf32> -> vector<32x40xf32>
    %20 = arith.truncf %19 : vector<32x40xf32> to vector<32x40xbf16>
    %c0_21 = arith.constant 0 : index
    %c1_22 = arith.constant 1 : index
    %c0_23 = arith.constant 0 : index
    %c0_24 = arith.constant 0 : index
    %21 = vector.load %arg5[%c0_21, %c1_22, %c0_23, %c0_24] : memref<1x4x32x40xbf16, #tpu.memory_space<vmem>>, vector<1x1x32x40xbf16>
    %22 = vector.shape_cast %21 : vector<1x1x32x40xbf16> to vector<32x40xbf16>
    %23 = vector.shape_cast %20 : vector<32x40xbf16> to vector<1x1x32x40xbf16>
    tpu.vector_store %arg5[%c0_21, %c1_22, %c0_23, %c0_24], %23 {strides = array<i32>} : memref<1x4x32x40xbf16, #tpu.memory_space<vmem>>, vector<1x1x32x40xbf16>,
    %c0_25 = arith.constant 0 : index
    %c2 = arith.constant 2 : index
    %c0_26 = arith.constant 0 : index
    %c0_27 = arith.constant 0 : index
    %24 = vector.load %arg2[%c0_25, %c2, %c0_26, %c0_27] : memref<1x4x16x16xf32, #tpu.memory_space<vmem>>, vector<1x1x16x16xf32>
    %25 = vector.shape_cast %24 : vector<1x1x16x16xf32> to vector<16x16xf32>
    %26 = arith.truncf %25 : vector<16x16xf32> to vector<16x16xbf16>
    %c0_28 = arith.constant 0 : index
    %c0_29 = arith.constant 0 : index
    %27 = vector.load %arg3[%c0_28, %c0_29] : memref<32x16xbf16, #tpu.memory_space<vmem>>, vector<32x16xbf16>
    %cst_30 = arith.constant dense<0.000000e+00> : vector<32x16xf32>
    %28 = tpu.matmul %27, %26, %cst_30 {dimension_numbers = #tpu.dot_dimension_numbers<[1], [0], [0], [1], [0, 0, 1, 1], [], []>} : vector<32x16xbf16>, vector<16x16xbf16>, vector<32x16xf32> -> vector<32x16xf32>
    %29 = arith.truncf %28 : vector<32x16xf32> to vector<32x16xbf16>
    %c0_31 = arith.constant 0 : index
    %c0_32 = arith.constant 0 : index
    %30 = vector.load %arg4[%c0_31, %c0_32] : memref<16x40xbf16, #tpu.memory_space<vmem>>, vector<16x40xbf16>
    %cst_33 = arith.constant dense<0.000000e+00> : vector<32x40xf32>
    %31 = tpu.matmul %29, %30, %cst_33 {dimension_numbers = #tpu.dot_dimension_numbers<[1], [0], [0], [1], [0, 0, 1, 1], [], []>} : vector<32x16xbf16>, vector<16x40xbf16>, vector<32x40xf32> -> vector<32x40xf32>
    %32 = arith.truncf %31 : vector<32x40xf32> to vector<32x40xbf16>
    %c0_34 = arith.constant 0 : index
    %c2_35 = arith.constant 2 : index
    %c0_36 = arith.constant 0 : index
    %c0_37 = arith.constant 0 : index
    %33 = vector.load %arg5[%c0_34, %c2_35, %c0_36, %c0_37] : memref<1x4x32x40xbf16, #tpu.memory_space<vmem>>, vector<1x1x32x40xbf16>
    %34 = vector.shape_cast %33 : vector<1x1x32x40xbf16> to vector<32x40xbf16>
    %35 = vector.shape_cast %32 : vector<32x40xbf16> to vector<1x1x32x40xbf16>
    tpu.vector_store %arg5[%c0_34, %c2_35, %c0_36, %c0_37], %35 {strides = array<i32>} : memref<1x4x32x40xbf16, #tpu.memory_space<vmem>>, vector<1x1x32x40xbf16>,
    %c0_38 = arith.constant 0 : index
    %c3 = arith.constant 3 : index
    %c0_39 = arith.constant 0 : index
    %c0_40 = arith.constant 0 : index
    %36 = vector.load %arg2[%c0_38, %c3, %c0_39, %c0_40] : memref<1x4x16x16xf32, #tpu.memory_space<vmem>>, vector<1x1x16x16xf32>
    %37 = vector.shape_cast %36 : vector<1x1x16x16xf32> to vector<16x16xf32>
    %38 = arith.truncf %37 : vector<16x16xf32> to vector<16x16xbf16>
    %c0_41 = arith.constant 0 : index
    %c0_42 = arith.constant 0 : index
    %39 = vector.load %arg3[%c0_41, %c0_42] : memref<32x16xbf16, #tpu.memory_space<vmem>>, vector<32x16xbf16>
    %cst_43 = arith.constant dense<0.000000e+00> : vector<32x16xf32>
    %40 = tpu.matmul %39, %38, %cst_43 {dimension_numbers = #tpu.dot_dimension_numbers<[1], [0], [0], [1], [0, 0, 1, 1], [], []>} : vector<32x16xbf16>, vector<16x16xbf16>, vector<32x16xf32> -> vector<32x16xf32>
    %41 = arith.truncf %40 : vector<32x16xf32> to vector<32x16xbf16>
    %c0_44 = arith.constant 0 : index
    %c0_45 = arith.constant 0 : index
    %42 = vector.load %arg4[%c0_44, %c0_45] : memref<16x40xbf16, #tpu.memory_space<vmem>>, vector<16x40xbf16>
    %cst_46 = arith.constant dense<0.000000e+00> : vector<32x40xf32>
    %43 = tpu.matmul %41, %42, %cst_46 {dimension_numbers = #tpu.dot_dimension_numbers<[1], [0], [0], [1], [0, 0, 1, 1], [], []>} : vector<32x16xbf16>, vector<16x40xbf16>, vector<32x40xf32> -> vector<32x40xf32>
    %44 = arith.truncf %43 : vector<32x40xf32> to vector<32x40xbf16>
    %c0_47 = arith.constant 0 : index
    %c3_48 = arith.constant 3 : index
    %c0_49 = arith.constant 0 : index
    %c0_50 = arith.constant 0 : index
    %45 = vector.load %arg5[%c0_47, %c3_48, %c0_49, %c0_50] : memref<1x4x32x40xbf16, #tpu.memory_space<vmem>>, vector<1x1x32x40xbf16>
    %46 = vector.shape_cast %45 : vector<1x1x32x40xbf16> to vector<32x40xbf16>
    %47 = vector.shape_cast %44 : vector<32x40xbf16> to vector<1x1x32x40xbf16>
    tpu.vector_store %arg5[%c0_47, %c3_48, %c0_49, %c0_50], %47 {strides = array<i32>} : memref<1x4x32x40xbf16, #tpu.memory_space<vmem>>, vector<1x1x32x40xbf16>,
    return
  }
  func.func @transform_0(%arg0: i32, %arg1: i32) -> (i32, i32, i32, i32) {
    %c0_i32 = arith.constant 0 : i32
    %c0_i32_0 = arith.constant 0 : i32
    %c0_i32_1 = arith.constant 0 : i32
    return %arg0, %arg1, %c0_i32, %c0_i32_0 : i32, i32, i32, i32
  }
  func.func @transform_1(%arg0: i32, %arg1: i32) -> (i32, i32) {
    %c0_i32 = arith.constant 0 : i32
    %c0_i32_0 = arith.constant 0 : i32
    %c0_i32_1 = arith.constant 0 : i32
    return %c0_i32, %c0_i32_0 : i32, i32
  }
  func.func @transform_2(%arg0: i32, %arg1: i32) -> (i32, i32) {
    %c0_i32 = arith.constant 0 : i32
    %c0_i32_0 = arith.constant 0 : i32
    %c0_i32_1 = arith.constant 0 : i32
    return %c0_i32, %c0_i32_0 : i32, i32
  }
  func.func @transform_3(%arg0: i32, %arg1: i32) -> (i32, i32, i32, i32) {
    %c0_i32 = arith.constant 0 : i32
    %c0_i32_0 = arith.constant 0 : i32
    %c0_i32_1 = arith.constant 0 : i32
    return %arg0, %arg1, %c0_i32, %c0_i32_0 : i32, i32, i32, i32
  }
}

module attributes {stable_mosaic.version = 11 : i64} {
  func.func @kernel(%arg0: i32, %arg1: i32, %arg2: memref<8x32xf32, #tpu.memory_space<vmem>>, %arg3: memref<8x32xf32, #tpu.memory_space<vmem>>, %arg4: memref<1x8x32x40xf32, #tpu.memory_space<vmem>>, %arg5: memref<1x8x32x32xf32, #tpu.memory_space<vmem>>) attributes {dimension_semantics = [#tpu.dimension_semantics<parallel>, #tpu.dimension_semantics<parallel>], iteration_bounds = array<i64: 2, 1>, scalar_prefetch = 0 : i64, scratch_operands = 0 : i64, tpu.core_type = #tpu.core_type<tc>, window_params = [{pipeline_mode = #tpu.pipeline_mode<synchronous>, transform_indices = @transform_0, window_bounds = array<i64: 8, 32>}, {pipeline_mode = #tpu.pipeline_mode<synchronous>, transform_indices = @transform_1, window_bounds = array<i64: 8, 32>}, {transform_indices = @transform_2, window_bounds = array<i64: 1, 8, 32, 40>}, {transform_indices = @transform_3, window_bounds = array<i64: 1, 8, 32, 32>}]} {
    %c0 = arith.constant 0 : index
    %c0_0 = arith.constant 0 : index
    %c0_1 = arith.constant 0 : index
    %c0_2 = arith.constant 0 : index
    %0 = vector.load %arg4[%c0, %c0_0, %c0_1, %c0_2] : memref<1x8x32x40xf32, #tpu.memory_space<vmem>>, vector<1x1x32x40xf32>
    %1 = vector.shape_cast %0 : vector<1x1x32x40xf32> to vector<32x40xf32>
    %2 = vector.extract_strided_slice %1 {offsets = [0, 0], sizes = [32, 32], strides = [1, 1]} : vector<32x40xf32> to vector<32x32xf32>
    %c0_3 = arith.constant 0 : index
    %c0_4 = arith.constant 0 : index
    %3 = vector.load %arg2[%c0_3, %c0_4] : memref<8x32xf32, #tpu.memory_space<vmem>>, vector<1x32xf32>
    %4 = vector.broadcast %3 : vector<1x32xf32> to vector<32x32xf32>
    %5 = arith.mulf %2, %4 : vector<32x32xf32>
    %c0_5 = arith.constant 0 : index
    %c0_6 = arith.constant 0 : index
    %6 = vector.load %arg3[%c0_5, %c0_6] : memref<8x32xf32, #tpu.memory_space<vmem>>, vector<1x32xf32>
    %7 = vector.broadcast %6 : vector<1x32xf32> to vector<32x32xf32>
    %8 = arith.addf %5, %7 : vector<32x32xf32>
    %cst = arith.constant 0.000000e+00 : f32
    %9 = vector.broadcast %cst : f32 to vector<32x32xf32>
    %10 = arith.maximumf %8, %9 : vector<32x32xf32>
    %c0_7 = arith.constant 0 : index
    %c0_8 = arith.constant 0 : index
    %c0_9 = arith.constant 0 : index
    %c0_10 = arith.constant 0 : index
    %11 = vector.load %arg5[%c0_7, %c0_8, %c0_9, %c0_10] : memref<1x8x32x32xf32, #tpu.memory_space<vmem>>, vector<1x1x32x32xf32>
    %12 = vector.shape_cast %11 : vector<1x1x32x32xf32> to vector<32x32xf32>
    %13 = vector.shape_cast %10 : vector<32x32xf32> to vector<1x1x32x32xf32>
    tpu.vector_store %arg5[%c0_7, %c0_8, %c0_9, %c0_10], %13 {strides = array<i32>} : memref<1x8x32x32xf32, #tpu.memory_space<vmem>>, vector<1x1x32x32xf32>,
    %c0_11 = arith.constant 0 : index
    %c1 = arith.constant 1 : index
    %c0_12 = arith.constant 0 : index
    %c0_13 = arith.constant 0 : index
    %14 = vector.load %arg4[%c0_11, %c1, %c0_12, %c0_13] : memref<1x8x32x40xf32, #tpu.memory_space<vmem>>, vector<1x1x32x40xf32>
    %15 = vector.shape_cast %14 : vector<1x1x32x40xf32> to vector<32x40xf32>
    %16 = vector.extract_strided_slice %15 {offsets = [0, 0], sizes = [32, 32], strides = [1, 1]} : vector<32x40xf32> to vector<32x32xf32>
    %c1_14 = arith.constant 1 : index
    %c0_15 = arith.constant 0 : index
    %17 = vector.load %arg2[%c1_14, %c0_15] : memref<8x32xf32, #tpu.memory_space<vmem>>, vector<1x32xf32>
    %18 = vector.broadcast %17 : vector<1x32xf32> to vector<32x32xf32>
    %19 = arith.mulf %16, %18 : vector<32x32xf32>
    %c1_16 = arith.constant 1 : index
    %c0_17 = arith.constant 0 : index
    %20 = vector.load %arg3[%c1_16, %c0_17] : memref<8x32xf32, #tpu.memory_space<vmem>>, vector<1x32xf32>
    %21 = vector.broadcast %20 : vector<1x32xf32> to vector<32x32xf32>
    %22 = arith.addf %19, %21 : vector<32x32xf32>
    %cst_18 = arith.constant 0.000000e+00 : f32
    %23 = vector.broadcast %cst_18 : f32 to vector<32x32xf32>
    %24 = arith.maximumf %22, %23 : vector<32x32xf32>
    %c0_19 = arith.constant 0 : index
    %c1_20 = arith.constant 1 : index
    %c0_21 = arith.constant 0 : index
    %c0_22 = arith.constant 0 : index
    %25 = vector.load %arg5[%c0_19, %c1_20, %c0_21, %c0_22] : memref<1x8x32x32xf32, #tpu.memory_space<vmem>>, vector<1x1x32x32xf32>
    %26 = vector.shape_cast %25 : vector<1x1x32x32xf32> to vector<32x32xf32>
    %27 = vector.shape_cast %24 : vector<32x32xf32> to vector<1x1x32x32xf32>
    tpu.vector_store %arg5[%c0_19, %c1_20, %c0_21, %c0_22], %27 {strides = array<i32>} : memref<1x8x32x32xf32, #tpu.memory_space<vmem>>, vector<1x1x32x32xf32>,
    %c0_23 = arith.constant 0 : index
    %c2 = arith.constant 2 : index
    %c0_24 = arith.constant 0 : index
    %c0_25 = arith.constant 0 : index
    %28 = vector.load %arg4[%c0_23, %c2, %c0_24, %c0_25] : memref<1x8x32x40xf32, #tpu.memory_space<vmem>>, vector<1x1x32x40xf32>
    %29 = vector.shape_cast %28 : vector<1x1x32x40xf32> to vector<32x40xf32>
    %30 = vector.extract_strided_slice %29 {offsets = [0, 0], sizes = [32, 32], strides = [1, 1]} : vector<32x40xf32> to vector<32x32xf32>
    %c2_26 = arith.constant 2 : index
    %c0_27 = arith.constant 0 : index
    %31 = vector.load %arg2[%c2_26, %c0_27] : memref<8x32xf32, #tpu.memory_space<vmem>>, vector<1x32xf32>
    %32 = vector.broadcast %31 : vector<1x32xf32> to vector<32x32xf32>
    %33 = arith.mulf %30, %32 : vector<32x32xf32>
    %c2_28 = arith.constant 2 : index
    %c0_29 = arith.constant 0 : index
    %34 = vector.load %arg3[%c2_28, %c0_29] : memref<8x32xf32, #tpu.memory_space<vmem>>, vector<1x32xf32>
    %35 = vector.broadcast %34 : vector<1x32xf32> to vector<32x32xf32>
    %36 = arith.addf %33, %35 : vector<32x32xf32>
    %cst_30 = arith.constant 0.000000e+00 : f32
    %37 = vector.broadcast %cst_30 : f32 to vector<32x32xf32>
    %38 = arith.maximumf %36, %37 : vector<32x32xf32>
    %c0_31 = arith.constant 0 : index
    %c2_32 = arith.constant 2 : index
    %c0_33 = arith.constant 0 : index
    %c0_34 = arith.constant 0 : index
    %39 = vector.load %arg5[%c0_31, %c2_32, %c0_33, %c0_34] : memref<1x8x32x32xf32, #tpu.memory_space<vmem>>, vector<1x1x32x32xf32>
    %40 = vector.shape_cast %39 : vector<1x1x32x32xf32> to vector<32x32xf32>
    %41 = vector.shape_cast %38 : vector<32x32xf32> to vector<1x1x32x32xf32>
    tpu.vector_store %arg5[%c0_31, %c2_32, %c0_33, %c0_34], %41 {strides = array<i32>} : memref<1x8x32x32xf32, #tpu.memory_space<vmem>>, vector<1x1x32x32xf32>,
    %c0_35 = arith.constant 0 : index
    %c3 = arith.constant 3 : index
    %c0_36 = arith.constant 0 : index
    %c0_37 = arith.constant 0 : index
    %42 = vector.load %arg4[%c0_35, %c3, %c0_36, %c0_37] : memref<1x8x32x40xf32, #tpu.memory_space<vmem>>, vector<1x1x32x40xf32>
    %43 = vector.shape_cast %42 : vector<1x1x32x40xf32> to vector<32x40xf32>
    %44 = vector.extract_strided_slice %43 {offsets = [0, 0], sizes = [32, 32], strides = [1, 1]} : vector<32x40xf32> to vector<32x32xf32>
    %c3_38 = arith.constant 3 : index
    %c0_39 = arith.constant 0 : index
    %45 = vector.load %arg2[%c3_38, %c0_39] : memref<8x32xf32, #tpu.memory_space<vmem>>, vector<1x32xf32>
    %46 = vector.broadcast %45 : vector<1x32xf32> to vector<32x32xf32>
    %47 = arith.mulf %44, %46 : vector<32x32xf32>
    %c3_40 = arith.constant 3 : index
    %c0_41 = arith.constant 0 : index
    %48 = vector.load %arg3[%c3_40, %c0_41] : memref<8x32xf32, #tpu.memory_space<vmem>>, vector<1x32xf32>
    %49 = vector.broadcast %48 : vector<1x32xf32> to vector<32x32xf32>
    %50 = arith.addf %47, %49 : vector<32x32xf32>
    %cst_42 = arith.constant 0.000000e+00 : f32
    %51 = vector.broadcast %cst_42 : f32 to vector<32x32xf32>
    %52 = arith.maximumf %50, %51 : vector<32x32xf32>
    %c0_43 = arith.constant 0 : index
    %c3_44 = arith.constant 3 : index
    %c0_45 = arith.constant 0 : index
    %c0_46 = arith.constant 0 : index
    %53 = vector.load %arg5[%c0_43, %c3_44, %c0_45, %c0_46] : memref<1x8x32x32xf32, #tpu.memory_space<vmem>>, vector<1x1x32x32xf32>
    %54 = vector.shape_cast %53 : vector<1x1x32x32xf32> to vector<32x32xf32>
    %55 = vector.shape_cast %52 : vector<32x32xf32> to vector<1x1x32x32xf32>
    tpu.vector_store %arg5[%c0_43, %c3_44, %c0_45, %c0_46], %55 {strides = array<i32>} : memref<1x8x32x32xf32, #tpu.memory_space<vmem>>, vector<1x1x32x32xf32>,
    %c0_47 = arith.constant 0 : index
    %c4 = arith.constant 4 : index
    %c0_48 = arith.constant 0 : index
    %c0_49 = arith.constant 0 : index
    %56 = vector.load %arg4[%c0_47, %c4, %c0_48, %c0_49] : memref<1x8x32x40xf32, #tpu.memory_space<vmem>>, vector<1x1x32x40xf32>
    %57 = vector.shape_cast %56 : vector<1x1x32x40xf32> to vector<32x40xf32>
    %58 = vector.extract_strided_slice %57 {offsets = [0, 0], sizes = [32, 32], strides = [1, 1]} : vector<32x40xf32> to vector<32x32xf32>
    %c4_50 = arith.constant 4 : index
    %c0_51 = arith.constant 0 : index
    %59 = vector.load %arg2[%c4_50, %c0_51] : memref<8x32xf32, #tpu.memory_space<vmem>>, vector<1x32xf32>
    %60 = vector.broadcast %59 : vector<1x32xf32> to vector<32x32xf32>
    %61 = arith.mulf %58, %60 : vector<32x32xf32>
    %c4_52 = arith.constant 4 : index
    %c0_53 = arith.constant 0 : index
    %62 = vector.load %arg3[%c4_52, %c0_53] : memref<8x32xf32, #tpu.memory_space<vmem>>, vector<1x32xf32>
    %63 = vector.broadcast %62 : vector<1x32xf32> to vector<32x32xf32>
    %64 = arith.addf %61, %63 : vector<32x32xf32>
    %cst_54 = arith.constant 0.000000e+00 : f32
    %65 = vector.broadcast %cst_54 : f32 to vector<32x32xf32>
    %66 = arith.maximumf %64, %65 : vector<32x32xf32>
    %c0_55 = arith.constant 0 : index
    %c4_56 = arith.constant 4 : index
    %c0_57 = arith.constant 0 : index
    %c0_58 = arith.constant 0 : index
    %67 = vector.load %arg5[%c0_55, %c4_56, %c0_57, %c0_58] : memref<1x8x32x32xf32, #tpu.memory_space<vmem>>, vector<1x1x32x32xf32>
    %68 = vector.shape_cast %67 : vector<1x1x32x32xf32> to vector<32x32xf32>
    %69 = vector.shape_cast %66 : vector<32x32xf32> to vector<1x1x32x32xf32>
    tpu.vector_store %arg5[%c0_55, %c4_56, %c0_57, %c0_58], %69 {strides = array<i32>} : memref<1x8x32x32xf32, #tpu.memory_space<vmem>>, vector<1x1x32x32xf32>,
    %c0_59 = arith.constant 0 : index
    %c5 = arith.constant 5 : index
    %c0_60 = arith.constant 0 : index
    %c0_61 = arith.constant 0 : index
    %70 = vector.load %arg4[%c0_59, %c5, %c0_60, %c0_61] : memref<1x8x32x40xf32, #tpu.memory_space<vmem>>, vector<1x1x32x40xf32>
    %71 = vector.shape_cast %70 : vector<1x1x32x40xf32> to vector<32x40xf32>
    %72 = vector.extract_strided_slice %71 {offsets = [0, 0], sizes = [32, 32], strides = [1, 1]} : vector<32x40xf32> to vector<32x32xf32>
    %c5_62 = arith.constant 5 : index
    %c0_63 = arith.constant 0 : index
    %73 = vector.load %arg2[%c5_62, %c0_63] : memref<8x32xf32, #tpu.memory_space<vmem>>, vector<1x32xf32>
    %74 = vector.broadcast %73 : vector<1x32xf32> to vector<32x32xf32>
    %75 = arith.mulf %72, %74 : vector<32x32xf32>
    %c5_64 = arith.constant 5 : index
    %c0_65 = arith.constant 0 : index
    %76 = vector.load %arg3[%c5_64, %c0_65] : memref<8x32xf32, #tpu.memory_space<vmem>>, vector<1x32xf32>
    %77 = vector.broadcast %76 : vector<1x32xf32> to vector<32x32xf32>
    %78 = arith.addf %75, %77 : vector<32x32xf32>
    %cst_66 = arith.constant 0.000000e+00 : f32
    %79 = vector.broadcast %cst_66 : f32 to vector<32x32xf32>
    %80 = arith.maximumf %78, %79 : vector<32x32xf32>
    %c0_67 = arith.constant 0 : index
    %c5_68 = arith.constant 5 : index
    %c0_69 = arith.constant 0 : index
    %c0_70 = arith.constant 0 : index
    %81 = vector.load %arg5[%c0_67, %c5_68, %c0_69, %c0_70] : memref<1x8x32x32xf32, #tpu.memory_space<vmem>>, vector<1x1x32x32xf32>
    %82 = vector.shape_cast %81 : vector<1x1x32x32xf32> to vector<32x32xf32>
    %83 = vector.shape_cast %80 : vector<32x32xf32> to vector<1x1x32x32xf32>
    tpu.vector_store %arg5[%c0_67, %c5_68, %c0_69, %c0_70], %83 {strides = array<i32>} : memref<1x8x32x32xf32, #tpu.memory_space<vmem>>, vector<1x1x32x32xf32>,
    %c0_71 = arith.constant 0 : index
    %c6 = arith.constant 6 : index
    %c0_72 = arith.constant 0 : index
    %c0_73 = arith.constant 0 : index
    %84 = vector.load %arg4[%c0_71, %c6, %c0_72, %c0_73] : memref<1x8x32x40xf32, #tpu.memory_space<vmem>>, vector<1x1x32x40xf32>
    %85 = vector.shape_cast %84 : vector<1x1x32x40xf32> to vector<32x40xf32>
    %86 = vector.extract_strided_slice %85 {offsets = [0, 0], sizes = [32, 32], strides = [1, 1]} : vector<32x40xf32> to vector<32x32xf32>
    %c6_74 = arith.constant 6 : index
    %c0_75 = arith.constant 0 : index
    %87 = vector.load %arg2[%c6_74, %c0_75] : memref<8x32xf32, #tpu.memory_space<vmem>>, vector<1x32xf32>
    %88 = vector.broadcast %87 : vector<1x32xf32> to vector<32x32xf32>
    %89 = arith.mulf %86, %88 : vector<32x32xf32>
    %c6_76 = arith.constant 6 : index
    %c0_77 = arith.constant 0 : index
    %90 = vector.load %arg3[%c6_76, %c0_77] : memref<8x32xf32, #tpu.memory_space<vmem>>, vector<1x32xf32>
    %91 = vector.broadcast %90 : vector<1x32xf32> to vector<32x32xf32>
    %92 = arith.addf %89, %91 : vector<32x32xf32>
    %cst_78 = arith.constant 0.000000e+00 : f32
    %93 = vector.broadcast %cst_78 : f32 to vector<32x32xf32>
    %94 = arith.maximumf %92, %93 : vector<32x32xf32>
    %c0_79 = arith.constant 0 : index
    %c6_80 = arith.constant 6 : index
    %c0_81 = arith.constant 0 : index
    %c0_82 = arith.constant 0 : index
    %95 = vector.load %arg5[%c0_79, %c6_80, %c0_81, %c0_82] : memref<1x8x32x32xf32, #tpu.memory_space<vmem>>, vector<1x1x32x32xf32>
    %96 = vector.shape_cast %95 : vector<1x1x32x32xf32> to vector<32x32xf32>
    %97 = vector.shape_cast %94 : vector<32x32xf32> to vector<1x1x32x32xf32>
    tpu.vector_store %arg5[%c0_79, %c6_80, %c0_81, %c0_82], %97 {strides = array<i32>} : memref<1x8x32x32xf32, #tpu.memory_space<vmem>>, vector<1x1x32x32xf32>,
    %c0_83 = arith.constant 0 : index
    %c7 = arith.constant 7 : index
    %c0_84 = arith.constant 0 : index
    %c0_85 = arith.constant 0 : index
    %98 = vector.load %arg4[%c0_83, %c7, %c0_84, %c0_85] : memref<1x8x32x40xf32, #tpu.memory_space<vmem>>, vector<1x1x32x40xf32>
    %99 = vector.shape_cast %98 : vector<1x1x32x40xf32> to vector<32x40xf32>
    %100 = vector.extract_strided_slice %99 {offsets = [0, 0], sizes = [32, 32], strides = [1, 1]} : vector<32x40xf32> to vector<32x32xf32>
    %c7_86 = arith.constant 7 : index
    %c0_87 = arith.constant 0 : index
    %101 = vector.load %arg2[%c7_86, %c0_87] : memref<8x32xf32, #tpu.memory_space<vmem>>, vector<1x32xf32>
    %102 = vector.broadcast %101 : vector<1x32xf32> to vector<32x32xf32>
    %103 = arith.mulf %100, %102 : vector<32x32xf32>
    %c7_88 = arith.constant 7 : index
    %c0_89 = arith.constant 0 : index
    %104 = vector.load %arg3[%c7_88, %c0_89] : memref<8x32xf32, #tpu.memory_space<vmem>>, vector<1x32xf32>
    %105 = vector.broadcast %104 : vector<1x32xf32> to vector<32x32xf32>
    %106 = arith.addf %103, %105 : vector<32x32xf32>
    %cst_90 = arith.constant 0.000000e+00 : f32
    %107 = vector.broadcast %cst_90 : f32 to vector<32x32xf32>
    %108 = arith.maximumf %106, %107 : vector<32x32xf32>
    %c0_91 = arith.constant 0 : index
    %c7_92 = arith.constant 7 : index
    %c0_93 = arith.constant 0 : index
    %c0_94 = arith.constant 0 : index
    %109 = vector.load %arg5[%c0_91, %c7_92, %c0_93, %c0_94] : memref<1x8x32x32xf32, #tpu.memory_space<vmem>>, vector<1x1x32x32xf32>
    %110 = vector.shape_cast %109 : vector<1x1x32x32xf32> to vector<32x32xf32>
    %111 = vector.shape_cast %108 : vector<32x32xf32> to vector<1x1x32x32xf32>
    tpu.vector_store %arg5[%c0_91, %c7_92, %c0_93, %c0_94], %111 {strides = array<i32>} : memref<1x8x32x32xf32, #tpu.memory_space<vmem>>, vector<1x1x32x32xf32>,
    return
  }
  func.func @transform_0(%arg0: i32, %arg1: i32) -> (i32, i32) {
    %c0_i32 = arith.constant 0 : i32
    %c0_i32_0 = arith.constant 0 : i32
    %c0_i32_1 = arith.constant 0 : i32
    return %c0_i32, %c0_i32_0 : i32, i32
  }
  func.func @transform_1(%arg0: i32, %arg1: i32) -> (i32, i32) {
    %c0_i32 = arith.constant 0 : i32
    %c0_i32_0 = arith.constant 0 : i32
    %c0_i32_1 = arith.constant 0 : i32
    return %c0_i32, %c0_i32_0 : i32, i32
  }
  func.func @transform_2(%arg0: i32, %arg1: i32) -> (i32, i32, i32, i32) {
    %c0_i32 = arith.constant 0 : i32
    %c0_i32_0 = arith.constant 0 : i32
    %c0_i32_1 = arith.constant 0 : i32
    return %arg0, %c0_i32, %arg1, %c0_i32_0 : i32, i32, i32, i32
  }
  func.func @transform_3(%arg0: i32, %arg1: i32) -> (i32, i32, i32, i32) {
    %c0_i32 = arith.constant 0 : i32
    %c0_i32_0 = arith.constant 0 : i32
    %c0_i32_1 = arith.constant 0 : i32
    return %arg0, %c0_i32, %arg1, %c0_i32_0 : i32, i32, i32, i32
  }
}

module attributes {stable_mosaic.version = 11 : i64} {
  func.func @kernel(%arg0: i32, %arg1: i32, %arg2: memref<9x8x4xbf16, #tpu.memory_space<vmem>>, %arg3: memref<1x1280xf32, #tpu.memory_space<vmem>>, %arg4: memref<1x4x1280xbf16, #tpu.memory_space<vmem>>, %arg5: memref<1x4x8x40xbf16, #tpu.memory_space<vmem>>, %arg6: memref<1x4x8x40xbf16, #tpu.memory_space<vmem>>, %arg7: memref<1x8x1280xf32, #tpu.memory_space<vmem>>, %arg8: memref<1x1x8x2xf32, #tpu.memory_space<vmem>>, %arg9: memref<4x1488xbf16, #tpu.memory_space<vmem>>) attributes {dimension_semantics = [#tpu.dimension_semantics<parallel>, #tpu.dimension_semantics<parallel>], iteration_bounds = array<i64: 2, 1>, scalar_prefetch = 0 : i64, scratch_operands = 1 : i64, tpu.core_type = #tpu.core_type<tc>, window_params = [{pipeline_mode = #tpu.pipeline_mode<synchronous>, transform_indices = @transform_0, window_bounds = array<i64: 9, 8, 4>}, {pipeline_mode = #tpu.pipeline_mode<synchronous>, transform_indices = @transform_1, window_bounds = array<i64: 1, 1280>}, {transform_indices = @transform_2, window_bounds = array<i64: 1, 4, 1280>}, {transform_indices = @transform_3, window_bounds = array<i64: 1, 4, 8, 40>}, {transform_indices = @transform_4, window_bounds = array<i64: 1, 4, 8, 40>}, {transform_indices = @transform_5, window_bounds = array<i64: 1, 8, 1280>}, {transform_indices = @transform_6, window_bounds = array<i64: 1, 1, 8, 2>}]} {
    %cst = arith.constant 0.000000e+00 : bf16
    %0 = vector.broadcast %cst : bf16 to vector<4x40xbf16>
    %c0_i32 = arith.constant 0 : i32
    %1 = arith.cmpi eq, %arg1, %c0_i32 : i32
    %c0 = arith.constant 0 : index
    %c0_0 = arith.constant 0 : index
    %c0_1 = arith.constant 0 : index
    %c0_2 = arith.constant 0 : index
    %2 = vector.load %arg5[%c0, %c0_0, %c0_1, %c0_2] : memref<1x4x8x40xbf16, #tpu.memory_space<vmem>>, vector<1x4x8x40xbf16>
    %3 = vector.shape_cast %2 : vector<1x4x8x40xbf16> to vector<4x8x40xbf16>
    %4 = vector.extract_strided_slice %3 {offsets = [0, 7, 0], sizes = [4, 1, 40], strides = [1, 1, 1]} : vector<4x8x40xbf16> to vector<4x1x40xbf16>
    %5 = vector.shape_cast %4 : vector<4x1x40xbf16> to vector<4x40xbf16>
    %6 = arith.select %1, %0, %5 : vector<4x40xbf16>
    %c0_i32_3 = arith.constant 0 : i32
    %7 = arith.cmpi eq, %arg1, %c0_i32_3 : i32
    %c0_4 = arith.constant 0 : index
    %c0_5 = arith.constant 0 : index
    %c0_6 = arith.constant 0 : index
    %c0_7 = arith.constant 0 : index
    %8 = vector.load %arg6[%c0_4, %c0_5, %c0_6, %c0_7] : memref<1x4x8x40xbf16, #tpu.memory_space<vmem>>, vector<1x4x8x40xbf16>
    %9 = vector.shape_cast %8 : vector<1x4x8x40xbf16> to vector<4x8x40xbf16>
    %10 = vector.extract_strided_slice %9 {offsets = [0, 0, 0], sizes = [4, 1, 40], strides = [1, 1, 1]} : vector<4x8x40xbf16> to vector<4x1x40xbf16>
    %11 = vector.shape_cast %10 : vector<4x1x40xbf16> to vector<4x40xbf16>
    %12 = arith.select %7, %0, %11 : vector<4x40xbf16>
    %c0_8 = arith.constant 0 : index
    %c0_9 = arith.constant 0 : index
    %13 = vector.load %arg9[%c0_8, %c0_9] : memref<4x1488xbf16, #tpu.memory_space<vmem>>, vector<4x40xbf16>
    tpu.vector_store %arg9[%c0_8, %c0_9], %6 {strides = array<i32>} : memref<4x1488xbf16, #tpu.memory_space<vmem>>, vector<4x40xbf16>,
    %c0_10 = arith.constant 0 : index
    %c0_11 = arith.constant 0 : index
    %c0_12 = arith.constant 0 : index
    %14 = vector.load %arg4[%c0_10, %c0_11, %c0_12] : memref<1x4x1280xbf16, #tpu.memory_space<vmem>>, vector<1x4x1280xbf16>
    %15 = vector.shape_cast %14 : vector<1x4x1280xbf16> to vector<4x1280xbf16>
    %c0_13 = arith.constant 0 : index
    %c40 = arith.constant 40 : index
    %16 = vector.load %arg9[%c0_13, %c40] : memref<4x1488xbf16, #tpu.memory_space<vmem>>, vector<4x1280xbf16>
    tpu.vector_store %arg9[%c0_13, %c40], %15 {strides = array<i32>} : memref<4x1488xbf16, #tpu.memory_space<vmem>>, vector<4x1280xbf16>,
    %c0_14 = arith.constant 0 : index
    %c1320 = arith.constant 1320 : index
    %17 = vector.load %arg9[%c0_14, %c1320] : memref<4x1488xbf16, #tpu.memory_space<vmem>>, vector<4x40xbf16>
    tpu.vector_store %arg9[%c0_14, %c1320], %12 {strides = array<i32>} : memref<4x1488xbf16, #tpu.memory_space<vmem>>, vector<4x40xbf16>,
    %cst_15 = arith.constant 0.000000e+00 : bf16
    %18 = vector.broadcast %cst_15 : bf16 to vector<4x128xbf16>
    %c0_16 = arith.constant 0 : index
    %c1360 = arith.constant 1360 : index
    %19 = vector.load %arg9[%c0_16, %c1360] : memref<4x1488xbf16, #tpu.memory_space<vmem>>, vector<4x128xbf16>
    tpu.vector_store %arg9[%c0_16, %c1360], %18 {strides = array<i32>} : memref<4x1488xbf16, #tpu.memory_space<vmem>>, vector<4x128xbf16>,
    %cst_17 = arith.constant 0.000000e+00 : f32
    %20 = vector.broadcast %cst_17 : f32 to vector<8x1280xf32>
    %c0_18 = arith.constant 0 : index
    %c0_19 = arith.constant 0 : index
    %c0_20 = arith.constant 0 : index
    %21 = vector.load %arg2[%c0_18, %c0_19, %c0_20] : memref<9x8x4xbf16, #tpu.memory_space<vmem>>, vector<1x8x4xbf16>
    %22 = vector.shape_cast %21 : vector<1x8x4xbf16> to vector<8x4xbf16>
    %c0_21 = arith.constant 0 : index
    %c0_22 = arith.constant 0 : index
    %23 = vector.load %arg9[%c0_21, %c0_22] : memref<4x1488xbf16, #tpu.memory_space<vmem>>, vector<4x1280xbf16>
    %cst_23 = arith.constant dense<0.000000e+00> : vector<8x1280xf32>
    %24 = tpu.matmul %22, %23, %cst_23 {dimension_numbers = #tpu.dot_dimension_numbers<[1], [0], [0], [1], [0, 0, 1, 1], [], []>} : vector<8x4xbf16>, vector<4x1280xbf16>, vector<8x1280xf32> -> vector<8x1280xf32>
    %25 = arith.addf %20, %24 : vector<8x1280xf32>
    %c1 = arith.constant 1 : index
    %c0_24 = arith.constant 0 : index
    %c0_25 = arith.constant 0 : index
    %26 = vector.load %arg2[%c1, %c0_24, %c0_25] : memref<9x8x4xbf16, #tpu.memory_space<vmem>>, vector<1x8x4xbf16>
    %27 = vector.shape_cast %26 : vector<1x8x4xbf16> to vector<8x4xbf16>
    %c0_26 = arith.constant 0 : index
    %c1_27 = arith.constant 1 : index
    %28 = vector.load %arg9[%c0_26, %c1_27] : memref<4x1488xbf16, #tpu.memory_space<vmem>>, vector<4x1280xbf16>
    %cst_28 = arith.constant dense<0.000000e+00> : vector<8x1280xf32>
    %29 = tpu.matmul %27, %28, %cst_28 {dimension_numbers = #tpu.dot_dimension_numbers<[1], [0], [0], [1], [0, 0, 1, 1], [], []>} : vector<8x4xbf16>, vector<4x1280xbf16>, vector<8x1280xf32> -> vector<8x1280xf32>
    %30 = arith.addf %25, %29 : vector<8x1280xf32>
    %c2 = arith.constant 2 : index
    %c0_29 = arith.constant 0 : index
    %c0_30 = arith.constant 0 : index
    %31 = vector.load %arg2[%c2, %c0_29, %c0_30] : memref<9x8x4xbf16, #tpu.memory_space<vmem>>, vector<1x8x4xbf16>
    %32 = vector.shape_cast %31 : vector<1x8x4xbf16> to vector<8x4xbf16>
    %c0_31 = arith.constant 0 : index
    %c2_32 = arith.constant 2 : index
    %33 = vector.load %arg9[%c0_31, %c2_32] : memref<4x1488xbf16, #tpu.memory_space<vmem>>, vector<4x1280xbf16>
    %cst_33 = arith.constant dense<0.000000e+00> : vector<8x1280xf32>
    %34 = tpu.matmul %32, %33, %cst_33 {dimension_numbers = #tpu.dot_dimension_numbers<[1], [0], [0], [1], [0, 0, 1, 1], [], []>} : vector<8x4xbf16>, vector<4x1280xbf16>, vector<8x1280xf32> -> vector<8x1280xf32>
    %35 = arith.addf %30, %34 : vector<8x1280xf32>
    %c3 = arith.constant 3 : index
    %c0_34 = arith.constant 0 : index
    %c0_35 = arith.constant 0 : index
    %36 = vector.load %arg2[%c3, %c0_34, %c0_35] : memref<9x8x4xbf16, #tpu.memory_space<vmem>>, vector<1x8x4xbf16>
    %37 = vector.shape_cast %36 : vector<1x8x4xbf16> to vector<8x4xbf16>
    %c0_36 = arith.constant 0 : index
    %c40_37 = arith.constant 40 : index
    %38 = vector.load %arg9[%c0_36, %c40_37] : memref<4x1488xbf16, #tpu.memory_space<vmem>>, vector<4x1280xbf16>
    %cst_38 = arith.constant dense<0.000000e+00> : vector<8x1280xf32>
    %39 = tpu.matmul %37, %38, %cst_38 {dimension_numbers = #tpu.dot_dimension_numbers<[1], [0], [0], [1], [0, 0, 1, 1], [], []>} : vector<8x4xbf16>, vector<4x1280xbf16>, vector<8x1280xf32> -> vector<8x1280xf32>
    %40 = arith.addf %35, %39 : vector<8x1280xf32>
    %c4 = arith.constant 4 : index
    %c0_39 = arith.constant 0 : index
    %c0_40 = arith.constant 0 : index
    %41 = vector.load %arg2[%c4, %c0_39, %c0_40] : memref<9x8x4xbf16, #tpu.memory_space<vmem>>, vector<1x8x4xbf16>
    %42 = vector.shape_cast %41 : vector<1x8x4xbf16> to vector<8x4xbf16>
    %c0_41 = arith.constant 0 : index
    %c41 = arith.constant 41 : index
    %43 = vector.load %arg9[%c0_41, %c41] : memref<4x1488xbf16, #tpu.memory_space<vmem>>, vector<4x1280xbf16>
    %cst_42 = arith.constant dense<0.000000e+00> : vector<8x1280xf32>
    %44 = tpu.matmul %42, %43, %cst_42 {dimension_numbers = #tpu.dot_dimension_numbers<[1], [0], [0], [1], [0, 0, 1, 1], [], []>} : vector<8x4xbf16>, vector<4x1280xbf16>, vector<8x1280xf32> -> vector<8x1280xf32>
    %45 = arith.addf %40, %44 : vector<8x1280xf32>
    %c5 = arith.constant 5 : index
    %c0_43 = arith.constant 0 : index
    %c0_44 = arith.constant 0 : index
    %46 = vector.load %arg2[%c5, %c0_43, %c0_44] : memref<9x8x4xbf16, #tpu.memory_space<vmem>>, vector<1x8x4xbf16>
    %47 = vector.shape_cast %46 : vector<1x8x4xbf16> to vector<8x4xbf16>
    %c0_45 = arith.constant 0 : index
    %c42 = arith.constant 42 : index
    %48 = vector.load %arg9[%c0_45, %c42] : memref<4x1488xbf16, #tpu.memory_space<vmem>>, vector<4x1280xbf16>
    %cst_46 = arith.constant dense<0.000000e+00> : vector<8x1280xf32>
    %49 = tpu.matmul %47, %48, %cst_46 {dimension_numbers = #tpu.dot_dimension_numbers<[1], [0], [0], [1], [0, 0, 1, 1], [], []>} : vector<8x4xbf16>, vector<4x1280xbf16>, vector<8x1280xf32> -> vector<8x1280xf32>
    %50 = arith.addf %45, %49 : vector<8x1280xf32>
    %c6 = arith.constant 6 : index
    %c0_47 = arith.constant 0 : index
    %c0_48 = arith.constant 0 : index
    %51 = vector.load %arg2[%c6, %c0_47, %c0_48] : memref<9x8x4xbf16, #tpu.memory_space<vmem>>, vector<1x8x4xbf16>
    %52 = vector.shape_cast %51 : vector<1x8x4xbf16> to vector<8x4xbf16>
    %c0_49 = arith.constant 0 : index
    %c80 = arith.constant 80 : index
    %53 = vector.load %arg9[%c0_49, %c80] : memref<4x1488xbf16, #tpu.memory_space<vmem>>, vector<4x1280xbf16>
    %cst_50 = arith.constant dense<0.000000e+00> : vector<8x1280xf32>
    %54 = tpu.matmul %52, %53, %cst_50 {dimension_numbers = #tpu.dot_dimension_numbers<[1], [0], [0], [1], [0, 0, 1, 1], [], []>} : vector<8x4xbf16>, vector<4x1280xbf16>, vector<8x1280xf32> -> vector<8x1280xf32>
    %55 = arith.addf %50, %54 : vector<8x1280xf32>
    %c7 = arith.constant 7 : index
    %c0_51 = arith.constant 0 : index
    %c0_52 = arith.constant 0 : index
    %56 = vector.load %arg2[%c7, %c0_51, %c0_52] : memref<9x8x4xbf16, #tpu.memory_space<vmem>>, vector<1x8x4xbf16>
    %57 = vector.shape_cast %56 : vector<1x8x4xbf16> to vector<8x4xbf16>
    %c0_53 = arith.constant 0 : index
    %c81 = arith.constant 81 : index
    %58 = vector.load %arg9[%c0_53, %c81] : memref<4x1488xbf16, #tpu.memory_space<vmem>>, vector<4x1280xbf16>
    %cst_54 = arith.constant dense<0.000000e+00> : vector<8x1280xf32>
    %59 = tpu.matmul %57, %58, %cst_54 {dimension_numbers = #tpu.dot_dimension_numbers<[1], [0], [0], [1], [0, 0, 1, 1], [], []>} : vector<8x4xbf16>, vector<4x1280xbf16>, vector<8x1280xf32> -> vector<8x1280xf32>
    %60 = arith.addf %55, %59 : vector<8x1280xf32>
    %c8 = arith.constant 8 : index
    %c0_55 = arith.constant 0 : index
    %c0_56 = arith.constant 0 : index
    %61 = vector.load %arg2[%c8, %c0_55, %c0_56] : memref<9x8x4xbf16, #tpu.memory_space<vmem>>, vector<1x8x4xbf16>
    %62 = vector.shape_cast %61 : vector<1x8x4xbf16> to vector<8x4xbf16>
    %c0_57 = arith.constant 0 : index
    %c82 = arith.constant 82 : index
    %63 = vector.load %arg9[%c0_57, %c82] : memref<4x1488xbf16, #tpu.memory_space<vmem>>, vector<4x1280xbf16>
    %cst_58 = arith.constant dense<0.000000e+00> : vector<8x1280xf32>
    %64 = tpu.matmul %62, %63, %cst_58 {dimension_numbers = #tpu.dot_dimension_numbers<[1], [0], [0], [1], [0, 0, 1, 1], [], []>} : vector<8x4xbf16>, vector<4x1280xbf16>, vector<8x1280xf32> -> vector<8x1280xf32>
    %65 = arith.addf %60, %64 : vector<8x1280xf32>
    %c0_59 = arith.constant 0 : index
    %c0_60 = arith.constant 0 : index
    %c0_61 = arith.constant 0 : index
    %66 = vector.load %arg7[%c0_59, %c0_60, %c0_61] : memref<1x8x1280xf32, #tpu.memory_space<vmem>>, vector<1x8x1280xf32>
    %67 = vector.shape_cast %66 : vector<1x8x1280xf32> to vector<8x1280xf32>
    %68 = vector.shape_cast %65 : vector<8x1280xf32> to vector<1x8x1280xf32>
    tpu.vector_store %arg7[%c0_59, %c0_60, %c0_61], %68 {strides = array<i32>} : memref<1x8x1280xf32, #tpu.memory_space<vmem>>, vector<1x8x1280xf32>,
    %c0_62 = arith.constant 0 : index
    %c0_63 = arith.constant 0 : index
    %69 = vector.load %arg3[%c0_62, %c0_63] : memref<1x1280xf32, #tpu.memory_space<vmem>>, vector<1x1280xf32>
    %70 = vector.broadcast %69 : vector<1x1280xf32> to vector<8x1280xf32>
    %71 = arith.mulf %65, %70 : vector<8x1280xf32>
    %cst_64 = arith.constant dense<0.000000e+00> : vector<8xf32>
    %72 = vector.multi_reduction <add>, %71, %cst_64 [1] : vector<8x1280xf32> to vector<8xf32>
    %73 = vector.shape_cast %72 : vector<8xf32> to vector<8x1xf32>
    %74 = arith.mulf %71, %71 : vector<8x1280xf32>
    %cst_65 = arith.constant dense<0.000000e+00> : vector<8xf32>
    %75 = vector.multi_reduction <add>, %74, %cst_65 [1] : vector<8x1280xf32> to vector<8xf32>
    %76 = vector.shape_cast %75 : vector<8xf32> to vector<8x1xf32>
    %77 = tpu.concatenate %73, %76 in 1 : vector<8x1xf32>, vector<8x1xf32> -> vector<8x2xf32>
    %c0_66 = arith.constant 0 : index
    %c0_67 = arith.constant 0 : index
    %c0_68 = arith.constant 0 : index
    %c0_69 = arith.constant 0 : index
    %78 = vector.load %arg8[%c0_66, %c0_67, %c0_68, %c0_69] : memref<1x1x8x2xf32, #tpu.memory_space<vmem>>, vector<1x1x8x2xf32>
    %79 = vector.shape_cast %78 : vector<1x1x8x2xf32> to vector<8x2xf32>
    %80 = vector.shape_cast %77 : vector<8x2xf32> to vector<1x1x8x2xf32>
    tpu.vector_store %arg8[%c0_66, %c0_67, %c0_68, %c0_69], %80 {strides = array<i32>} : memref<1x1x8x2xf32, #tpu.memory_space<vmem>>, vector<1x1x8x2xf32>,
    return
  }
  func.func @transform_0(%arg0: i32, %arg1: i32) -> (i32, i32, i32) {
    %c0_i32 = arith.constant 0 : i32
    %c0_i32_0 = arith.constant 0 : i32
    %c0_i32_1 = arith.constant 0 : i32
    %c0_i32_2 = arith.constant 0 : i32
    return %c0_i32, %c0_i32_0, %c0_i32_1 : i32, i32, i32
  }
  func.func @transform_1(%arg0: i32, %arg1: i32) -> (i32, i32) {
    %c0_i32 = arith.constant 0 : i32
    %c0_i32_0 = arith.constant 0 : i32
    %c0_i32_1 = arith.constant 0 : i32
    return %c0_i32, %c0_i32_0 : i32, i32
  }
  func.func @transform_2(%arg0: i32, %arg1: i32) -> (i32, i32, i32) {
    %c0_i32 = arith.constant 0 : i32
    %c0_i32_0 = arith.constant 0 : i32
    return %arg0, %c0_i32, %arg1 : i32, i32, i32
  }
  func.func @transform_3(%arg0: i32, %arg1: i32) -> (i32, i32, i32, i32) {
    %c4_i32 = arith.constant 4 : i32
    %0 = arith.muli %arg1, %c4_i32 : i32
    %c1_i32 = arith.constant 1 : i32
    %1 = arith.subi %0, %c1_i32 : i32
    %c0_i32 = arith.constant 0 : i32
    %2 = arith.maxsi %1, %c0_i32 : i32
    %c0_i32_0 = arith.constant 0 : i32
    %c0_i32_1 = arith.constant 0 : i32
    %c0_i32_2 = arith.constant 0 : i32
    return %arg0, %c0_i32_0, %2, %c0_i32_1 : i32, i32, i32, i32
  }
  func.func @transform_4(%arg0: i32, %arg1: i32) -> (i32, i32, i32, i32) {
    %c1_i32 = arith.constant 1 : i32
    %0 = arith.addi %arg1, %c1_i32 : i32
    %c4_i32 = arith.constant 4 : i32
    %1 = arith.muli %0, %c4_i32 : i32
    %c3_i32 = arith.constant 3 : i32
    %2 = arith.minsi %1, %c3_i32 : i32
    %c0_i32 = arith.constant 0 : i32
    %c0_i32_0 = arith.constant 0 : i32
    %c0_i32_1 = arith.constant 0 : i32
    return %arg0, %c0_i32, %2, %c0_i32_0 : i32, i32, i32, i32
  }
  func.func @transform_5(%arg0: i32, %arg1: i32) -> (i32, i32, i32) {
    %c0_i32 = arith.constant 0 : i32
    %c0_i32_0 = arith.constant 0 : i32
    return %arg0, %c0_i32, %arg1 : i32, i32, i32
  }
  func.func @transform_6(%arg0: i32, %arg1: i32) -> (i32, i32, i32, i32) {
    %c0_i32 = arith.constant 0 : i32
    %c0_i32_0 = arith.constant 0 : i32
    %c0_i32_1 = arith.constant 0 : i32
    return %arg0, %arg1, %c0_i32, %c0_i32_0 : i32, i32, i32, i32
  }
}

</mosaic_0001>

<llo_original>
// kernel: up_conv_forward.5
$region0: #{up_conv_forward.5}
  #allocation0 [shape = 'u32[]', space=smem, size = 0x4, offset = 0x4, fixed_abs, tag = 'smem constant byte address 0x4 - core index']
  #allocation1 [shape = 'u32[144,128]{1,0:T(1,128)}', space=vmem, size = 0x12000, scoped, tag = 'internal scratch']
  %s0 = inlined_call_operand.vmem [shape: f32[8,32], index: 0, kind: input, shape index: {}]
  %s1 = inlined_call_operand.vmem [shape: f32[8,32], index: 1, kind: input, shape index: {}]
  %s2 = inlined_call_operand.vmem [shape: f32[2,8,32,40], index: 2, kind: input, shape index: {}]
  %s3 = inlined_call_operand.hbm [shape: f32[2,8,32,32], index: 3, kind: output, shape index: {}]
  %s4 = sld [smem:[#allocation0]]
  $region45: #{up_conv_forward.5} parent=0
    _
  %s6 = ssub.s32 1, %s4
  %s7 = scalar_select 0, %s6, %s4
  $region1: #{up_conv_forward.5} parent=0
    #allocation2 [shape = 'u8[262144]{0}', space=vmem, size = 0x40000, scoped, tag = 'output window, operand 0']
    #allocation3 [shape = 's32[2]{0}', space=sflag, size = 0x8, scoped, tag = 'scoped memory for up_conv_forward.5']
    %8 = vsyncpa [#allocation3], 0
    %s9 = scalar_lea.sflag [#allocation3], 1
    %10 = vsyncpa %s9, 0
    loop: start=0, step=1, limit=4
    $region2: #{up_conv_forward.5} parent=1 // loop_pre_header
      _
    $region3: #{up_conv_forward.5} parent=1 // loop_header
      %s12 = sphi 0, %s16
      %p13 = scmp.ge.s32.totalorder %s12, 4
      %s19 = sphi 0, %s31
      %s20 = sphi 0, %s27
      %s21 = sphi 0, %s19
      %s22 = sphi 0, %s20
      %s23 = sphi 0, %s21
      %s24 = sphi 0, %s22
      %s32 = sphi 0, %s32
      %s34 = sphi 0, %s32
      %s35 = sphi 0, %s34
      %s49 = sphi 0, %s35
      %s53 = sphi 0, %s53
      %s55 = sphi 0, %s53
      %s56 = sphi 0, %s55
      %s70 = sphi 0, %s56
      %s78 = sphi 0, %s80
      %s81 = sphi 0, %s78
      %s82 = sphi 0, %s81
      %s98 = sphi 0, %s82
      %s106 = sphi 0, %s108
      %s109 = sphi 0, %s106
      %s110 = sphi 0, %s109
      %s126 = sphi 0, %s110
    $region4: #{up_conv_forward.5} parent=1 // loop_header_branch
      %15 = sbr.rel (%p13) target = $region8
    $region5: #{up_conv_forward.5} parent=1 // loop_body
      %s17 = ssub.s32 %s12, 1
      %s18 = ssub.s32 %s12, 2
      %s25 = sadd.s32 1, %s20
      %p26 = scmp.ge.s32.totalorder %s25, 1
      %s27 = scalar_select %p26, 0, %s25
      %s28 = sadd.s32 1, %s19
      %s29 = scalar_select %p26, %s28, %s19
      %p30 = scmp.ge.s32.totalorder %s29, 2
      %s31 = scalar_select %p30, 0, %s29
      %s33 = sadd.s32 %s32, 1
      %p36 = scmp.eq.s32.totalorder %s12, 1
      %p37 = scmp.ne.s32.totalorder %s32, %s34
      %p38 = scmp.eq.s32.totalorder %s12, 0
      %p39 = por %p37, %p38
      %p40 = scmp.ne.s32.totalorder %s32, %s34
      %p41 = scmp.eq.s32.totalorder %s17, 1
      %p42 = por %p40, %p41
      %p43 = scmp.ne.s32.totalorder %s34, %s35
      %p44 = scmp.eq.s32.totalorder %s17, 0
      %p45 = por %p43, %p44
      %p46 = scmp.ne.s32.totalorder %s34, %s35
      %p47 = scmp.eq.s32.totalorder %s18, 1
      %p48 = por %p46, %p47
      %p50 = scmp.ne.s32.totalorder %s35, %s49
      %p51 = scmp.eq.s32.totalorder %s18, 0
      %p52 = por %p50, %p51
      %s54 = sadd.s32 %s53, 1
      %p57 = scmp.eq.s32.totalorder %s12, 1
      %p58 = scmp.ne.s32.totalorder %s53, %s55
      %p59 = scmp.eq.s32.totalorder %s12, 0
      %p60 = por %p58, %p59
      %p61 = scmp.ne.s32.totalorder %s53, %s55
      %p62 = scmp.eq.s32.totalorder %s17, 1
      %p63 = por %p61, %p62
      %p64 = scmp.ne.s32.totalorder %s55, %s56
      %p65 = scmp.eq.s32.totalorder %s17, 0
      %p66 = por %p64, %p65
      %p67 = scmp.ne.s32.totalorder %s55, %s56
      %p68 = scmp.eq.s32.totalorder %s18, 1
      %p69 = por %p67, %p68
      %p71 = scmp.ne.s32.totalorder %s56, %s70
      %p72 = scmp.eq.s32.totalorder %s18, 0
      %p73 = por %p71, %p72
      %s74 = ssub.s32 %s19, %s31
      %s75 = ssub.s32 %s20, %s27
      %s76 = sor.u32 %s74, %s75
      %p77 = scmp.eq.s32.totalorder %s76, 0
      %s79 = sadd.s32 %s78, 1
      %s80 = scalar_select %p77, %s78, %s79
      %p83 = pneg %p77
      %p84 = scmp.eq.s32.totalorder %s12, 1
      %p85 = por %p83, %p84
      %p86 = scmp.ne.s32.totalorder %s78, %s81
      %p87 = scmp.eq.s32.totalorder %s12, 0
      %p88 = por %p86, %p87
      %p89 = scmp.ne.s32.totalorder %s78, %s81
      %p90 = scmp.eq.s32.totalorder %s17, 1
      %p91 = por %p89, %p90
      %p92 = scmp.ne.s32.totalorder %s81, %s82
      %p93 = scmp.eq.s32.totalorder %s17, 0
      %p94 = por %p92, %p93
      %p95 = scmp.ne.s32.totalorder %s81, %s82
      %p96 = scmp.eq.s32.totalorder %s18, 1
      %p97 = por %p95, %p96
      %p99 = scmp.ne.s32.totalorder %s82, %s98
      %p100 = scmp.eq.s32.totalorder %s18, 0
      %p101 = por %p99, %p100
      %s102 = ssub.s32 %s19, %s31
      %s103 = ssub.s32 %s20, %s27
      %s104 = sor.u32 %s102, %s103
      %p105 = scmp.eq.s32.totalorder %s104, 0
      %s107 = sadd.s32 %s106, 1
      %s108 = scalar_select %p105, %s106, %s107
      %p111 = pneg %p105
      %p112 = scmp.eq.s32.totalorder %s12, 1
      %p113 = por %p111, %p112
      %p114 = scmp.ne.s32.totalorder %s106, %s109
      %p115 = scmp.eq.s32.totalorder %s12, 0
      %p116 = por %p114, %p115
      %p117 = scmp.ne.s32.totalorder %s106, %s109
      %p118 = scmp.eq.s32.totalorder %s17, 1
      %p119 = por %p117, %p118
      %p120 = scmp.ne.s32.totalorder %s109, %s110
      %p121 = scmp.eq.s32.totalorder %s17, 0
      %p122 = por %p120, %p121
      %p123 = scmp.ne.s32.totalorder %s109, %s110
      %p124 = scmp.eq.s32.totalorder %s18, 1
      %p125 = por %p123, %p124
      %p127 = scmp.ne.s32.totalorder %s110, %s126
      %p128 = scmp.eq.s32.totalorder %s18, 0
      %p129 = por %p127, %p128
      %p130 = scmp.le.s32.totalorder 1, %s12
      %p131 = scmp.lt.s32.totalorder %s12, 3
      %p132 = pnand %p130, %p131
      %p133 = pneg %p132
      // Predicated region
      $region9: #{up_conv_forward.5} parent=5 // pred_check
        _
      $region10: #{up_conv_forward.5} parent=5 // pred_check_branch
        %135 = sbr.rel (%p132) target = $region12
      $region11: #{up_conv_forward.5} parent=5 // pred_region
        %s136 = ssub.s32 %s12, 1
        // Predicated region
        $region13: #{up_conv_forward.5} parent=11 // pred_check
          %p137 = pneg %p45
        $region14: #{up_conv_forward.5} parent=11 // pred_check_branch
          %139 = sbr.rel (%p137) target = $region16
        $region15: #{up_conv_forward.5} parent=11 // pred_region
          _
        $region16: #{up_conv_forward.5} parent=11 // pred_fallthru
          _
        // Predicated region
        $region17: #{up_conv_forward.5} parent=11 // pred_check
          %p140 = pneg %p66
        $region18: #{up_conv_forward.5} parent=11 // pred_check_branch
          %142 = sbr.rel (%p140) target = $region20
        $region19: #{up_conv_forward.5} parent=11 // pred_region
          _
        $region20: #{up_conv_forward.5} parent=11 // pred_fallthru
          _
      $region12: #{up_conv_forward.5} parent=5 // pred_fallthru
        _
      %p143 = scmp.lt.s32.totalorder %s12, 2
      // Predicated region
      $region21: #{up_conv_forward.5} parent=5 // pred_check
        %p144 = pneg %p143
      $region22: #{up_conv_forward.5} parent=5 // pred_check_branch
        %146 = sbr.rel (%p144) target = $region24
      $region23: #{up_conv_forward.5} parent=5 // pred_region
        // Predicated region
        $region25: #{up_conv_forward.5} parent=23 // pred_check
          %p147 = pneg %p88
        $region26: #{up_conv_forward.5} parent=23 // pred_check_branch
          %149 = sbr.rel (%p147) target = $region28
        $region27: #{up_conv_forward.5} parent=23 // pred_region
          %s150 = smul.u32 4, %s20
          %p151 = scmp.lt.s32.totalorder %s19, 1
          %s152 = scalar_select %p151, %s19, 1
          %p153 = scmp.lt.s32.totalorder %s150, 3
          %s154 = scalar_select %p153, %s150, 3
          %s155 = smul.addr %s152, 32
          %s156 = sadd.s32 %s154, %s155
          %s157 = smul.addr %s156, 8
          %s158 = scalar_lea.vmem %s2, %s157
          %s159 = smul.u32 4, %s20
        $region28: #{up_conv_forward.5} parent=23 // pred_fallthru
          _
      $region24: #{up_conv_forward.5} parent=5 // pred_fallthru
        _
      %p160 = scmp.le.s32.totalorder 1, %s12
      %p161 = scmp.lt.s32.totalorder %s12, 3
      %p162 = pnand %p160, %p161
      %p163 = pneg %p162
      // Predicated region
      $region29: #{up_conv_forward.5} parent=5 // pred_check
        _
      $region30: #{up_conv_forward.5} parent=5 // pred_check_branch
        %165 = sbr.rel (%p162) target = $region32
      $region31: #{up_conv_forward.5} parent=5 // pred_region
        %s166 = ssub.s32 %s12, 1
        %p167 = pneg %p45
        %p168 = pneg %p42
        %p169 = pneg %p66
        %p170 = pneg %p63
        %s171 = smul.u32 4, %s22
        %p172 = scmp.lt.s32.totalorder %s21, 1
        %s173 = scalar_select %p172, %s21, 1
        %p174 = scmp.lt.s32.totalorder %s171, 3
        %s175 = scalar_select %p174, %s171, 3
        %s176 = smul.addr %s173, 32
        %s177 = sadd.s32 %s175, %s176
        %s178 = smul.addr %s177, 8
        %s179 = scalar_lea.vmem %s2, %s178
        %p180 = pneg %p94
        %p181 = pneg %p91
        %p182 = pneg %p122
        %p183 = pneg %p119
        %s184 = sand.u32 %s109, 1
        %s185 = scalar_lea.sflag [#allocation3], %s184
        %s186 = sand.u32 %s109, 1
        %s187 = smul.addr %s186, 256
        %s188 = scalar_lea.vmem [#allocation2], %s187
        %s189 = smul.u32 4, %s22
        %p190 = scmp.lt.s32.totalorder %s21, 1
        %s191 = scalar_select %p190, %s21, 1
        %p192 = scmp.lt.s32.totalorder %s189, 3
        %s193 = scalar_select %p192, %s189, 3
        %s194 = smul.addr %s191, 32
        %s195 = sadd.s32 %s193, %s194
        %s196 = smul.addr %s195, 8
        %s197 = scalar_lea.vmem %s2, %s196
        %s198 = smul.u32 4, %s22
        %s199 = smul.u32 4, %s22
        %v200 = vld [vmem:[%s197] sm:$0xff]
        %v201 = vld [vmem:[%s197 + $0x8] sm:$0xff]
        %v202 = vld [vmem:[%s197 + $0x10] sm:$0xff]
        %v203 = vld [vmem:[%s197 + $0x18] sm:$0xff]
        %v204 = vld [vmem:[%s0] sm:$0x1]
        %v205 = vlaneseq
        %v206 = vshrl.u32 %v205, 7
        %v207 = vsub.s32 0, %v206
        %v208 = vrot.slane %v204, %v207
        %v209 = vmul.f32 %v200, %v208
        %v210 = vmul.f32 %v201, %v208
        %v211 = vmul.f32 %v202, %v208
        %v212 = vmul.f32 %v203, %v208
        %v213 = vld [vmem:[%s1] sm:$0x1]
        %v214 = vlaneseq
        %v215 = vshrl.u32 %v214, 7
        %v216 = vsub.s32 0, %v215
        %v217 = vrot.slane %v213, %v216
        %v218 = vadd.f32 %v209, %v217
        %v219 = vadd.f32 %v210, %v217
        %v220 = vadd.f32 %v211, %v217
        %v221 = vadd.f32 %v212, %v217
        %v222 = vmax.f32 %v218, 0.0
        %v223 = vmax.f32 %v219, 0.0
        %v224 = vmax.f32 %v220, 0.0
        %v225 = vmax.f32 %v221, 0.0
        %vm226 = vcmask 261120
        %227 = vst.msk [vmem:[%s188] sm:$0xff] %vm226, %v222
        %228 = vst.msk [vmem:[%s188 + $0x8] sm:$0xff] %vm226, %v223
        %229 = vst.msk [vmem:[%s188 + $0x10] sm:$0xff] %vm226, %v224
        %230 = vst.msk [vmem:[%s188 + $0x18] sm:$0xff] %vm226, %v225
        %s231 = scalar_lea.vmem %s197, 32
        %v232 = vld [vmem:[%s231] sm:$0xff]
        %v233 = vld [vmem:[%s231 + $0x8] sm:$0xff]
        %v234 = vld [vmem:[%s231 + $0x10] sm:$0xff]
        %v235 = vld [vmem:[%s231 + $0x18] sm:$0xff]
        %v236 = vld [vmem:[%s0 + $0x1] sm:$0x1]
        %v237 = vlaneseq
        %v238 = vshrl.u32 %v237, 7
        %v239 = vsub.s32 0, %v238
        %v240 = vrot.slane %v236, %v239
        %v241 = vmul.f32 %v232, %v240
        %v242 = vmul.f32 %v233, %v240
        %v243 = vmul.f32 %v234, %v240
        %v244 = vmul.f32 %v235, %v240
        %v245 = vld [vmem:[%s1 + $0x1] sm:$0x1]
        %v246 = vlaneseq
        %v247 = vshrl.u32 %v246, 7
        %v248 = vsub.s32 0, %v247
        %v249 = vrot.slane %v245, %v248
        %v250 = vadd.f32 %v241, %v249
        %v251 = vadd.f32 %v242, %v249
        %v252 = vadd.f32 %v243, %v249
        %v253 = vadd.f32 %v244, %v249
        %v254 = vmax.f32 %v250, 0.0
        %v255 = vmax.f32 %v251, 0.0
        %v256 = vmax.f32 %v252, 0.0
        %v257 = vmax.f32 %v253, 0.0
        %s258 = scalar_lea.vmem %s188, 32 [#allocation2]
        %259 = vst.msk [vmem:[%s258] sm:$0xff] %vm226, %v254
        %260 = vst.msk [vmem:[%s258 + $0x8] sm:$0xff] %vm226, %v255
        %261 = vst.msk [vmem:[%s258 + $0x10] sm:$0xff] %vm226, %v256
        %262 = vst.msk [vmem:[%s258 + $0x18] sm:$0xff] %vm226, %v257
        %s263 = scalar_lea.vmem %s197, 64
        %v264 = vld [vmem:[%s263] sm:$0xff]
        %v265 = vld [vmem:[%s263 + $0x8] sm:$0xff]
        %v266 = vld [vmem:[%s263 + $0x10] sm:$0xff]
        %v267 = vld [vmem:[%s263 + $0x18] sm:$0xff]
        %v268 = vld [vmem:[%s0 + $0x2] sm:$0x1]
        %v269 = vlaneseq
        %v270 = vshrl.u32 %v269, 7
        %v271 = vsub.s32 0, %v270
        %v272 = vrot.slane %v268, %v271
        %v273 = vmul.f32 %v264, %v272
        %v274 = vmul.f32 %v265, %v272
        %v275 = vmul.f32 %v266, %v272
        %v276 = vmul.f32 %v267, %v272
        %v277 = vld [vmem:[%s1 + $0x2] sm:$0x1]
        %v278 = vlaneseq
        %v279 = vshrl.u32 %v278, 7
        %v280 = vsub.s32 0, %v279
        %v281 = vrot.slane %v277, %v280
        %v282 = vadd.f32 %v273, %v281
        %v283 = vadd.f32 %v274, %v281
        %v284 = vadd.f32 %v275, %v281
        %v285 = vadd.f32 %v276, %v281
        %v286 = vmax.f32 %v282, 0.0
        %v287 = vmax.f32 %v283, 0.0
        %v288 = vmax.f32 %v284, 0.0
        %v289 = vmax.f32 %v285, 0.0
        %s290 = scalar_lea.vmem %s188, 64 [#allocation2]
        %291 = vst.msk [vmem:[%s290] sm:$0xff] %vm226, %v286
        %292 = vst.msk [vmem:[%s290 + $0x8] sm:$0xff] %vm226, %v287
        %293 = vst.msk [vmem:[%s290 + $0x10] sm:$0xff] %vm226, %v288
        %294 = vst.msk [vmem:[%s290 + $0x18] sm:$0xff] %vm226, %v289
        %s295 = scalar_lea.vmem %s197, 96
        %v296 = vld [vmem:[%s295] sm:$0xff]
        %v297 = vld [vmem:[%s295 + $0x8] sm:$0xff]
        %v298 = vld [vmem:[%s295 + $0x10] sm:$0xff]
        %v299 = vld [vmem:[%s295 + $0x18] sm:$0xff]
        %v300 = vld [vmem:[%s0 + $0x3] sm:$0x1]
        %v301 = vlaneseq
        %v302 = vshrl.u32 %v301, 7
        %v303 = vsub.s32 0, %v302
        %v304 = vrot.slane %v300, %v303
        %v305 = vmul.f32 %v296, %v304
        %v306 = vmul.f32 %v297, %v304
        %v307 = vmul.f32 %v298, %v304
        %v308 = vmul.f32 %v299, %v304
        %v309 = vld [vmem:[%s1 + $0x3] sm:$0x1]
        %v310 = vlaneseq
        %v311 = vshrl.u32 %v310, 7
        %v312 = vsub.s32 0, %v311
        %v313 = vrot.slane %v309, %v312
        %v314 = vadd.f32 %v305, %v313
        %v315 = vadd.f32 %v306, %v313
        %v316 = vadd.f32 %v307, %v313
        %v317 = vadd.f32 %v308, %v313
        %v318 = vmax.f32 %v314, 0.0
        %v319 = vmax.f32 %v315, 0.0
        %v320 = vmax.f32 %v316, 0.0
        %v321 = vmax.f32 %v317, 0.0
        %s322 = scalar_lea.vmem %s188, 96 [#allocation2]
        %323 = vst.msk [vmem:[%s322] sm:$0xff] %vm226, %v318
        %324 = vst.msk [vmem:[%s322 + $0x8] sm:$0xff] %vm226, %v319
        %325 = vst.msk [vmem:[%s322 + $0x10] sm:$0xff] %vm226, %v320
        %326 = vst.msk [vmem:[%s322 + $0x18] sm:$0xff] %vm226, %v321
        %s327 = scalar_lea.vmem %s197, 128
        %v328 = vld [vmem:[%s327] sm:$0xff]
        %v329 = vld [vmem:[%s327 + $0x8] sm:$0xff]
        %v330 = vld [vmem:[%s327 + $0x10] sm:$0xff]
        %v331 = vld [vmem:[%s327 + $0x18] sm:$0xff]
        %v332 = vld [vmem:[%s0 + $0x4] sm:$0x1]
        %v333 = vlaneseq
        %v334 = vshrl.u32 %v333, 7
        %v335 = vsub.s32 0, %v334
        %v336 = vrot.slane %v332, %v335
        %v337 = vmul.f32 %v328, %v336
        %v338 = vmul.f32 %v329, %v336
        %v339 = vmul.f32 %v330, %v336
        %v340 = vmul.f32 %v331, %v336
        %v341 = vld [vmem:[%s1 + $0x4] sm:$0x1]
        %v342 = vlaneseq
        %v343 = vshrl.u32 %v342, 7
        %v344 = vsub.s32 0, %v343
        %v345 = vrot.slane %v341, %v344
        %v346 = vadd.f32 %v337, %v345
        %v347 = vadd.f32 %v338, %v345
        %v348 = vadd.f32 %v339, %v345
        %v349 = vadd.f32 %v340, %v345
        %v350 = vmax.f32 %v346, 0.0
        %v351 = vmax.f32 %v347, 0.0
        %v352 = vmax.f32 %v348, 0.0
        %v353 = vmax.f32 %v349, 0.0
        %s354 = scalar_lea.vmem %s188, 128 [#allocation2]
        %355 = vst.msk [vmem:[%s354] sm:$0xff] %vm226, %v350
        %356 = vst.msk [vmem:[%s354 + $0x8] sm:$0xff] %vm226, %v351
        %357 = vst.msk [vmem:[%s354 + $0x10] sm:$0xff] %vm226, %v352
        %358 = vst.msk [vmem:[%s354 + $0x18] sm:$0xff] %vm226, %v353
        %s359 = scalar_lea.vmem %s197, 160
        %v360 = vld [vmem:[%s359] sm:$0xff]
        %v361 = vld [vmem:[%s359 + $0x8] sm:$0xff]
        %v362 = vld [vmem:[%s359 + $0x10] sm:$0xff]
        %v363 = vld [vmem:[%s359 + $0x18] sm:$0xff]
        %v364 = vld [vmem:[%s0 + $0x5] sm:$0x1]
        %v365 = vlaneseq
        %v366 = vshrl.u32 %v365, 7
        %v367 = vsub.s32 0, %v366
        %v368 = vrot.slane %v364, %v367
        %v369 = vmul.f32 %v360, %v368
        %v370 = vmul.f32 %v361, %v368
        %v371 = vmul.f32 %v362, %v368
        %v372 = vmul.f32 %v363, %v368
        %v373 = vld [vmem:[%s1 + $0x5] sm:$0x1]
        %v374 = vlaneseq
        %v375 = vshrl.u32 %v374, 7
        %v376 = vsub.s32 0, %v375
        %v377 = vrot.slane %v373, %v376
        %v378 = vadd.f32 %v369, %v377
        %v379 = vadd.f32 %v370, %v377
        %v380 = vadd.f32 %v371, %v377
        %v381 = vadd.f32 %v372, %v377
        %v382 = vmax.f32 %v378, 0.0
        %v383 = vmax.f32 %v379, 0.0
        %v384 = vmax.f32 %v380, 0.0
        %v385 = vmax.f32 %v381, 0.0
        %s386 = scalar_lea.vmem %s188, 160 [#allocation2]
        %387 = vst.msk [vmem:[%s386] sm:$0xff] %vm226, %v382
        %388 = vst.msk [vmem:[%s386 + $0x8] sm:$0xff] %vm226, %v383
        %389 = vst.msk [vmem:[%s386 + $0x10] sm:$0xff] %vm226, %v384
        %390 = vst.msk [vmem:[%s386 + $0x18] sm:$0xff] %vm226, %v385
        %s391 = scalar_lea.vmem %s197, 192
        %v392 = vld [vmem:[%s391] sm:$0xff]
        %v393 = vld [vmem:[%s391 + $0x8] sm:$0xff]
        %v394 = vld [vmem:[%s391 + $0x10] sm:$0xff]
        %v395 = vld [vmem:[%s391 + $0x18] sm:$0xff]
        %v396 = vld [vmem:[%s0 + $0x6] sm:$0x1]
        %v397 = vlaneseq
        %v398 = vshrl.u32 %v397, 7
        %v399 = vsub.s32 0, %v398
        %v400 = vrot.slane %v396, %v399
        %v401 = vmul.f32 %v392, %v400
        %v402 = vmul.f32 %v393, %v400
        %v403 = vmul.f32 %v394, %v400
        %v404 = vmul.f32 %v395, %v400
        %v405 = vld [vmem:[%s1 + $0x6] sm:$0x1]
        %v406 = vlaneseq
        %v407 = vshrl.u32 %v406, 7
        %v408 = vsub.s32 0, %v407
        %v409 = vrot.slane %v405, %v408
        %v410 = vadd.f32 %v401, %v409
        %v411 = vadd.f32 %v402, %v409
        %v412 = vadd.f32 %v403, %v409
        %v413 = vadd.f32 %v404, %v409
        %v414 = vmax.f32 %v410, 0.0
        %v415 = vmax.f32 %v411, 0.0
        %v416 = vmax.f32 %v412, 0.0
        %v417 = vmax.f32 %v413, 0.0
        %s418 = scalar_lea.vmem %s188, 192 [#allocation2]
        %419 = vst.msk [vmem:[%s418] sm:$0xff] %vm226, %v414
        %420 = vst.msk [vmem:[%s418 + $0x8] sm:$0xff] %vm226, %v415
        %421 = vst.msk [vmem:[%s418 + $0x10] sm:$0xff] %vm226, %v416
        %422 = vst.msk [vmem:[%s418 + $0x18] sm:$0xff] %vm226, %v417
        %s423 = scalar_lea.vmem %s197, 224
        %v424 = vld [vmem:[%s423] sm:$0xff]
        %v425 = vld [vmem:[%s423 + $0x8] sm:$0xff]
        %v426 = vld [vmem:[%s423 + $0x10] sm:$0xff]
        %v427 = vld [vmem:[%s423 + $0x18] sm:$0xff]
        %v428 = vld [vmem:[%s0 + $0x7] sm:$0x1]
        %v429 = vlaneseq
        %v430 = vshrl.u32 %v429, 7
        %v431 = vsub.s32 0, %v430
        %v432 = vrot.slane %v428, %v431
        %v433 = vmul.f32 %v424, %v432
        %v434 = vmul.f32 %v425, %v432
        %v435 = vmul.f32 %v426, %v432
        %v436 = vmul.f32 %v427, %v432
        %v437 = vld [vmem:[%s1 + $0x7] sm:$0x1]
        %v438 = vlaneseq
        %v439 = vshrl.u32 %v438, 7
        %v440 = vsub.s32 0, %v439
        %v441 = vrot.slane %v437, %v440
        %v442 = vadd.f32 %v433, %v441
        %v443 = vadd.f32 %v434, %v441
        %v444 = vadd.f32 %v435, %v441
        %v445 = vadd.f32 %v436, %v441
        %v446 = vmax.f32 %v442, 0.0
        %v447 = vmax.f32 %v443, 0.0
        %v448 = vmax.f32 %v444, 0.0
        %v449 = vmax.f32 %v445, 0.0
        %s450 = scalar_lea.vmem %s188, 224 [#allocation2]
        %451 = vst.msk [vmem:[%s450] sm:$0xff] %vm226, %v446
        %452 = vst.msk [vmem:[%s450 + $0x8] sm:$0xff] %vm226, %v447
        %453 = vst.msk [vmem:[%s450 + $0x10] sm:$0xff] %vm226, %v448
        %454 = vst.msk [vmem:[%s450 + $0x18] sm:$0xff] %vm226, %v449
        %s455 = sand.u32 %s109, 1
        %s456 = scalar_lea.sflag [#allocation3], %s455
        %s457 = sand.u32 %s109, 1
        %s458 = smul.addr %s457, 256
        %s459 = scalar_lea.vmem [#allocation2], %s458
        // Predicated region
        $region33: #{up_conv_forward.5} parent=31 // pred_check
          %p460 = pneg %p119
        $region34: #{up_conv_forward.5} parent=31 // pred_check_branch
          %462 = sbr.rel (%p460) target = $region36
        $region35: #{up_conv_forward.5} parent=31 // pred_region
          %s463 = smul.u32 4, %s22
          %s465 = ssub.s32 4096, 4096
          %466 = vsyncadd %s456, %s465
          %s467 = smul.addr %s21, 32
          %s468 = sadd.s32 %s463, %s467
          %s469 = smul.addr %s468, 128
          %s470 = scalar_lea.hbm %s3, %s469
          %s471 = sshll.u32 %s459, 4
          %s472 = int_to_ptr.vmem [resolvable:$true] %s471
          %477 = dma.vmem_to_hbm [thread:$0]  %s472, 4096, %s470, %s456, 128, 128, 8
        $region36: #{up_conv_forward.5} parent=31 // pred_fallthru
          _
      $region32: #{up_conv_forward.5} parent=5 // pred_fallthru
        _
      %p478 = scmp.le.s32.totalorder 2, %s12
      // Predicated region
      $region37: #{up_conv_forward.5} parent=5 // pred_check
        %p479 = pneg %p478
      $region38: #{up_conv_forward.5} parent=5 // pred_check_branch
        %481 = sbr.rel (%p479) target = $region40
      $region39: #{up_conv_forward.5} parent=5 // pred_region
        %s482 = ssub.s32 %s12, 2
        // Predicated region
        $region41: #{up_conv_forward.5} parent=39 // pred_check
          %p483 = pneg %p125
        $region42: #{up_conv_forward.5} parent=39 // pred_check_branch
          %485 = sbr.rel (%p483) target = $region44
        $region43: #{up_conv_forward.5} parent=39 // pred_region
          %s486 = sand.u32 %s110, 1
          %s487 = scalar_lea.sflag [#allocation3], %s486
          %s488 = sand.u32 %s110, 1
          %s489 = smul.addr %s488, 256
          %s490 = scalar_lea.vmem [#allocation2], %s489
          %491 = dma.done %s487, 4096
        $region44: #{up_conv_forward.5} parent=39 // pred_fallthru
          _
      $region40: #{up_conv_forward.5} parent=5 // pred_fallthru
        _
    $region6: #{up_conv_forward.5} parent=1 // loop_footer
      %s16 = sadd.s32 1, %s12
    $region7: #{up_conv_forward.5} parent=1 // loop_footer_branch
      %11 = sbr.rel target = $region3
    $region8: #{up_conv_forward.5} parent=1 // loop_exit
      _
    %492 = vsyncpa [#allocation3], 1
    %s493 = scalar_lea.sflag [#allocation3], 1
    %494 = vsyncpa %s493, 1

// kernel: up_conv_forward.3
$region0: #{up_conv_forward.3}
  #allocation0 [shape = 'u32[]', space=smem, size = 0x4, offset = 0x4, fixed_abs, tag = 'smem constant byte address 0x4 - core index']
  #allocation1 [shape = 'u32[144,128]{1,0:T(1,128)}', space=vmem, size = 0x12000, scoped, tag = 'internal scratch']
  %s0 = inlined_call_operand.hbm [shape: f32[2,4,16,16], index: 0, kind: input, shape index: {}]
  %s1 = inlined_call_operand.vmem [shape: bf16[32,16], index: 1, kind: input, shape index: {}]
  %s2 = inlined_call_operand.vmem [shape: bf16[16,40], index: 2, kind: input, shape index: {}]
  %s3 = inlined_call_operand.vmem [shape: bf16[2,4,32,40], index: 3, kind: output, shape index: {}]
  %s4 = sld [smem:[#allocation0]]
  $region49: #{up_conv_forward.3} parent=0
    _
  %s6 = ssub.s32 1, %s4
  %s7 = scalar_select 0, %s6, %s4
  $region1: #{up_conv_forward.3} parent=0
    #allocation2 [shape = 'u8[65536]{0}', space=vmem, size = 0x10000, scoped, tag = 'input window, operand 0']
    #allocation3 [shape = 's32[2]{0}', space=sflag, size = 0x8, scoped, tag = 'scoped memory for up_conv_forward.3']
    %8 = vsyncpa [#allocation3], 0
    %s9 = scalar_lea.sflag [#allocation3], 1
    %10 = vsyncpa %s9, 0
    loop: start=0, step=1, limit=4
    $region2: #{up_conv_forward.3} parent=1 // loop_pre_header
      _
    $region3: #{up_conv_forward.3} parent=1 // loop_header
      %s12 = sphi 0, %s16
      %p13 = scmp.ge.s32.totalorder %s12, 4
      %s19 = sphi 0, %s31
      %s20 = sphi 0, %s27
      %s21 = sphi 0, %s19
      %s22 = sphi 0, %s20
      %s23 = sphi 0, %s21
      %s24 = sphi 0, %s22
      %s36 = sphi 0, %s38
      %s39 = sphi 0, %s36
      %s40 = sphi 0, %s39
      %s56 = sphi 0, %s40
      %s60 = sphi 0, %s60
      %s62 = sphi 0, %s60
      %s63 = sphi 0, %s62
      %s77 = sphi 0, %s63
      %s81 = sphi 0, %s81
      %s83 = sphi 0, %s81
      %s84 = sphi 0, %s83
      %s98 = sphi 0, %s84
      %s106 = sphi 0, %s108
      %s109 = sphi 0, %s106
      %s110 = sphi 0, %s109
      %s126 = sphi 0, %s110
    $region4: #{up_conv_forward.3} parent=1 // loop_header_branch
      %15 = sbr.rel (%p13) target = $region8
    $region5: #{up_conv_forward.3} parent=1 // loop_body
      %s17 = ssub.s32 %s12, 1
      %s18 = ssub.s32 %s12, 2
      %s25 = sadd.s32 1, %s20
      %p26 = scmp.ge.s32.totalorder %s25, 1
      %s27 = scalar_select %p26, 0, %s25
      %s28 = sadd.s32 1, %s19
      %s29 = scalar_select %p26, %s28, %s19
      %p30 = scmp.ge.s32.totalorder %s29, 2
      %s31 = scalar_select %p30, 0, %s29
      %s32 = ssub.s32 %s19, %s31
      %s33 = ssub.s32 %s20, %s27
      %s34 = sor.u32 %s32, %s33
      %p35 = scmp.eq.s32.totalorder %s34, 0
      %s37 = sadd.s32 %s36, 1
      %s38 = scalar_select %p35, %s36, %s37
      %p41 = pneg %p35
      %p42 = scmp.eq.s32.totalorder %s12, 1
      %p43 = por %p41, %p42
      %p44 = scmp.ne.s32.totalorder %s36, %s39
      %p45 = scmp.eq.s32.totalorder %s12, 0
      %p46 = por %p44, %p45
      %p47 = scmp.ne.s32.totalorder %s36, %s39
      %p48 = scmp.eq.s32.totalorder %s17, 1
      %p49 = por %p47, %p48
      %p50 = scmp.ne.s32.totalorder %s39, %s40
      %p51 = scmp.eq.s32.totalorder %s17, 0
      %p52 = por %p50, %p51
      %p53 = scmp.ne.s32.totalorder %s39, %s40
      %p54 = scmp.eq.s32.totalorder %s18, 1
      %p55 = por %p53, %p54
      %p57 = scmp.ne.s32.totalorder %s40, %s56
      %p58 = scmp.eq.s32.totalorder %s18, 0
      %p59 = por %p57, %p58
      %s61 = sadd.s32 %s60, 1
      %p64 = scmp.eq.s32.totalorder %s12, 1
      %p65 = scmp.ne.s32.totalorder %s60, %s62
      %p66 = scmp.eq.s32.totalorder %s12, 0
      %p67 = por %p65, %p66
      %p68 = scmp.ne.s32.totalorder %s60, %s62
      %p69 = scmp.eq.s32.totalorder %s17, 1
      %p70 = por %p68, %p69
      %p71 = scmp.ne.s32.totalorder %s62, %s63
      %p72 = scmp.eq.s32.totalorder %s17, 0
      %p73 = por %p71, %p72
      %p74 = scmp.ne.s32.totalorder %s62, %s63
      %p75 = scmp.eq.s32.totalorder %s18, 1
      %p76 = por %p74, %p75
      %p78 = scmp.ne.s32.totalorder %s63, %s77
      %p79 = scmp.eq.s32.totalorder %s18, 0
      %p80 = por %p78, %p79
      %s82 = sadd.s32 %s81, 1
      %p85 = scmp.eq.s32.totalorder %s12, 1
      %p86 = scmp.ne.s32.totalorder %s81, %s83
      %p87 = scmp.eq.s32.totalorder %s12, 0
      %p88 = por %p86, %p87
      %p89 = scmp.ne.s32.totalorder %s81, %s83
      %p90 = scmp.eq.s32.totalorder %s17, 1
      %p91 = por %p89, %p90
      %p92 = scmp.ne.s32.totalorder %s83, %s84
      %p93 = scmp.eq.s32.totalorder %s17, 0
      %p94 = por %p92, %p93
      %p95 = scmp.ne.s32.totalorder %s83, %s84
      %p96 = scmp.eq.s32.totalorder %s18, 1
      %p97 = por %p95, %p96
      %p99 = scmp.ne.s32.totalorder %s84, %s98
      %p100 = scmp.eq.s32.totalorder %s18, 0
      %p101 = por %p99, %p100
      %s102 = ssub.s32 %s19, %s31
      %s103 = ssub.s32 %s20, %s27
      %s104 = sor.u32 %s102, %s103
      %p105 = scmp.eq.s32.totalorder %s104, 0
      %s107 = sadd.s32 %s106, 1
      %s108 = scalar_select %p105, %s106, %s107
      %p111 = pneg %p105
      %p112 = scmp.eq.s32.totalorder %s12, 1
      %p113 = por %p111, %p112
      %p114 = scmp.ne.s32.totalorder %s106, %s109
      %p115 = scmp.eq.s32.totalorder %s12, 0
      %p116 = por %p114, %p115
      %p117 = scmp.ne.s32.totalorder %s106, %s109
      %p118 = scmp.eq.s32.totalorder %s17, 1
      %p119 = por %p117, %p118
      %p120 = scmp.ne.s32.totalorder %s109, %s110
      %p121 = scmp.eq.s32.totalorder %s17, 0
      %p122 = por %p120, %p121
      %p123 = scmp.ne.s32.totalorder %s109, %s110
      %p124 = scmp.eq.s32.totalorder %s18, 1
      %p125 = por %p123, %p124
      %p127 = scmp.ne.s32.totalorder %s110, %s126
      %p128 = scmp.eq.s32.totalorder %s18, 0
      %p129 = por %p127, %p128
      %p130 = scmp.le.s32.totalorder 1, %s12
      %p131 = scmp.lt.s32.totalorder %s12, 3
      %p132 = pnand %p130, %p131
      %p133 = pneg %p132
      // Predicated region
      $region9: #{up_conv_forward.3} parent=5 // pred_check
        _
      $region10: #{up_conv_forward.3} parent=5 // pred_check_branch
        %135 = sbr.rel (%p132) target = $region12
      $region11: #{up_conv_forward.3} parent=5 // pred_region
        %s136 = ssub.s32 %s12, 1
        // Predicated region
        $region13: #{up_conv_forward.3} parent=11 // pred_check
          %p137 = pneg %p73
        $region14: #{up_conv_forward.3} parent=11 // pred_check_branch
          %139 = sbr.rel (%p137) target = $region16
        $region15: #{up_conv_forward.3} parent=11 // pred_region
          _
        $region16: #{up_conv_forward.3} parent=11 // pred_fallthru
          _
        // Predicated region
        $region17: #{up_conv_forward.3} parent=11 // pred_check
          %p140 = pneg %p94
        $region18: #{up_conv_forward.3} parent=11 // pred_check_branch
          %142 = sbr.rel (%p140) target = $region20
        $region19: #{up_conv_forward.3} parent=11 // pred_region
          _
        $region20: #{up_conv_forward.3} parent=11 // pred_fallthru
          _
      $region12: #{up_conv_forward.3} parent=5 // pred_fallthru
        _
      %p143 = scmp.lt.s32.totalorder %s12, 2
      // Predicated region
      $region21: #{up_conv_forward.3} parent=5 // pred_check
        %p144 = pneg %p143
      $region22: #{up_conv_forward.3} parent=5 // pred_check_branch
        %146 = sbr.rel (%p144) target = $region24
      $region23: #{up_conv_forward.3} parent=5 // pred_region
        // Predicated region
        $region25: #{up_conv_forward.3} parent=23 // pred_check
          %p147 = pneg %p46
        $region26: #{up_conv_forward.3} parent=23 // pred_check_branch
          %149 = sbr.rel (%p147) target = $region28
        $region27: #{up_conv_forward.3} parent=23 // pred_region
          %s150 = sand.u32 %s36, 1
          %s151 = scalar_lea.sflag [#allocation3], %s150
          %s152 = sand.u32 %s36, 1
          %s153 = smul.addr %s152, 64
          %s154 = scalar_lea.vmem [#allocation2], %s153
          %s155 = smul.u32 4, %s20
          %s157 = ssub.s32 1024, 1024
          %158 = vsyncadd %s151, %s157
          %s159 = smul.addr %s155, 2
          %s160 = smul.addr %s19, 8
          %s161 = sadd.s32 %s159, %s160
          %s162 = smul.addr %s161, 128
          %s163 = scalar_lea.hbm %s0, %s162
          %s164 = sshll.u32 %s154, 4
          %s165 = int_to_ptr.vmem [resolvable:$true] %s164
          %170 = dma.hbm_to_vmem [thread:$0]  %s163, 1024, %s165, %s151, 128, 128, 8
        $region28: #{up_conv_forward.3} parent=23 // pred_fallthru
          _
      $region24: #{up_conv_forward.3} parent=5 // pred_fallthru
        _
      %p171 = scmp.le.s32.totalorder 1, %s12
      %p172 = scmp.lt.s32.totalorder %s12, 3
      %p173 = pnand %p171, %p172
      %p174 = pneg %p173
      // Predicated region
      $region29: #{up_conv_forward.3} parent=5 // pred_check
        _
      $region30: #{up_conv_forward.3} parent=5 // pred_check_branch
        %176 = sbr.rel (%p173) target = $region32
      $region31: #{up_conv_forward.3} parent=5 // pred_region
        %s177 = ssub.s32 %s12, 1
        %s178 = sand.u32 %s39, 1
        %s179 = scalar_lea.sflag [#allocation3], %s178
        %s180 = sand.u32 %s39, 1
        %s181 = smul.addr %s180, 64
        %s182 = scalar_lea.vmem [#allocation2], %s181
        // Predicated region
        $region33: #{up_conv_forward.3} parent=31 // pred_check
          %p183 = pneg %p52
        $region34: #{up_conv_forward.3} parent=31 // pred_check_branch
          %185 = sbr.rel (%p183) target = $region36
        $region35: #{up_conv_forward.3} parent=31 // pred_region
          %186 = dma.done %s179, 1024
        $region36: #{up_conv_forward.3} parent=31 // pred_fallthru
          _
        %s187 = sand.u32 %s39, 1
        %s188 = scalar_lea.sflag [#allocation3], %s187
        %s189 = sand.u32 %s39, 1
        %s190 = smul.addr %s189, 64
        %s191 = scalar_lea.vmem [#allocation2], %s190
        %p192 = pneg %p52
        %p193 = pneg %p49
        %p194 = pneg %p73
        %p195 = pneg %p70
        %p196 = pneg %p94
        %p197 = pneg %p91
        %p198 = pneg %p122
        %p199 = pneg %p119
        %s200 = smul.u32 4, %s22
        %p201 = scmp.lt.s32.totalorder %s21, 1
        %s202 = scalar_select %p201, %s21, 1
        %p203 = scmp.lt.s32.totalorder %s200, 3
        %s204 = scalar_select %p203, %s200, 3
        %s205 = smul.addr %s204, 4
        %s206 = smul.addr %s202, 16
        %s207 = sadd.s32 %s205, %s206
        %s208 = smul.addr %s207, 4
        %s209 = scalar_lea.vmem %s3, %s208
        %s210 = smul.u32 4, %s22
        %s211 = smul.u32 4, %s22
        %p212 = scmp.lt.s32.totalorder %s21, 1
        %s213 = scalar_select %p212, %s21, 1
        %p214 = scmp.lt.s32.totalorder %s211, 3
        %s215 = scalar_select %p214, %s211, 3
        %s216 = smul.addr %s215, 4
        %s217 = smul.addr %s213, 16
        %s218 = sadd.s32 %s216, %s217
        %s219 = smul.addr %s218, 4
        %s220 = scalar_lea.vmem %s3, %s219
        %s221 = smul.u32 4, %s22
        %v223 = vld [vmem:[%s182] sm:$0xff]
        %v224 = vld [vmem:[%s182 + $0x8] sm:$0xff]
        %v225 = vpack.c.bf16 %v224, %v223
        %v226 = vld [vmem:[%s1] sm:$0xf]
        %v227 = vld [vmem:[%s1 + $0x4] sm:$0xf]
        %v228 = vld [vmem:[%s1 + $0x8] sm:$0xf]
        %v229 = vld [vmem:[%s1 + $0xc] sm:$0xf]
        %v234 = vunpack.c.l.b16 %v226
        %v235 = vunpack.c.l.b16 %v227
        %v236 = vunpack.c.l.b16 %v228
        %v237 = vunpack.c.l.b16 %v229
        %v238 = vpack.c.b16 %v235, %v234
        %v239 = vpack.c.b16 %v237, %v236
        %vm240 = vcmask 130048
        %v242 = vsel %vm240, %v238, 0
        %v245 = vsel %vm240, %v239, 0
        %247 = vmatprep.subr.bf16.mxu0 0
        %248 = vmatpush1.bf16.msra.mxu0 0
        %249 = vmatprep.subr.bf16.mxu0 0
        %250 = vmatpush1.bf16.msra.mxu0 0
        %251 = vmatprep.subr.bf16.mxu0 0
        %252 = vmatpush1.bf16.msra.mxu0 0
        %253 = vmatprep.subr.bf16.mxu0 0
        %254 = vmatpush1.bf16.msra.mxu0 0
        %255 = vmatprep.subr.bf16.mxu0 0
        %256 = vmatpush1.bf16.msra.mxu0 0
        %257 = vmatprep.subr.bf16.mxu0 0
        %258 = vmatpush1.bf16.msra.mxu0 0
        %259 = vmatprep.subr.bf16.mxu0 0
        %260 = vmatpush1.bf16.msra.mxu0 0
        %261 = vmatprep.subr.bf16.mxu0 0
        %262 = vmatpush1.bf16.msra.mxu0 %v225
        %263 = vmatprep.subr.bf16.mxu0 0
        %264 = vmatpush2.bf16.msra.mxu0 0
        %265 = vmatprep.subr.bf16.mxu0 0
        %266 = vmatpush2.bf16.msra.mxu0 0
        %267 = vmatprep.subr.bf16.mxu0 0
        %268 = vmatpush2.bf16.msra.mxu0 0
        %269 = vmatprep.subr.bf16.mxu0 0
        %270 = vmatpush2.bf16.msra.mxu0 0
        %271 = vmatprep.subr.bf16.mxu0 0
        %272 = vmatpush2.bf16.msra.mxu0 0
        %273 = vmatprep.subr.bf16.mxu0 0
        %274 = vmatpush2.bf16.msra.mxu0 0
        %275 = vmatprep.subr.bf16.mxu0 0
        %276 = vmatpush2.bf16.msra.mxu0 0
        %277 = vmatprep.subr.bf16.mxu0 0
        %278 = vmatpush2.bf16.msra.mxu0 0
        %279 = vmatprep.mubr.bf16.mxu0 0
        %280 = vmatmul.mubr.bf16.gmra.mxu0 %v242
        %v281 = vpop.f32.mrf.mxu0
        %v282 = vadd.f32 0.0, %v281
        %v283 = vpop.f32.mrf.mxu0
        %v284 = vpop.f32.mrf.mxu0
        %v285 = vadd.f32 0.0, %v284
        %v286 = vpop.f32.mrf.mxu0
        %287 = vmatprep.mubr.bf16.mxu0 0
        %288 = vmatmul.mubr.bf16.gmra.mxu0 %v245
        %v289 = vpop.f32.mrf.mxu0
        %v290 = vadd.f32 0.0, %v289
        %v291 = vpop.f32.mrf.mxu0
        %v292 = vpop.f32.mrf.mxu0
        %v293 = vadd.f32 0.0, %v292
        %v294 = vpop.f32.mrf.mxu0
        %295 = vdwg.mxu0
        %v296 = vpack.c.bf16 %v285, %v282
        %v297 = vpack.c.bf16 %v293, %v290
        %v298 = vld [vmem:[%s2] sm:$0xf]
        %v299 = vld [vmem:[%s2 + $0x4] sm:$0xf]
        %v302 = vunpack.c.l.b16 %v298
        %v303 = vunpack.c.l.b16 %v299
        %v304 = vpack.c.b16 %v303, %v302
        %v307 = vsel %vm240, %v296, 0
        %v310 = vsel %vm240, %v297, 0
        %312 = vmatprep.subr.bf16.mxu0 0
        %313 = vmatpush1.bf16.msra.mxu0 0
        %314 = vmatprep.subr.bf16.mxu0 0
        %315 = vmatpush1.bf16.msra.mxu0 0
        %316 = vmatprep.subr.bf16.mxu0 0
        %317 = vmatpush1.bf16.msra.mxu0 0
        %318 = vmatprep.subr.bf16.mxu0 0
        %319 = vmatpush1.bf16.msra.mxu0 0
        %320 = vmatprep.subr.bf16.mxu0 0
        %321 = vmatpush1.bf16.msra.mxu0 0
        %322 = vmatprep.subr.bf16.mxu0 0
        %323 = vmatpush1.bf16.msra.mxu0 0
        %324 = vmatprep.subr.bf16.mxu0 0
        %325 = vmatpush1.bf16.msra.mxu0 0
        %326 = vmatprep.subr.bf16.mxu0 0
        %327 = vmatpush1.bf16.msra.mxu0 %v304
        %328 = vmatprep.subr.bf16.mxu0 0
        %329 = vmatpush2.bf16.msra.mxu0 0
        %330 = vmatprep.subr.bf16.mxu0 0
        %331 = vmatpush2.bf16.msra.mxu0 0
        %332 = vmatprep.subr.bf16.mxu0 0
        %333 = vmatpush2.bf16.msra.mxu0 0
        %334 = vmatprep.subr.bf16.mxu0 0
        %335 = vmatpush2.bf16.msra.mxu0 0
        %336 = vmatprep.subr.bf16.mxu0 0
        %337 = vmatpush2.bf16.msra.mxu0 0
        %338 = vmatprep.subr.bf16.mxu0 0
        %339 = vmatpush2.bf16.msra.mxu0 0
        %340 = vmatprep.subr.bf16.mxu0 0
        %341 = vmatpush2.bf16.msra.mxu0 0
        %342 = vmatprep.subr.bf16.mxu0 0
        %343 = vmatpush2.bf16.msra.mxu0 0
        %344 = vmatprep.mubr.bf16.mxu0 0
        %345 = vmatmul.mubr.bf16.gmra.mxu0 %v307
        %v346 = vpop.f32.mrf.mxu0
        %v347 = vadd.f32 0.0, %v346
        %v348 = vpop.f32.mrf.mxu0
        %v349 = vpop.f32.mrf.mxu0
        %v350 = vadd.f32 0.0, %v349
        %v351 = vpop.f32.mrf.mxu0
        %352 = vmatprep.mubr.bf16.mxu0 0
        %353 = vmatmul.mubr.bf16.gmra.mxu0 %v310
        %v354 = vpop.f32.mrf.mxu0
        %v355 = vadd.f32 0.0, %v354
        %v356 = vpop.f32.mrf.mxu0
        %v357 = vpop.f32.mrf.mxu0
        %v358 = vadd.f32 0.0, %v357
        %v359 = vpop.f32.mrf.mxu0
        %360 = vdwg.mxu0
        %v361 = vpack.c.bf16 %v350, %v347
        %v362 = vpack.c.bf16 %v358, %v355
        %v365 = vunpack.c.l.b16 %v361
        %v366 = vunpack.c.h.b16 %v361
        %v367 = vunpack.c.l.b16 %v362
        %v368 = vunpack.c.h.b16 %v362
        %v369 = vpack.c.b16 %v365, %v365
        %v370 = vpack.c.b16 %v366, %v366
        %v371 = vpack.c.b16 %v367, %v367
        %v372 = vpack.c.b16 %v368, %v368
        %vm377 = vcmask 322560
        %378 = vst.msk [vmem:[%s220] sm:$0xf] %vm377, %v369
        %379 = vst.msk [vmem:[%s220 + $0x4] sm:$0xf] %vm377, %v370
        %380 = vst.msk [vmem:[%s220 + $0x8] sm:$0xf] %vm377, %v371
        %381 = vst.msk [vmem:[%s220 + $0xc] sm:$0xf] %vm377, %v372
        %s382 = scalar_lea.vmem %s182, 16 [#allocation2]
        %v383 = vld [vmem:[%s382] sm:$0xff]
        %v384 = vld [vmem:[%s382 + $0x8] sm:$0xff]
        %v385 = vpack.c.bf16 %v384, %v383
        %v386 = vld [vmem:[%s1] sm:$0xf]
        %v387 = vld [vmem:[%s1 + $0x4] sm:$0xf]
        %v388 = vld [vmem:[%s1 + $0x8] sm:$0xf]
        %v389 = vld [vmem:[%s1 + $0xc] sm:$0xf]
        %v394 = vunpack.c.l.b16 %v386
        %v395 = vunpack.c.l.b16 %v387
        %v396 = vunpack.c.l.b16 %v388
        %v397 = vunpack.c.l.b16 %v389
        %v398 = vpack.c.b16 %v395, %v394
        %v399 = vpack.c.b16 %v397, %v396
        %v401 = vsel %vm240, %v398, 0
        %v404 = vsel %vm240, %v399, 0
        %406 = vmatprep.subr.bf16.mxu0 0
        %407 = vmatpush1.bf16.msra.mxu0 0
        %408 = vmatprep.subr.bf16.mxu0 0
        %409 = vmatpush1.bf16.msra.mxu0 0
        %410 = vmatprep.subr.bf16.mxu0 0
        %411 = vmatpush1.bf16.msra.mxu0 0
        %412 = vmatprep.subr.bf16.mxu0 0
        %413 = vmatpush1.bf16.msra.mxu0 0
        %414 = vmatprep.subr.bf16.mxu0 0
        %415 = vmatpush1.bf16.msra.mxu0 0
        %416 = vmatprep.subr.bf16.mxu0 0
        %417 = vmatpush1.bf16.msra.mxu0 0
        %418 = vmatprep.subr.bf16.mxu0 0
        %419 = vmatpush1.bf16.msra.mxu0 0
        %420 = vmatprep.subr.bf16.mxu0 0
        %421 = vmatpush1.bf16.msra.mxu0 %v385
        %422 = vmatprep.subr.bf16.mxu0 0
        %423 = vmatpush2.bf16.msra.mxu0 0
        %424 = vmatprep.subr.bf16.mxu0 0
        %425 = vmatpush2.bf16.msra.mxu0 0
        %426 = vmatprep.subr.bf16.mxu0 0
        %427 = vmatpush2.bf16.msra.mxu0 0
        %428 = vmatprep.subr.bf16.mxu0 0
        %429 = vmatpush2.bf16.msra.mxu0 0
        %430 = vmatprep.subr.bf16.mxu0 0
        %431 = vmatpush2.bf16.msra.mxu0 0
        %432 = vmatprep.subr.bf16.mxu0 0
        %433 = vmatpush2.bf16.msra.mxu0 0
        %434 = vmatprep.subr.bf16.mxu0 0
        %435 = vmatpush2.bf16.msra.mxu0 0
        %436 = vmatprep.subr.bf16.mxu0 0
        %437 = vmatpush2.bf16.msra.mxu0 0
        %438 = vmatprep.mubr.bf16.mxu0 0
        %439 = vmatmul.mubr.bf16.gmra.mxu0 %v401
        %v440 = vpop.f32.mrf.mxu0
        %v441 = vadd.f32 0.0, %v440
        %v442 = vpop.f32.mrf.mxu0
        %v443 = vpop.f32.mrf.mxu0
        %v444 = vadd.f32 0.0, %v443
        %v445 = vpop.f32.mrf.mxu0
        %446 = vmatprep.mubr.bf16.mxu0 0
        %447 = vmatmul.mubr.bf16.gmra.mxu0 %v404
        %v448 = vpop.f32.mrf.mxu0
        %v449 = vadd.f32 0.0, %v448
        %v450 = vpop.f32.mrf.mxu0
        %v451 = vpop.f32.mrf.mxu0
        %v452 = vadd.f32 0.0, %v451
        %v453 = vpop.f32.mrf.mxu0
        %454 = vdwg.mxu0
        %v455 = vpack.c.bf16 %v444, %v441
        %v456 = vpack.c.bf16 %v452, %v449
        %v457 = vld [vmem:[%s2] sm:$0xf]
        %v458 = vld [vmem:[%s2 + $0x4] sm:$0xf]
        %v461 = vunpack.c.l.b16 %v457
        %v462 = vunpack.c.l.b16 %v458
        %v463 = vpack.c.b16 %v462, %v461
        %v466 = vsel %vm240, %v455, 0
        %v469 = vsel %vm240, %v456, 0
        %471 = vmatprep.subr.bf16.mxu0 0
        %472 = vmatpush1.bf16.msra.mxu0 0
        %473 = vmatprep.subr.bf16.mxu0 0
        %474 = vmatpush1.bf16.msra.mxu0 0
        %475 = vmatprep.subr.bf16.mxu0 0
        %476 = vmatpush1.bf16.msra.mxu0 0
        %477 = vmatprep.subr.bf16.mxu0 0
        %478 = vmatpush1.bf16.msra.mxu0 0
        %479 = vmatprep.subr.bf16.mxu0 0
        %480 = vmatpush1.bf16.msra.mxu0 0
        %481 = vmatprep.subr.bf16.mxu0 0
        %482 = vmatpush1.bf16.msra.mxu0 0
        %483 = vmatprep.subr.bf16.mxu0 0
        %484 = vmatpush1.bf16.msra.mxu0 0
        %485 = vmatprep.subr.bf16.mxu0 0
        %486 = vmatpush1.bf16.msra.mxu0 %v463
        %487 = vmatprep.subr.bf16.mxu0 0
        %488 = vmatpush2.bf16.msra.mxu0 0
        %489 = vmatprep.subr.bf16.mxu0 0
        %490 = vmatpush2.bf16.msra.mxu0 0
        %491 = vmatprep.subr.bf16.mxu0 0
        %492 = vmatpush2.bf16.msra.mxu0 0
        %493 = vmatprep.subr.bf16.mxu0 0
        %494 = vmatpush2.bf16.msra.mxu0 0
        %495 = vmatprep.subr.bf16.mxu0 0
        %496 = vmatpush2.bf16.msra.mxu0 0
        %497 = vmatprep.subr.bf16.mxu0 0
        %498 = vmatpush2.bf16.msra.mxu0 0
        %499 = vmatprep.subr.bf16.mxu0 0
        %500 = vmatpush2.bf16.msra.mxu0 0
        %501 = vmatprep.subr.bf16.mxu0 0
        %502 = vmatpush2.bf16.msra.mxu0 0
        %503 = vmatprep.mubr.bf16.mxu0 0
        %504 = vmatmul.mubr.bf16.gmra.mxu0 %v466
        %v505 = vpop.f32.mrf.mxu0
        %v506 = vadd.f32 0.0, %v505
        %v507 = vpop.f32.mrf.mxu0
        %v508 = vpop.f32.mrf.mxu0
        %v509 = vadd.f32 0.0, %v508
        %v510 = vpop.f32.mrf.mxu0
        %511 = vmatprep.mubr.bf16.mxu0 0
        %512 = vmatmul.mubr.bf16.gmra.mxu0 %v469
        %v513 = vpop.f32.mrf.mxu0
        %v514 = vadd.f32 0.0, %v513
        %v515 = vpop.f32.mrf.mxu0
        %v516 = vpop.f32.mrf.mxu0
        %v517 = vadd.f32 0.0, %v516
        %v518 = vpop.f32.mrf.mxu0
        %519 = vdwg.mxu0
        %v520 = vpack.c.bf16 %v509, %v506
        %v521 = vpack.c.bf16 %v517, %v514
        %v524 = vunpack.c.l.b16 %v520
        %v525 = vunpack.c.h.b16 %v520
        %v526 = vunpack.c.l.b16 %v521
        %v527 = vunpack.c.h.b16 %v521
        %v528 = vpack.c.b16 %v524, %v524
        %v529 = vpack.c.b16 %v525, %v525
        %v530 = vpack.c.b16 %v526, %v526
        %v531 = vpack.c.b16 %v527, %v527
        %s536 = scalar_lea.vmem %s220, 16
        %537 = vst.msk [vmem:[%s536] sm:$0xf] %vm377, %v528
        %538 = vst.msk [vmem:[%s536 + $0x4] sm:$0xf] %vm377, %v529
        %539 = vst.msk [vmem:[%s536 + $0x8] sm:$0xf] %vm377, %v530
        %540 = vst.msk [vmem:[%s536 + $0xc] sm:$0xf] %vm377, %v531
        %s541 = scalar_lea.vmem %s182, 32 [#allocation2]
        %v542 = vld [vmem:[%s541] sm:$0xff]
        %v543 = vld [vmem:[%s541 + $0x8] sm:$0xff]
        %v544 = vpack.c.bf16 %v543, %v542
        %v545 = vld [vmem:[%s1] sm:$0xf]
        %v546 = vld [vmem:[%s1 + $0x4] sm:$0xf]
        %v547 = vld [vmem:[%s1 + $0x8] sm:$0xf]
        %v548 = vld [vmem:[%s1 + $0xc] sm:$0xf]
        %v553 = vunpack.c.l.b16 %v545
        %v554 = vunpack.c.l.b16 %v546
        %v555 = vunpack.c.l.b16 %v547
        %v556 = vunpack.c.l.b16 %v548
        %v557 = vpack.c.b16 %v554, %v553
        %v558 = vpack.c.b16 %v556, %v555
        %v560 = vsel %vm240, %v557, 0
        %v563 = vsel %vm240, %v558, 0
        %565 = vmatprep.subr.bf16.mxu0 0
        %566 = vmatpush1.bf16.msra.mxu0 0
        %567 = vmatprep.subr.bf16.mxu0 0
        %568 = vmatpush1.bf16.msra.mxu0 0
        %569 = vmatprep.subr.bf16.mxu0 0
        %570 = vmatpush1.bf16.msra.mxu0 0
        %571 = vmatprep.subr.bf16.mxu0 0
        %572 = vmatpush1.bf16.msra.mxu0 0
        %573 = vmatprep.subr.bf16.mxu0 0
        %574 = vmatpush1.bf16.msra.mxu0 0
        %575 = vmatprep.subr.bf16.mxu0 0
        %576 = vmatpush1.bf16.msra.mxu0 0
        %577 = vmatprep.subr.bf16.mxu0 0
        %578 = vmatpush1.bf16.msra.mxu0 0
        %579 = vmatprep.subr.bf16.mxu0 0
        %580 = vmatpush1.bf16.msra.mxu0 %v544
        %581 = vmatprep.subr.bf16.mxu0 0
        %582 = vmatpush2.bf16.msra.mxu0 0
        %583 = vmatprep.subr.bf16.mxu0 0
        %584 = vmatpush2.bf16.msra.mxu0 0
        %585 = vmatprep.subr.bf16.mxu0 0
        %586 = vmatpush2.bf16.msra.mxu0 0
        %587 = vmatprep.subr.bf16.mxu0 0
        %588 = vmatpush2.bf16.msra.mxu0 0
        %589 = vmatprep.subr.bf16.mxu0 0
        %590 = vmatpush2.bf16.msra.mxu0 0
        %591 = vmatprep.subr.bf16.mxu0 0
        %592 = vmatpush2.bf16.msra.mxu0 0
        %593 = vmatprep.subr.bf16.mxu0 0
        %594 = vmatpush2.bf16.msra.mxu0 0
        %595 = vmatprep.subr.bf16.mxu0 0
        %596 = vmatpush2.bf16.msra.mxu0 0
        %597 = vmatprep.mubr.bf16.mxu0 0
        %598 = vmatmul.mubr.bf16.gmra.mxu0 %v560
        %v599 = vpop.f32.mrf.mxu0
        %v600 = vadd.f32 0.0, %v599
        %v601 = vpop.f32.mrf.mxu0
        %v602 = vpop.f32.mrf.mxu0
        %v603 = vadd.f32 0.0, %v602
        %v604 = vpop.f32.mrf.mxu0
        %605 = vmatprep.mubr.bf16.mxu0 0
        %606 = vmatmul.mubr.bf16.gmra.mxu0 %v563
        %v607 = vpop.f32.mrf.mxu0
        %v608 = vadd.f32 0.0, %v607
        %v609 = vpop.f32.mrf.mxu0
        %v610 = vpop.f32.mrf.mxu0
        %v611 = vadd.f32 0.0, %v610
        %v612 = vpop.f32.mrf.mxu0
        %613 = vdwg.mxu0
        %v614 = vpack.c.bf16 %v603, %v600
        %v615 = vpack.c.bf16 %v611, %v608
        %v616 = vld [vmem:[%s2] sm:$0xf]
        %v617 = vld [vmem:[%s2 + $0x4] sm:$0xf]
        %v620 = vunpack.c.l.b16 %v616
        %v621 = vunpack.c.l.b16 %v617
        %v622 = vpack.c.b16 %v621, %v620
        %v625 = vsel %vm240, %v614, 0
        %v628 = vsel %vm240, %v615, 0
        %630 = vmatprep.subr.bf16.mxu0 0
        %631 = vmatpush1.bf16.msra.mxu0 0
        %632 = vmatprep.subr.bf16.mxu0 0
        %633 = vmatpush1.bf16.msra.mxu0 0
        %634 = vmatprep.subr.bf16.mxu0 0
        %635 = vmatpush1.bf16.msra.mxu0 0
        %636 = vmatprep.subr.bf16.mxu0 0
        %637 = vmatpush1.bf16.msra.mxu0 0
        %638 = vmatprep.subr.bf16.mxu0 0
        %639 = vmatpush1.bf16.msra.mxu0 0
        %640 = vmatprep.subr.bf16.mxu0 0
        %641 = vmatpush1.bf16.msra.mxu0 0
        %642 = vmatprep.subr.bf16.mxu0 0
        %643 = vmatpush1.bf16.msra.mxu0 0
        %644 = vmatprep.subr.bf16.mxu0 0
        %645 = vmatpush1.bf16.msra.mxu0 %v622
        %646 = vmatprep.subr.bf16.mxu0 0
        %647 = vmatpush2.bf16.msra.mxu0 0
        %648 = vmatprep.subr.bf16.mxu0 0
        %649 = vmatpush2.bf16.msra.mxu0 0
        %650 = vmatprep.subr.bf16.mxu0 0
        %651 = vmatpush2.bf16.msra.mxu0 0
        %652 = vmatprep.subr.bf16.mxu0 0
        %653 = vmatpush2.bf16.msra.mxu0 0
        %654 = vmatprep.subr.bf16.mxu0 0
        %655 = vmatpush2.bf16.msra.mxu0 0
        %656 = vmatprep.subr.bf16.mxu0 0
        %657 = vmatpush2.bf16.msra.mxu0 0
        %658 = vmatprep.subr.bf16.mxu0 0
        %659 = vmatpush2.bf16.msra.mxu0 0
        %660 = vmatprep.subr.bf16.mxu0 0
        %661 = vmatpush2.bf16.msra.mxu0 0
        %662 = vmatprep.mubr.bf16.mxu0 0
        %663 = vmatmul.mubr.bf16.gmra.mxu0 %v625
        %v664 = vpop.f32.mrf.mxu0
        %v665 = vadd.f32 0.0, %v664
        %v666 = vpop.f32.mrf.mxu0
        %v667 = vpop.f32.mrf.mxu0
        %v668 = vadd.f32 0.0, %v667
        %v669 = vpop.f32.mrf.mxu0
        %670 = vmatprep.mubr.bf16.mxu0 0
        %671 = vmatmul.mubr.bf16.gmra.mxu0 %v628
        %v672 = vpop.f32.mrf.mxu0
        %v673 = vadd.f32 0.0, %v672
        %v674 = vpop.f32.mrf.mxu0
        %v675 = vpop.f32.mrf.mxu0
        %v676 = vadd.f32 0.0, %v675
        %v677 = vpop.f32.mrf.mxu0
        %678 = vdwg.mxu0
        %v679 = vpack.c.bf16 %v668, %v665
        %v680 = vpack.c.bf16 %v676, %v673
        %v683 = vunpack.c.l.b16 %v679
        %v684 = vunpack.c.h.b16 %v679
        %v685 = vunpack.c.l.b16 %v680
        %v686 = vunpack.c.h.b16 %v680
        %v687 = vpack.c.b16 %v683, %v683
        %v688 = vpack.c.b16 %v684, %v684
        %v689 = vpack.c.b16 %v685, %v685
        %v690 = vpack.c.b16 %v686, %v686
        %s695 = scalar_lea.vmem %s220, 32
        %696 = vst.msk [vmem:[%s695] sm:$0xf] %vm377, %v687
        %697 = vst.msk [vmem:[%s695 + $0x4] sm:$0xf] %vm377, %v688
        %698 = vst.msk [vmem:[%s695 + $0x8] sm:$0xf] %vm377, %v689
        %699 = vst.msk [vmem:[%s695 + $0xc] sm:$0xf] %vm377, %v690
        %s700 = scalar_lea.vmem %s182, 48 [#allocation2]
        %v701 = vld [vmem:[%s700] sm:$0xff]
        %v702 = vld [vmem:[%s700 + $0x8] sm:$0xff]
        %v703 = vpack.c.bf16 %v702, %v701
        %v704 = vld [vmem:[%s1] sm:$0xf]
        %v705 = vld [vmem:[%s1 + $0x4] sm:$0xf]
        %v706 = vld [vmem:[%s1 + $0x8] sm:$0xf]
        %v707 = vld [vmem:[%s1 + $0xc] sm:$0xf]
        %v712 = vunpack.c.l.b16 %v704
        %v713 = vunpack.c.l.b16 %v705
        %v714 = vunpack.c.l.b16 %v706
        %v715 = vunpack.c.l.b16 %v707
        %v716 = vpack.c.b16 %v713, %v712
        %v717 = vpack.c.b16 %v715, %v714
        %v719 = vsel %vm240, %v716, 0
        %v722 = vsel %vm240, %v717, 0
        %724 = vmatprep.subr.bf16.mxu0 0
        %725 = vmatpush1.bf16.msra.mxu0 0
        %726 = vmatprep.subr.bf16.mxu0 0
        %727 = vmatpush1.bf16.msra.mxu0 0
        %728 = vmatprep.subr.bf16.mxu0 0
        %729 = vmatpush1.bf16.msra.mxu0 0
        %730 = vmatprep.subr.bf16.mxu0 0
        %731 = vmatpush1.bf16.msra.mxu0 0
        %732 = vmatprep.subr.bf16.mxu0 0
        %733 = vmatpush1.bf16.msra.mxu0 0
        %734 = vmatprep.subr.bf16.mxu0 0
        %735 = vmatpush1.bf16.msra.mxu0 0
        %736 = vmatprep.subr.bf16.mxu0 0
        %737 = vmatpush1.bf16.msra.mxu0 0
        %738 = vmatprep.subr.bf16.mxu0 0
        %739 = vmatpush1.bf16.msra.mxu0 %v703
        %740 = vmatprep.subr.bf16.mxu0 0
        %741 = vmatpush2.bf16.msra.mxu0 0
        %742 = vmatprep.subr.bf16.mxu0 0
        %743 = vmatpush2.bf16.msra.mxu0 0
        %744 = vmatprep.subr.bf16.mxu0 0
        %745 = vmatpush2.bf16.msra.mxu0 0
        %746 = vmatprep.subr.bf16.mxu0 0
        %747 = vmatpush2.bf16.msra.mxu0 0
        %748 = vmatprep.subr.bf16.mxu0 0
        %749 = vmatpush2.bf16.msra.mxu0 0
        %750 = vmatprep.subr.bf16.mxu0 0
        %751 = vmatpush2.bf16.msra.mxu0 0
        %752 = vmatprep.subr.bf16.mxu0 0
        %753 = vmatpush2.bf16.msra.mxu0 0
        %754 = vmatprep.subr.bf16.mxu0 0
        %755 = vmatpush2.bf16.msra.mxu0 0
        %756 = vmatprep.mubr.bf16.mxu0 0
        %757 = vmatmul.mubr.bf16.gmra.mxu0 %v719
        %v758 = vpop.f32.mrf.mxu0
        %v759 = vadd.f32 0.0, %v758
        %v760 = vpop.f32.mrf.mxu0
        %v761 = vpop.f32.mrf.mxu0
        %v762 = vadd.f32 0.0, %v761
        %v763 = vpop.f32.mrf.mxu0
        %764 = vmatprep.mubr.bf16.mxu0 0
        %765 = vmatmul.mubr.bf16.gmra.mxu0 %v722
        %v766 = vpop.f32.mrf.mxu0
        %v767 = vadd.f32 0.0, %v766
        %v768 = vpop.f32.mrf.mxu0
        %v769 = vpop.f32.mrf.mxu0
        %v770 = vadd.f32 0.0, %v769
        %v771 = vpop.f32.mrf.mxu0
        %772 = vdwg.mxu0
        %v773 = vpack.c.bf16 %v762, %v759
        %v774 = vpack.c.bf16 %v770, %v767
        %v775 = vld [vmem:[%s2] sm:$0xf]
        %v776 = vld [vmem:[%s2 + $0x4] sm:$0xf]
        %v779 = vunpack.c.l.b16 %v775
        %v780 = vunpack.c.l.b16 %v776
        %v781 = vpack.c.b16 %v780, %v779
        %v784 = vsel %vm240, %v773, 0
        %v787 = vsel %vm240, %v774, 0
        %789 = vmatprep.subr.bf16.mxu0 0
        %790 = vmatpush1.bf16.msra.mxu0 0
        %791 = vmatprep.subr.bf16.mxu0 0
        %792 = vmatpush1.bf16.msra.mxu0 0
        %793 = vmatprep.subr.bf16.mxu0 0
        %794 = vmatpush1.bf16.msra.mxu0 0
        %795 = vmatprep.subr.bf16.mxu0 0
        %796 = vmatpush1.bf16.msra.mxu0 0
        %797 = vmatprep.subr.bf16.mxu0 0
        %798 = vmatpush1.bf16.msra.mxu0 0
        %799 = vmatprep.subr.bf16.mxu0 0
        %800 = vmatpush1.bf16.msra.mxu0 0
        %801 = vmatprep.subr.bf16.mxu0 0
        %802 = vmatpush1.bf16.msra.mxu0 0
        %803 = vmatprep.subr.bf16.mxu0 0
        %804 = vmatpush1.bf16.msra.mxu0 %v781
        %805 = vmatprep.subr.bf16.mxu0 0
        %806 = vmatpush2.bf16.msra.mxu0 0
        %807 = vmatprep.subr.bf16.mxu0 0
        %808 = vmatpush2.bf16.msra.mxu0 0
        %809 = vmatprep.subr.bf16.mxu0 0
        %810 = vmatpush2.bf16.msra.mxu0 0
        %811 = vmatprep.subr.bf16.mxu0 0
        %812 = vmatpush2.bf16.msra.mxu0 0
        %813 = vmatprep.subr.bf16.mxu0 0
        %814 = vmatpush2.bf16.msra.mxu0 0
        %815 = vmatprep.subr.bf16.mxu0 0
        %816 = vmatpush2.bf16.msra.mxu0 0
        %817 = vmatprep.subr.bf16.mxu0 0
        %818 = vmatpush2.bf16.msra.mxu0 0
        %819 = vmatprep.subr.bf16.mxu0 0
        %820 = vmatpush2.bf16.msra.mxu0 0
        %821 = vmatprep.mubr.bf16.mxu0 0
        %822 = vmatmul.mubr.bf16.gmra.mxu0 %v784
        %v823 = vpop.f32.mrf.mxu0
        %v824 = vadd.f32 0.0, %v823
        %v825 = vpop.f32.mrf.mxu0
        %v826 = vpop.f32.mrf.mxu0
        %v827 = vadd.f32 0.0, %v826
        %v828 = vpop.f32.mrf.mxu0
        %829 = vmatprep.mubr.bf16.mxu0 0
        %830 = vmatmul.mubr.bf16.gmra.mxu0 %v787
        %v831 = vpop.f32.mrf.mxu0
        %v832 = vadd.f32 0.0, %v831
        %v833 = vpop.f32.mrf.mxu0
        %v834 = vpop.f32.mrf.mxu0
        %v835 = vadd.f32 0.0, %v834
        %v836 = vpop.f32.mrf.mxu0
        %837 = vdwg.mxu0
        %v838 = vpack.c.bf16 %v827, %v824
        %v839 = vpack.c.bf16 %v835, %v832
        %v842 = vunpack.c.l.b16 %v838
        %v843 = vunpack.c.h.b16 %v838
        %v844 = vunpack.c.l.b16 %v839
        %v845 = vunpack.c.h.b16 %v839
        %v846 = vpack.c.b16 %v842, %v842
        %v847 = vpack.c.b16 %v843, %v843
        %v848 = vpack.c.b16 %v844, %v844
        %v849 = vpack.c.b16 %v845, %v845
        %s854 = scalar_lea.vmem %s220, 48
        %855 = vst.msk [vmem:[%s854] sm:$0xf] %vm377, %v846
        %856 = vst.msk [vmem:[%s854 + $0x4] sm:$0xf] %vm377, %v847
        %857 = vst.msk [vmem:[%s854 + $0x8] sm:$0xf] %vm377, %v848
        %858 = vst.msk [vmem:[%s854 + $0xc] sm:$0xf] %vm377, %v849
        %s859 = smul.u32 4, %s22
        %p860 = scmp.lt.s32.totalorder %s21, 1
        %s861 = scalar_select %p860, %s21, 1
        %p862 = scmp.lt.s32.totalorder %s859, 3
        %s863 = scalar_select %p862, %s859, 3
        %s864 = smul.addr %s863, 4
        %s865 = smul.addr %s861, 16
        %s866 = sadd.s32 %s864, %s865
        %s867 = smul.addr %s866, 4
        %s868 = scalar_lea.vmem %s3, %s867
        // Predicated region
        $region37: #{up_conv_forward.3} parent=31 // pred_check
          %p869 = pneg %p119
        $region38: #{up_conv_forward.3} parent=31 // pred_check_branch
          %871 = sbr.rel (%p869) target = $region40
        $region39: #{up_conv_forward.3} parent=31 // pred_region
          %s872 = smul.u32 4, %s22
        $region40: #{up_conv_forward.3} parent=31 // pred_fallthru
          _
      $region32: #{up_conv_forward.3} parent=5 // pred_fallthru
        _
      %p873 = scmp.le.s32.totalorder 2, %s12
      // Predicated region
      $region41: #{up_conv_forward.3} parent=5 // pred_check
        %p874 = pneg %p873
      $region42: #{up_conv_forward.3} parent=5 // pred_check_branch
        %876 = sbr.rel (%p874) target = $region44
      $region43: #{up_conv_forward.3} parent=5 // pred_region
        %s877 = ssub.s32 %s12, 2
        // Predicated region
        $region45: #{up_conv_forward.3} parent=43 // pred_check
          %p878 = pneg %p125
        $region46: #{up_conv_forward.3} parent=43 // pred_check_branch
          %880 = sbr.rel (%p878) target = $region48
        $region47: #{up_conv_forward.3} parent=43 // pred_region
          %s881 = smul.u32 4, %s24
          %p882 = scmp.lt.s32.totalorder %s23, 1
          %s883 = scalar_select %p882, %s23, 1
          %p884 = scmp.lt.s32.totalorder %s881, 3
          %s885 = scalar_select %p884, %s881, 3
          %s886 = smul.addr %s885, 4
          %s887 = smul.addr %s883, 16
          %s888 = sadd.s32 %s886, %s887
          %s889 = smul.addr %s888, 4
          %s890 = scalar_lea.vmem %s3, %s889
        $region48: #{up_conv_forward.3} parent=43 // pred_fallthru
          _
      $region44: #{up_conv_forward.3} parent=5 // pred_fallthru
        _
    $region6: #{up_conv_forward.3} parent=1 // loop_footer
      %s16 = sadd.s32 1, %s12
    $region7: #{up_conv_forward.3} parent=1 // loop_footer_branch
      %11 = sbr.rel target = $region3
    $region8: #{up_conv_forward.3} parent=1 // loop_exit
      _
    %891 = vsyncpa [#allocation3], 1
    %s892 = scalar_lea.sflag [#allocation3], 1
    %893 = vsyncpa %s892, 1

// kernel: up_conv_forward.4
$region0: #{up_conv_forward.4}
  #allocation0 [shape = 'u32[]', space=smem, size = 0x4, offset = 0x4, fixed_abs, tag = 'smem constant byte address 0x4 - core index']
  #allocation1 [shape = 'u32[144,128]{1,0:T(1,128)}', space=vmem, size = 0x12000, scoped, tag = 'internal scratch']
  #allocation2 [shape = 'bf16[4,1488]{1,0:T(4,128)(2,1)}', space=vmem, size = 0x3000, scoped, tag = 'scratch operand']
  %s0 = inlined_call_operand.vmem [shape: bf16[9,8,4], index: 0, kind: input, shape index: {}]
  %s1 = inlined_call_operand.vmem [shape: f32[1,1280], index: 1, kind: input, shape index: {}]
  %s2 = inlined_call_operand.vmem [shape: bf16[2,4,1280], index: 2, kind: input, shape index: {}]
  %s3 = inlined_call_operand.vmem [shape: bf16[2,4,32,40], index: 3, kind: input, shape index: {}, may-alias: {3,4}]
  %s4 = inlined_call_operand.vmem [shape: bf16[2,4,32,40], index: 4, kind: input, shape index: {}, may-alias: {3,4}]
  %s5 = inlined_call_operand.vmem [shape: f32[2,8,1280], index: 5, kind: output, shape index: {0}]
  %s6 = inlined_call_operand.vmem [shape: f32[2,1,8,2], index: 6, kind: output, shape index: {1}]
  %7 = xla_tuple %s5, %s6
  %s8 = sld [smem:[#allocation0]]
  $region143: #{up_conv_forward.4} parent=0
    _
  %s10 = ssub.s32 1, %s8
  %s11 = scalar_select 0, %s10, %s8
  $region1: #{up_conv_forward.4} parent=0
    #allocation3 [shape = 'u8[16384]{0}', space=vmem, size = 0x4000, scoped, tag = 'input window, operand 3']
    #allocation4 [shape = 'u8[16384]{0}', space=vmem, size = 0x4000, scoped, tag = 'input window, operand 4']
    loop: start=0, step=1, limit=4
    $region2: #{up_conv_forward.4} parent=1 // loop_pre_header
      _
    $region3: #{up_conv_forward.4} parent=1 // loop_header
      %s13 = sphi 0, %s17
      %p14 = scmp.ge.s32.totalorder %s13, 4
      %s20 = sphi 0, %s32
      %s21 = sphi 0, %s28
      %s22 = sphi 0, %s20
      %s23 = sphi 0, %s21
      %s24 = sphi 0, %s22
      %s25 = sphi 0, %s23
      %s33 = sphi 0, %s33
      %s35 = sphi 0, %s33
      %s36 = sphi 0, %s35
      %s50 = sphi 0, %s36
      %s54 = sphi 0, %s54
      %s56 = sphi 0, %s54
      %s57 = sphi 0, %s56
      %s71 = sphi 0, %s57
      %s79 = sphi 0, %s81
      %s82 = sphi 0, %s79
      %s83 = sphi 0, %s82
      %s99 = sphi 0, %s83
      %s115 = sphi 0, %s117
      %s118 = sphi 0, %s115
      %s119 = sphi 0, %s118
      %s135 = sphi 0, %s119
      %s151 = sphi 0, %s153
      %s154 = sphi 0, %s151
      %s155 = sphi 0, %s154
      %s171 = sphi 0, %s155
      %s179 = sphi 0, %s181
      %s182 = sphi 0, %s179
      %s183 = sphi 0, %s182
      %s199 = sphi 0, %s183
      %s207 = sphi 0, %s209
      %s210 = sphi 0, %s207
      %s211 = sphi 0, %s210
      %s227 = sphi 0, %s211
    $region4: #{up_conv_forward.4} parent=1 // loop_header_branch
      %16 = sbr.rel (%p14) target = $region8
    $region5: #{up_conv_forward.4} parent=1 // loop_body
      %s18 = ssub.s32 %s13, 1
      %s19 = ssub.s32 %s13, 2
      %s26 = sadd.s32 1, %s21
      %p27 = scmp.ge.s32.totalorder %s26, 1
      %s28 = scalar_select %p27, 0, %s26
      %s29 = sadd.s32 1, %s20
      %s30 = scalar_select %p27, %s29, %s20
      %p31 = scmp.ge.s32.totalorder %s30, 2
      %s32 = scalar_select %p31, 0, %s30
      %s34 = sadd.s32 %s33, 1
      %p37 = scmp.eq.s32.totalorder %s13, 1
      %p38 = scmp.ne.s32.totalorder %s33, %s35
      %p39 = scmp.eq.s32.totalorder %s13, 0
      %p40 = por %p38, %p39
      %p41 = scmp.ne.s32.totalorder %s33, %s35
      %p42 = scmp.eq.s32.totalorder %s18, 1
      %p43 = por %p41, %p42
      %p44 = scmp.ne.s32.totalorder %s35, %s36
      %p45 = scmp.eq.s32.totalorder %s18, 0
      %p46 = por %p44, %p45
      %p47 = scmp.ne.s32.totalorder %s35, %s36
      %p48 = scmp.eq.s32.totalorder %s19, 1
      %p49 = por %p47, %p48
      %p51 = scmp.ne.s32.totalorder %s36, %s50
      %p52 = scmp.eq.s32.totalorder %s19, 0
      %p53 = por %p51, %p52
      %s55 = sadd.s32 %s54, 1
      %p58 = scmp.eq.s32.totalorder %s13, 1
      %p59 = scmp.ne.s32.totalorder %s54, %s56
      %p60 = scmp.eq.s32.totalorder %s13, 0
      %p61 = por %p59, %p60
      %p62 = scmp.ne.s32.totalorder %s54, %s56
      %p63 = scmp.eq.s32.totalorder %s18, 1
      %p64 = por %p62, %p63
      %p65 = scmp.ne.s32.totalorder %s56, %s57
      %p66 = scmp.eq.s32.totalorder %s18, 0
      %p67 = por %p65, %p66
      %p68 = scmp.ne.s32.totalorder %s56, %s57
      %p69 = scmp.eq.s32.totalorder %s19, 1
      %p70 = por %p68, %p69
      %p72 = scmp.ne.s32.totalorder %s57, %s71
      %p73 = scmp.eq.s32.totalorder %s19, 0
      %p74 = por %p72, %p73
      %s75 = ssub.s32 %s20, %s32
      %s76 = ssub.s32 %s21, %s28
      %s77 = sor.u32 %s75, %s76
      %p78 = scmp.eq.s32.totalorder %s77, 0
      %s80 = sadd.s32 %s79, 1
      %s81 = scalar_select %p78, %s79, %s80
      %p84 = pneg %p78
      %p85 = scmp.eq.s32.totalorder %s13, 1
      %p86 = por %p84, %p85
      %p87 = scmp.ne.s32.totalorder %s79, %s82
      %p88 = scmp.eq.s32.totalorder %s13, 0
      %p89 = por %p87, %p88
      %p90 = scmp.ne.s32.totalorder %s79, %s82
      %p91 = scmp.eq.s32.totalorder %s18, 1
      %p92 = por %p90, %p91
      %p93 = scmp.ne.s32.totalorder %s82, %s83
      %p94 = scmp.eq.s32.totalorder %s18, 0
      %p95 = por %p93, %p94
      %p96 = scmp.ne.s32.totalorder %s82, %s83
      %p97 = scmp.eq.s32.totalorder %s19, 1
      %p98 = por %p96, %p97
      %p100 = scmp.ne.s32.totalorder %s83, %s99
      %p101 = scmp.eq.s32.totalorder %s19, 0
      %p102 = por %p100, %p101
      %s103 = smul.u32 %s21, 4
      %s104 = ssub.s32 %s103, 1
      %p105 = scmp.gt.s32.totalorder %s104, 0
      %s106 = scalar_select %p105, %s104, 0
      %s107 = smul.u32 %s28, 4
      %s108 = ssub.s32 %s107, 1
      %p109 = scmp.gt.s32.totalorder %s108, 0
      %s110 = scalar_select %p109, %s108, 0
      %s111 = ssub.s32 %s20, %s32
      %s112 = ssub.s32 %s106, %s110
      %s113 = sor.u32 %s111, %s112
      %p114 = scmp.eq.s32.totalorder %s113, 0
      %s116 = sadd.s32 %s115, 1
      %s117 = scalar_select %p114, %s115, %s116
      %p120 = pneg %p114
      %p121 = scmp.eq.s32.totalorder %s13, 1
      %p122 = por %p120, %p121
      %p123 = scmp.ne.s32.totalorder %s115, %s118
      %p124 = scmp.eq.s32.totalorder %s13, 0
      %p125 = por %p123, %p124
      %p126 = scmp.ne.s32.totalorder %s115, %s118
      %p127 = scmp.eq.s32.totalorder %s18, 1
      %p128 = por %p126, %p127
      %p129 = scmp.ne.s32.totalorder %s118, %s119
      %p130 = scmp.eq.s32.totalorder %s18, 0
      %p131 = por %p129, %p130
      %p132 = scmp.ne.s32.totalorder %s118, %s119
      %p133 = scmp.eq.s32.totalorder %s19, 1
      %p134 = por %p132, %p133
      %p136 = scmp.ne.s32.totalorder %s119, %s135
      %p137 = scmp.eq.s32.totalorder %s19, 0
      %p138 = por %p136, %p137
      %s139 = sadd.s32 %s21, 1
      %s140 = smul.u32 %s139, 4
      %p141 = scmp.lt.s32.totalorder %s140, 3
      %s142 = scalar_select %p141, %s140, 3
      %s143 = sadd.s32 %s28, 1
      %s144 = smul.u32 %s143, 4
      %p145 = scmp.lt.s32.totalorder %s144, 3
      %s146 = scalar_select %p145, %s144, 3
      %s147 = ssub.s32 %s20, %s32
      %s148 = ssub.s32 %s142, %s146
      %s149 = sor.u32 %s147, %s148
      %p150 = scmp.eq.s32.totalorder %s149, 0
      %s152 = sadd.s32 %s151, 1
      %s153 = scalar_select %p150, %s151, %s152
      %p156 = pneg %p150
      %p157 = scmp.eq.s32.totalorder %s13, 1
      %p158 = por %p156, %p157
      %p159 = scmp.ne.s32.totalorder %s151, %s154
      %p160 = scmp.eq.s32.totalorder %s13, 0
      %p161 = por %p159, %p160
      %p162 = scmp.ne.s32.totalorder %s151, %s154
      %p163 = scmp.eq.s32.totalorder %s18, 1
      %p164 = por %p162, %p163
      %p165 = scmp.ne.s32.totalorder %s154, %s155
      %p166 = scmp.eq.s32.totalorder %s18, 0
      %p167 = por %p165, %p166
      %p168 = scmp.ne.s32.totalorder %s154, %s155
      %p169 = scmp.eq.s32.totalorder %s19, 1
      %p170 = por %p168, %p169
      %p172 = scmp.ne.s32.totalorder %s155, %s171
      %p173 = scmp.eq.s32.totalorder %s19, 0
      %p174 = por %p172, %p173
      %s175 = ssub.s32 %s20, %s32
      %s176 = ssub.s32 %s21, %s28
      %s177 = sor.u32 %s175, %s176
      %p178 = scmp.eq.s32.totalorder %s177, 0
      %s180 = sadd.s32 %s179, 1
      %s181 = scalar_select %p178, %s179, %s180
      %p184 = pneg %p178
      %p185 = scmp.eq.s32.totalorder %s13, 1
      %p186 = por %p184, %p185
      %p187 = scmp.ne.s32.totalorder %s179, %s182
      %p188 = scmp.eq.s32.totalorder %s13, 0
      %p189 = por %p187, %p188
      %p190 = scmp.ne.s32.totalorder %s179, %s182
      %p191 = scmp.eq.s32.totalorder %s18, 1
      %p192 = por %p190, %p191
      %p193 = scmp.ne.s32.totalorder %s182, %s183
      %p194 = scmp.eq.s32.totalorder %s18, 0
      %p195 = por %p193, %p194
      %p196 = scmp.ne.s32.totalorder %s182, %s183
      %p197 = scmp.eq.s32.totalorder %s19, 1
      %p198 = por %p196, %p197
      %p200 = scmp.ne.s32.totalorder %s183, %s199
      %p201 = scmp.eq.s32.totalorder %s19, 0
      %p202 = por %p200, %p201
      %s203 = ssub.s32 %s20, %s32
      %s204 = ssub.s32 %s21, %s28
      %s205 = sor.u32 %s203, %s204
      %p206 = scmp.eq.s32.totalorder %s205, 0
      %s208 = sadd.s32 %s207, 1
      %s209 = scalar_select %p206, %s207, %s208
      %p212 = pneg %p206
      %p213 = scmp.eq.s32.totalorder %s13, 1
      %p214 = por %p212, %p213
      %p215 = scmp.ne.s32.totalorder %s207, %s210
      %p216 = scmp.eq.s32.totalorder %s13, 0
      %p217 = por %p215, %p216
      %p218 = scmp.ne.s32.totalorder %s207, %s210
      %p219 = scmp.eq.s32.totalorder %s18, 1
      %p220 = por %p218, %p219
      %p221 = scmp.ne.s32.totalorder %s210, %s211
      %p222 = scmp.eq.s32.totalorder %s18, 0
      %p223 = por %p221, %p222
      %p224 = scmp.ne.s32.totalorder %s210, %s211
      %p225 = scmp.eq.s32.totalorder %s19, 1
      %p226 = por %p224, %p225
      %p228 = scmp.ne.s32.totalorder %s211, %s227
      %p229 = scmp.eq.s32.totalorder %s19, 0
      %p230 = por %p228, %p229
      %p231 = scmp.le.s32.totalorder 1, %s13
      %p232 = scmp.lt.s32.totalorder %s13, 3
      %p233 = pnand %p231, %p232
      %p234 = pneg %p233
      // Predicated region
      $region9: #{up_conv_forward.4} parent=5 // pred_check
        _
      $region10: #{up_conv_forward.4} parent=5 // pred_check_branch
        %236 = sbr.rel (%p233) target = $region12
      $region11: #{up_conv_forward.4} parent=5 // pred_region
        %s237 = ssub.s32 %s13, 1
        // Predicated region
        $region13: #{up_conv_forward.4} parent=11 // pred_check
          %p238 = pneg %p46
        $region14: #{up_conv_forward.4} parent=11 // pred_check_branch
          %240 = sbr.rel (%p238) target = $region16
        $region15: #{up_conv_forward.4} parent=11 // pred_region
          _
        $region16: #{up_conv_forward.4} parent=11 // pred_fallthru
          _
        // Predicated region
        $region17: #{up_conv_forward.4} parent=11 // pred_check
          %p241 = pneg %p67
        $region18: #{up_conv_forward.4} parent=11 // pred_check_branch
          %243 = sbr.rel (%p241) target = $region20
        $region19: #{up_conv_forward.4} parent=11 // pred_region
          _
        $region20: #{up_conv_forward.4} parent=11 // pred_fallthru
          _
      $region12: #{up_conv_forward.4} parent=5 // pred_fallthru
        _
      %p244 = scmp.lt.s32.totalorder %s13, 2
      // Predicated region
      $region21: #{up_conv_forward.4} parent=5 // pred_check
        %p245 = pneg %p244
      $region22: #{up_conv_forward.4} parent=5 // pred_check_branch
        %247 = sbr.rel (%p245) target = $region24
      $region23: #{up_conv_forward.4} parent=5 // pred_region
        // Predicated region
        $region25: #{up_conv_forward.4} parent=23 // pred_check
          %p248 = pneg %p89
        $region26: #{up_conv_forward.4} parent=23 // pred_check_branch
          %250 = sbr.rel (%p248) target = $region28
        $region27: #{up_conv_forward.4} parent=23 // pred_region
          %s251 = smul.u32 10, %s21
          %p252 = scmp.lt.s32.totalorder %s20, 1
          %s253 = scalar_select %p252, %s20, 1
          %p254 = scmp.lt.s32.totalorder %s251, 9
          %s255 = scalar_select %p254, %s251, 9
          %s256 = smul.addr %s253, 10
          %s257 = sadd.s32 %s255, %s256
          %s258 = smul.addr %s257, 2
          %s259 = scalar_lea.vmem %s2, %s258
          %s260 = smul.u32 10, %s21
        $region28: #{up_conv_forward.4} parent=23 // pred_fallthru
          _
        // Predicated region
        $region29: #{up_conv_forward.4} parent=23 // pred_check
          %p261 = pneg %p125
        $region30: #{up_conv_forward.4} parent=23 // pred_check_branch
          %263 = sbr.rel (%p261) target = $region32
        $region31: #{up_conv_forward.4} parent=23 // pred_region
          %s264 = sand.u32 %s115, 1
          %s265 = sand.u32 %s115, 1
          %s266 = smul.addr %s265, 16
          %s267 = scalar_lea.vmem [#allocation3], %s266
          %s268 = smul.u32 %s21, 4
          %s269 = ssub.s32 %s268, 1
          %p270 = scmp.gt.s32.totalorder %s269, 0
          %s271 = scalar_select %p270, %s269, 0
          %s272 = smul.addr %s20, 16
          %s273 = sadd.s32 %s271, %s272
          %s274 = smul.addr %s273, 4
          %s275 = scalar_lea.vmem %s3, %s274
          // Predicated region
          $region33: #{up_conv_forward.4} parent=31 // pred_check
            _
          $region34: #{up_conv_forward.4} parent=31 // pred_check_branch
            %277 = sbr.rel (0) target = $region36
          $region35: #{up_conv_forward.4} parent=31 // pred_region
            // Predicated region
            $region37: #{up_conv_forward.4} parent=35 // pred_check
              _
            $region38: #{up_conv_forward.4} parent=35 // pred_check_branch
              %279 = sbr.rel target = $region40
            $region39: #{up_conv_forward.4} parent=35 // pred_region
              // Predicated region
              $region52: #{up_conv_forward.4} parent=39 // pred_check
                _
              $region53: #{up_conv_forward.4} parent=39 // pred_check_branch
                %301 = sbr.rel (0) target = $region55
              $region54: #{up_conv_forward.4} parent=39 // pred_region
                loop: start=0, step=1, limit=1
                $region56: #{up_conv_forward.4} parent=54 // loop_pre_header
                  _
                $region57: #{up_conv_forward.4} parent=54 // loop_header
                  %s303 = sphi 0, %s307
                  %p304 = scmp.ge.s32.totalorder %s303, 1
                  %s308 = sphi %s275, %s275
                  %s309 = sphi %s267, %s267
                $region58: #{up_conv_forward.4} parent=54 // loop_header_branch
                  %306 = sbr.rel (%p304) target = $region62
                $region59: #{up_conv_forward.4} parent=54 // loop_body
                  _
                $region60: #{up_conv_forward.4} parent=54 // loop_footer
                  %s307 = sadd.s32 1, %s303
                $region61: #{up_conv_forward.4} parent=54 // loop_footer_branch
                  %302 = sbr.rel target = $region57
                $region62: #{up_conv_forward.4} parent=54 // loop_exit
                  _
                %s311 = ssub.s32 16, 1
                loop: start=0, step=1, limit=1
                $region63: #{up_conv_forward.4} parent=54 // loop_pre_header
                  _
                $region64: #{up_conv_forward.4} parent=54 // loop_header
                  %s313 = sphi 0, %s317
                  %p314 = scmp.ge.s32.totalorder %s313, 1
                  %s318 = sphi %s275, %s275
                  %s319 = sphi %s267, %s267
                $region65: #{up_conv_forward.4} parent=54 // loop_header_branch
                  %316 = sbr.rel (%p314) target = $region69
                $region66: #{up_conv_forward.4} parent=54 // loop_body
                  %v320 = vld [vmem:[%s318] sm:%s311]
                  %321 = vst [vmem:[%s319] sm:%s311] %v320
                  %v322 = vld [vmem:[%s318 + $0x10] sm:%s311]
                  %323 = vst [vmem:[%s319 + $0x4] sm:%s311] %v322
                  %v324 = vld [vmem:[%s318 + $0x20] sm:%s311]
                  %325 = vst [vmem:[%s319 + $0x8] sm:%s311] %v324
                  %v326 = vld [vmem:[%s318 + $0x30] sm:%s311]
                  %327 = vst [vmem:[%s319 + $0xc] sm:%s311] %v326
                $region67: #{up_conv_forward.4} parent=54 // loop_footer
                  %s317 = sadd.s32 1, %s313
                $region68: #{up_conv_forward.4} parent=54 // loop_footer_branch
                  %312 = sbr.rel target = $region64
                $region69: #{up_conv_forward.4} parent=54 // loop_exit
                  _
              $region55: #{up_conv_forward.4} parent=39 // pred_fallthru
                _
            $region40: #{up_conv_forward.4} parent=35 // pred_fallthru
              _
            // Predicated region
            $region41: #{up_conv_forward.4} parent=35 // pred_check
              _
            $region42: #{up_conv_forward.4} parent=35 // pred_check_branch
              %281 = sbr.rel (0) target = $region44
            $region43: #{up_conv_forward.4} parent=35 // pred_region
              %s283 = ssub.s32 16, 1
              loop: start=0, step=1, limit=1
              $region45: #{up_conv_forward.4} parent=43 // loop_pre_header
                _
              $region46: #{up_conv_forward.4} parent=43 // loop_header
                %s285 = sphi 0, %s289
                %p286 = scmp.ge.s32.totalorder %s285, 1
                %s290 = sphi %s275, %s275
                %s291 = sphi %s267, %s267
              $region47: #{up_conv_forward.4} parent=43 // loop_header_branch
                %288 = sbr.rel (%p286) target = $region51
              $region48: #{up_conv_forward.4} parent=43 // loop_body
                %v292 = vld [vmem:[%s290] sm:%s283]
                %293 = vst [vmem:[%s291] sm:%s283] %v292
                %v294 = vld [vmem:[%s290 + $0x10] sm:%s283]
                %295 = vst [vmem:[%s291 + $0x4] sm:%s283] %v294
                %v296 = vld [vmem:[%s290 + $0x20] sm:%s283]
                %297 = vst [vmem:[%s291 + $0x8] sm:%s283] %v296
                %v298 = vld [vmem:[%s290 + $0x30] sm:%s283]
                %299 = vst [vmem:[%s291 + $0xc] sm:%s283] %v298
              $region49: #{up_conv_forward.4} parent=43 // loop_footer
                %s289 = sadd.s32 1, %s285
              $region50: #{up_conv_forward.4} parent=43 // loop_footer_branch
                %284 = sbr.rel target = $region46
              $region51: #{up_conv_forward.4} parent=43 // loop_exit
                _
            $region44: #{up_conv_forward.4} parent=35 // pred_fallthru
              _
          $region36: #{up_conv_forward.4} parent=31 // pred_fallthru
            _
          %328 = vnop
        $region32: #{up_conv_forward.4} parent=23 // pred_fallthru
          _
        // Predicated region
        $region70: #{up_conv_forward.4} parent=23 // pred_check
          %p329 = pneg %p161
        $region71: #{up_conv_forward.4} parent=23 // pred_check_branch
          %331 = sbr.rel (%p329) target = $region73
        $region72: #{up_conv_forward.4} parent=23 // pred_region
          %s332 = sand.u32 %s151, 1
          %s333 = sand.u32 %s151, 1
          %s334 = smul.addr %s333, 16
          %s335 = scalar_lea.vmem [#allocation4], %s334
          %s336 = sadd.s32 %s21, 1
          %s337 = smul.u32 %s336, 4
          %p338 = scmp.lt.s32.totalorder %s337, 3
          %s339 = scalar_select %p338, %s337, 3
          %s340 = smul.addr %s20, 16
          %s341 = sadd.s32 %s339, %s340
          %s342 = smul.addr %s341, 4
          %s343 = scalar_lea.vmem %s4, %s342
          // Predicated region
          $region74: #{up_conv_forward.4} parent=72 // pred_check
            _
          $region75: #{up_conv_forward.4} parent=72 // pred_check_branch
            %345 = sbr.rel (0) target = $region77
          $region76: #{up_conv_forward.4} parent=72 // pred_region
            // Predicated region
            $region78: #{up_conv_forward.4} parent=76 // pred_check
              _
            $region79: #{up_conv_forward.4} parent=76 // pred_check_branch
              %347 = sbr.rel target = $region81
            $region80: #{up_conv_forward.4} parent=76 // pred_region
              // Predicated region
              $region93: #{up_conv_forward.4} parent=80 // pred_check
                _
              $region94: #{up_conv_forward.4} parent=80 // pred_check_branch
                %369 = sbr.rel (0) target = $region96
              $region95: #{up_conv_forward.4} parent=80 // pred_region
                loop: start=0, step=1, limit=1
                $region97: #{up_conv_forward.4} parent=95 // loop_pre_header
                  _
                $region98: #{up_conv_forward.4} parent=95 // loop_header
                  %s371 = sphi 0, %s375
                  %p372 = scmp.ge.s32.totalorder %s371, 1
                  %s376 = sphi %s343, %s343
                  %s377 = sphi %s335, %s335
                $region99: #{up_conv_forward.4} parent=95 // loop_header_branch
                  %374 = sbr.rel (%p372) target = $region103
                $region100: #{up_conv_forward.4} parent=95 // loop_body
                  _
                $region101: #{up_conv_forward.4} parent=95 // loop_footer
                  %s375 = sadd.s32 1, %s371
                $region102: #{up_conv_forward.4} parent=95 // loop_footer_branch
                  %370 = sbr.rel target = $region98
                $region103: #{up_conv_forward.4} parent=95 // loop_exit
                  _
                %s379 = ssub.s32 16, 1
                loop: start=0, step=1, limit=1
                $region104: #{up_conv_forward.4} parent=95 // loop_pre_header
                  _
                $region105: #{up_conv_forward.4} parent=95 // loop_header
                  %s381 = sphi 0, %s385
                  %p382 = scmp.ge.s32.totalorder %s381, 1
                  %s386 = sphi %s343, %s343
                  %s387 = sphi %s335, %s335
                $region106: #{up_conv_forward.4} parent=95 // loop_header_branch
                  %384 = sbr.rel (%p382) target = $region110
                $region107: #{up_conv_forward.4} parent=95 // loop_body
                  %v388 = vld [vmem:[%s386] sm:%s379]
                  %389 = vst [vmem:[%s387] sm:%s379] %v388
                  %v390 = vld [vmem:[%s386 + $0x10] sm:%s379]
                  %391 = vst [vmem:[%s387 + $0x4] sm:%s379] %v390
                  %v392 = vld [vmem:[%s386 + $0x20] sm:%s379]
                  %393 = vst [vmem:[%s387 + $0x8] sm:%s379] %v392
                  %v394 = vld [vmem:[%s386 + $0x30] sm:%s379]
                  %395 = vst [vmem:[%s387 + $0xc] sm:%s379] %v394
                $region108: #{up_conv_forward.4} parent=95 // loop_footer
                  %s385 = sadd.s32 1, %s381
                $region109: #{up_conv_forward.4} parent=95 // loop_footer_branch
                  %380 = sbr.rel target = $region105
                $region110: #{up_conv_forward.4} parent=95 // loop_exit
                  _
              $region96: #{up_conv_forward.4} parent=80 // pred_fallthru
                _
            $region81: #{up_conv_forward.4} parent=76 // pred_fallthru
              _
            // Predicated region
            $region82: #{up_conv_forward.4} parent=76 // pred_check
              _
            $region83: #{up_conv_forward.4} parent=76 // pred_check_branch
              %349 = sbr.rel (0) target = $region85
            $region84: #{up_conv_forward.4} parent=76 // pred_region
              %s351 = ssub.s32 16, 1
              loop: start=0, step=1, limit=1
              $region86: #{up_conv_forward.4} parent=84 // loop_pre_header
                _
              $region87: #{up_conv_forward.4} parent=84 // loop_header
                %s353 = sphi 0, %s357
                %p354 = scmp.ge.s32.totalorder %s353, 1
                %s358 = sphi %s343, %s343
                %s359 = sphi %s335, %s335
              $region88: #{up_conv_forward.4} parent=84 // loop_header_branch
                %356 = sbr.rel (%p354) target = $region92
              $region89: #{up_conv_forward.4} parent=84 // loop_body
                %v360 = vld [vmem:[%s358] sm:%s351]
                %361 = vst [vmem:[%s359] sm:%s351] %v360
                %v362 = vld [vmem:[%s358 + $0x10] sm:%s351]
                %363 = vst [vmem:[%s359 + $0x4] sm:%s351] %v362
                %v364 = vld [vmem:[%s358 + $0x20] sm:%s351]
                %365 = vst [vmem:[%s359 + $0x8] sm:%s351] %v364
                %v366 = vld [vmem:[%s358 + $0x30] sm:%s351]
                %367 = vst [vmem:[%s359 + $0xc] sm:%s351] %v366
              $region90: #{up_conv_forward.4} parent=84 // loop_footer
                %s357 = sadd.s32 1, %s353
              $region91: #{up_conv_forward.4} parent=84 // loop_footer_branch
                %352 = sbr.rel target = $region87
              $region92: #{up_conv_forward.4} parent=84 // loop_exit
                _
            $region85: #{up_conv_forward.4} parent=76 // pred_fallthru
              _
          $region77: #{up_conv_forward.4} parent=72 // pred_fallthru
            _
          %396 = vnop
        $region73: #{up_conv_forward.4} parent=23 // pred_fallthru
          _
      $region24: #{up_conv_forward.4} parent=5 // pred_fallthru
        _
      %p397 = scmp.le.s32.totalorder 1, %s13
      %p398 = scmp.lt.s32.totalorder %s13, 3
      %p399 = pnand %p397, %p398
      %p400 = pneg %p399
      // Predicated region
      $region111: #{up_conv_forward.4} parent=5 // pred_check
        _
      $region112: #{up_conv_forward.4} parent=5 // pred_check_branch
        %402 = sbr.rel (%p399) target = $region114
      $region113: #{up_conv_forward.4} parent=5 // pred_region
        %s403 = ssub.s32 %s13, 1
        %s404 = sand.u32 %s118, 1
        %s405 = sand.u32 %s118, 1
        %s406 = smul.addr %s405, 16
        %s407 = scalar_lea.vmem [#allocation3], %s406
        // Predicated region
        $region115: #{up_conv_forward.4} parent=113 // pred_check
          %p408 = pneg %p131
        $region116: #{up_conv_forward.4} parent=113 // pred_check_branch
          %410 = sbr.rel (%p408) target = $region118
        $region117: #{up_conv_forward.4} parent=113 // pred_region
          _
        $region118: #{up_conv_forward.4} parent=113 // pred_fallthru
          _
        %s411 = sand.u32 %s154, 1
        %s412 = sand.u32 %s154, 1
        %s413 = smul.addr %s412, 16
        %s414 = scalar_lea.vmem [#allocation4], %s413
        // Predicated region
        $region119: #{up_conv_forward.4} parent=113 // pred_check
          %p415 = pneg %p167
        $region120: #{up_conv_forward.4} parent=113 // pred_check_branch
          %417 = sbr.rel (%p415) target = $region122
        $region121: #{up_conv_forward.4} parent=113 // pred_region
          _
        $region122: #{up_conv_forward.4} parent=113 // pred_fallthru
          _
        %p418 = pneg %p46
        %p419 = pneg %p43
        %p420 = pneg %p67
        %p421 = pneg %p64
        %s422 = smul.u32 10, %s23
        %p423 = scmp.lt.s32.totalorder %s22, 1
        %s424 = scalar_select %p423, %s22, 1
        %p425 = scmp.lt.s32.totalorder %s422, 9
        %s426 = scalar_select %p425, %s422, 9
        %s427 = smul.addr %s424, 10
        %s428 = sadd.s32 %s426, %s427
        %s429 = smul.addr %s428, 2
        %s430 = scalar_lea.vmem %s2, %s429
        %p431 = pneg %p95
        %p432 = pneg %p92
        %s433 = sand.u32 %s118, 1
        %s434 = sand.u32 %s118, 1
        %s435 = smul.addr %s434, 16
        %s436 = scalar_lea.vmem [#allocation3], %s435
        %p437 = pneg %p131
        %p438 = pneg %p128
        %s439 = sand.u32 %s154, 1
        %s440 = sand.u32 %s154, 1
        %s441 = smul.addr %s440, 16
        %s442 = scalar_lea.vmem [#allocation4], %s441
        %p443 = pneg %p167
        %p444 = pneg %p164
        %p445 = pneg %p195
        %p446 = pneg %p192
        %s447 = smul.u32 10, %s23
        %p448 = scmp.lt.s32.totalorder %s22, 1
        %s449 = scalar_select %p448, %s22, 1
        %p450 = scmp.lt.s32.totalorder %s447, 9
        %s451 = scalar_select %p450, %s447, 9
        %s452 = smul.addr %s449, 10
        %s453 = sadd.s32 %s451, %s452
        %s454 = smul.addr %s453, 8
        %s455 = scalar_lea.vmem %s5, %s454
        %p456 = pneg %p223
        %p457 = pneg %p220
        %p458 = scmp.lt.s32.totalorder %s22, 1
        %s459 = scalar_select %p458, %s22, 1
        %p460 = scmp.lt.s32.totalorder %s23, 0
        %s461 = scalar_select %p460, %s23, 0
        %s462 = sadd.s32 %s461, %s459
        %s463 = smul.addr %s462, 8
        %s464 = scalar_lea.vmem %s6, %s463
        %s465 = smul.u32 10, %s23
        %p466 = scmp.lt.s32.totalorder %s22, 1
        %s467 = scalar_select %p466, %s22, 1
        %p468 = scmp.lt.s32.totalorder %s465, 9
        %s469 = scalar_select %p468, %s465, 9
        %s470 = smul.addr %s467, 10
        %s471 = sadd.s32 %s469, %s470
        %s472 = smul.addr %s471, 2
        %s473 = scalar_lea.vmem %s2, %s472
        %s474 = smul.u32 10, %s23
        %s475 = smul.u32 %s23, 4
        %s476 = ssub.s32 %s475, 1
        %p477 = scmp.gt.s32.totalorder %s476, 0
        %s478 = scalar_select %p477, %s476, 0
        %s479 = sadd.s32 %s23, 1
        %s480 = smul.u32 %s479, 4
        %p481 = scmp.lt.s32.totalorder %s480, 3
        %s482 = scalar_select %p481, %s480, 3
        %s483 = smul.u32 10, %s23
        %p484 = scmp.lt.s32.totalorder %s22, 1
        %s485 = scalar_select %p484, %s22, 1
        %p486 = scmp.lt.s32.totalorder %s483, 9
        %s487 = scalar_select %p486, %s483, 9
        %s488 = smul.addr %s485, 10
        %s489 = sadd.s32 %s487, %s488
        %s490 = smul.addr %s489, 8
        %s491 = scalar_lea.vmem %s5, %s490
        %s492 = smul.u32 10, %s23
        %p493 = scmp.lt.s32.totalorder %s22, 1
        %s494 = scalar_select %p493, %s22, 1
        %p495 = scmp.lt.s32.totalorder %s23, 0
        %s496 = scalar_select %p495, %s23, 0
        %s497 = sadd.s32 %s496, %s494
        %s498 = smul.addr %s497, 8
        %s499 = scalar_lea.vmem %s6, %s498
        %p501 = scmp.eq.s32.totalorder %s23, 0
        %v502 = vld [vmem:[%s407] sm:$0xf]
        %v503 = vld [vmem:[%s407 + $0x4] sm:$0xf]
        %v504 = vld [vmem:[%s407 + $0x8] sm:$0xf]
        %v505 = vld [vmem:[%s407 + $0xc] sm:$0xf]
        %s506 = scalar_select %p501, 1, 0
        %v507 = vstv %s506
        %vm508 = vcmp.eq.s32.totalorder %v507, 1
        %v509 = vsel %vm508, 0, %v502
        %v510 = vsel %vm508, 0, %v503
        %v511 = vsel %vm508, 0, %v504
        %v512 = vsel %vm508, 0, %v505
        %v513 = vld [vmem:[%s414] sm:$0xf]
        %v514 = vld [vmem:[%s414 + $0x4] sm:$0xf]
        %v515 = vld [vmem:[%s414 + $0x8] sm:$0xf]
        %v516 = vld [vmem:[%s414 + $0xc] sm:$0xf]
        %v517 = vsel %vm508, 0, %v513
        %v518 = vsel %vm508, 0, %v514
        %v519 = vsel %vm508, 0, %v515
        %v520 = vsel %vm508, 0, %v516
        %v526 = vunpack.c.l.s4 1983009808
        %v527 = vunpack.c.0.s8 %v526
        %v528 = vlaneseq
        %v529 = vshrl.u32 %v528, 7
        %v530 = vsub.s32 %v527, %v529
        %v531 = vrot.slane %v509, %v530
        %v532 = vcombine.high %v531, %v531
        %v534 = vunpack.c.l.s4 1983009808
        %v535 = vunpack.c.0.s8 %v534
        %v536 = vlaneseq
        %v537 = vshrl.u32 %v536, 7
        %v538 = vsub.s32 %v535, %v537
        %v539 = vrot.slane %v510, %v538
        %v540 = vcombine.high %v539, %v539
        %v542 = vunpack.c.l.s4 1983009808
        %v543 = vunpack.c.0.s8 %v542
        %v544 = vlaneseq
        %v545 = vshrl.u32 %v544, 7
        %v546 = vsub.s32 %v543, %v545
        %v547 = vrot.slane %v511, %v546
        %v548 = vcombine.high %v547, %v547
        %v550 = vunpack.c.l.s4 1983009808
        %v551 = vunpack.c.0.s8 %v550
        %v552 = vlaneseq
        %v553 = vshrl.u32 %v552, 7
        %v554 = vsub.s32 %v551, %v553
        %v555 = vrot.slane %v512, %v554
        %v556 = vcombine.high %v555, %v555
        %v558 = vunpack.c.l.s4 1983009808
        %v559 = vunpack.c.0.s8 %v558
        %v560 = vlaneseq
        %v561 = vshrl.u32 %v560, 7
        %v562 = vsub.s32 %v559, %v561
        %v563 = vrot.slane %v532, %v562
        %v565 = vunpack.c.l.s4 1983009808
        %v566 = vunpack.c.0.s8 %v565
        %v567 = vlaneseq
        %v568 = vshrl.u32 %v567, 7
        %v569 = vsub.s32 %v566, %v568
        %v570 = vrot.slane %v540, %v569
        %v572 = vunpack.c.l.s4 1983009808
        %v573 = vunpack.c.0.s8 %v572
        %v574 = vlaneseq
        %v575 = vshrl.u32 %v574, 7
        %v576 = vsub.s32 %v573, %v575
        %v577 = vrot.slane %v548, %v576
        %v579 = vunpack.c.l.s4 1983009808
        %v580 = vunpack.c.0.s8 %v579
        %v581 = vlaneseq
        %v582 = vshrl.u32 %v581, 7
        %v583 = vsub.s32 %v580, %v582
        %v584 = vrot.slane %v556, %v583
        %v585 = vunpack.c.l.b16 %v563
        %v586 = vunpack.c.l.b16 %v570
        %v587 = vunpack.c.l.b16 %v577
        %v588 = vunpack.c.l.b16 %v584
        %v589 = vrot.slane %v585, 3
        %v590 = vrot.slane %v586, 2
        %vm591 = vcmask 1041409
        %v592 = vsel %vm591, %v590, %v589
        %v593 = vrot.slane %v587, 1
        %vm594 = vcmask 1042434
        %v595 = vsel %vm594, %v593, %v592
        %vm596 = vcmask 1043459
        %v597 = vsel %vm596, %v588, %v595
        %v598 = vpack.c.b16 %v597, %v597
        %v600 = vunpack.c.l.s4 1983009808
        %v601 = vunpack.c.0.s8 %v600
        %v602 = vlaneseq
        %v603 = vshrl.u32 %v602, 7
        %v604 = vsub.s32 %v601, %v603
        %v605 = vrot.slane %v598, %v604
        %vm607 = vcmask 320512
        %608 = vst.msk [vmem:[#allocation2] sm:$0x3] %vm607, %v605
        %v609 = vld [vmem:[%s473] sm:$0xff]
        %v610 = vld [vmem:[%s473 + $0x8] sm:$0xff]
        %v611 = vld [vmem:[%s473 + $0x10] sm:$0xf]
        %615 = vrot.lane.b32.xlu0 %v609, 40
        %v616 = vpop.permute.xlu0 %615
        %617 = vrot.lane.b32.xlu0 %v610, 40
        %v618 = vpop.permute.xlu0 %617
        %619 = vrot.lane.b32.xlu0 %v611, 40
        %v620 = vpop.permute.xlu0 %619
        %v621 = vrot.slane %v616, 6
        %v622 = vrot.slane %v618, 6
        %v623 = vrot.slane %v620, 6
        %vm624 = vcmask 326656
        %v625 = vsel %vm624, %v621, %v616
        %vm626 = vcmask 1041408
        %v627 = vsel %vm626, %v621, %v622
        %v628 = vsel %vm624, %v627, %v618
        %v629 = vsel %vm626, %v622, %v623
        %v630 = vsel %vm624, %v629, %v620
        %vm634 = vcmask 1041728
        %vm635 = vcmask 1043458
        %vm636 = vmor %vm635, %vm634
        %vm637 = vcmask 1045508
        %vm638 = vmor %vm637, %vm636
        %vm639 = vcmask 1047558
        %vm640 = vmor %vm639, %vm638
        %641 = vst.msk [vmem:[#allocation2] sm:$0xff] %vm640, %v625
        %642 = vst [vmem:[#allocation2 + $0x8] sm:$0xff] %v628
        %vm643 = vcmask 1041408
        %vm644 = vmor %vm635, %vm643
        %vm645 = vcmask 324612
        %vm646 = vmor %vm645, %vm644
        %647 = vst.msk [vmem:[#allocation2 + $0x10] sm:$0x3f] %vm646, %v630
        %v653 = vunpack.c.l.s4 1983009808
        %v654 = vunpack.c.0.s8 %v653
        %v655 = vlaneseq
        %v656 = vshrl.u32 %v655, 7
        %v657 = vsub.s32 %v654, %v656
        %v658 = vrot.slane %v517, %v657
        %v660 = vunpack.c.l.s4 1983009808
        %v661 = vunpack.c.0.s8 %v660
        %v662 = vlaneseq
        %v663 = vshrl.u32 %v662, 7
        %v664 = vsub.s32 %v661, %v663
        %v665 = vrot.slane %v518, %v664
        %v667 = vunpack.c.l.s4 1983009808
        %v668 = vunpack.c.0.s8 %v667
        %v669 = vlaneseq
        %v670 = vshrl.u32 %v669, 7
        %v671 = vsub.s32 %v668, %v670
        %v672 = vrot.slane %v519, %v671
        %v674 = vunpack.c.l.s4 1983009808
        %v675 = vunpack.c.0.s8 %v674
        %v676 = vlaneseq
        %v677 = vshrl.u32 %v676, 7
        %v678 = vsub.s32 %v675, %v677
        %v679 = vrot.slane %v520, %v678
        %v681 = vunpack.c.l.s4 1983009808
        %v682 = vunpack.c.0.s8 %v681
        %v683 = vlaneseq
        %v684 = vshrl.u32 %v683, 7
        %v685 = vsub.s32 %v682, %v684
        %v686 = vrot.slane %v658, %v685
        %v688 = vunpack.c.l.s4 1983009808
        %v689 = vunpack.c.0.s8 %v688
        %v690 = vlaneseq
        %v691 = vshrl.u32 %v690, 7
        %v692 = vsub.s32 %v689, %v691
        %v693 = vrot.slane %v665, %v692
        %v695 = vunpack.c.l.s4 1983009808
        %v696 = vunpack.c.0.s8 %v695
        %v697 = vlaneseq
        %v698 = vshrl.u32 %v697, 7
        %v699 = vsub.s32 %v696, %v698
        %v700 = vrot.slane %v672, %v699
        %v702 = vunpack.c.l.s4 1983009808
        %v703 = vunpack.c.0.s8 %v702
        %v704 = vlaneseq
        %v705 = vshrl.u32 %v704, 7
        %v706 = vsub.s32 %v703, %v705
        %v707 = vrot.slane %v679, %v706
        %v708 = vunpack.c.l.b16 %v686
        %v709 = vunpack.c.l.b16 %v693
        %v710 = vunpack.c.l.b16 %v700
        %v711 = vunpack.c.l.b16 %v707
        %v712 = vrot.slane %v709, 7
        %v713 = vsel %vm591, %v712, %v708
        %v714 = vrot.slane %v710, 6
        %v715 = vsel %vm594, %v714, %v713
        %v716 = vrot.slane %v711, 5
        %v717 = vsel %vm596, %v716, %v715
        %v718 = vpack.c.b16 %v717, %v717
        %v720 = vunpack.c.l.s4 1983009808
        %v721 = vunpack.c.0.s8 %v720
        %v722 = vlaneseq
        %v723 = vshrl.u32 %v722, 7
        %v724 = vsub.s32 %v721, %v723
        %v725 = vrot.slane %v718, %v724
        %726 = vrot.lane.b32.xlu0 %v725, 40
        %v727 = vpop.permute.xlu0 %726
        %vm729 = vcmask 648512
        %730 = vst.msk [vmem:[#allocation2 + $0x14] sm:$0x3] %vm729, %v727
        %vm731 = vcmask 1042048
        %vm732 = vcmask 650242
        %vm733 = vmor %vm732, %vm731
        %734 = vst.msk [vmem:[#allocation2 + $0x14] sm:$0xf] %vm733, 0
        %v735 = vld [vmem:[%s0] sm:$0xf]
        %v736 = vld [vmem:[#allocation2] sm:$0xff]
        %v737 = vld [vmem:[#allocation2 + $0x8] sm:$0xff]
        %v738 = vld [vmem:[#allocation2 + $0x10] sm:$0xf]
        %s739 = scalar_lea.vmem %s0, 4
        %v740 = vld [vmem:[%s739] sm:$0xf]
        %v741 = vld [vmem:[#allocation2 + $0x10] sm:$0x3f]
        %v745 = vcombine.high %v736, %v736
        %v747 = vunpack.c.l.s4 1983009808
        %v748 = vunpack.c.0.s8 %v747
        %v749 = vlaneseq
        %v750 = vshrl.u32 %v749, 7
        %v751 = vsub.s32 %v748, %v750
        %v752 = vrot.slane %v736, %v751
        %v754 = vunpack.c.l.s4 1983009808
        %v755 = vunpack.c.0.s8 %v754
        %v756 = vlaneseq
        %v757 = vshrl.u32 %v756, 7
        %v758 = vsub.s32 %v755, %v757
        %v759 = vrot.slane %v745, %v758
        %v760 = vcombine.high %v752, %v752
        %v761 = vcombine.high %v759, %v759
        %v762 = vcombine.high %v737, %v737
        %v764 = vunpack.c.l.s4 1983009808
        %v765 = vunpack.c.0.s8 %v764
        %v766 = vlaneseq
        %v767 = vshrl.u32 %v766, 7
        %v768 = vsub.s32 %v765, %v767
        %v769 = vrot.slane %v737, %v768
        %v771 = vunpack.c.l.s4 1983009808
        %v772 = vunpack.c.0.s8 %v771
        %v773 = vlaneseq
        %v774 = vshrl.u32 %v773, 7
        %v775 = vsub.s32 %v772, %v774
        %v776 = vrot.slane %v762, %v775
        %v777 = vcombine.high %v769, %v769
        %v778 = vcombine.high %v776, %v776
        %v779 = vcombine.high %v741, %v741
        %v781 = vunpack.c.l.s4 1983009808
        %v782 = vunpack.c.0.s8 %v781
        %v783 = vlaneseq
        %v784 = vshrl.u32 %v783, 7
        %v785 = vsub.s32 %v782, %v784
        %v786 = vrot.slane %v741, %v785
        %v788 = vunpack.c.l.s4 1983009808
        %v789 = vunpack.c.0.s8 %v788
        %v790 = vlaneseq
        %v791 = vshrl.u32 %v790, 7
        %v792 = vsub.s32 %v789, %v791
        %v793 = vrot.slane %v779, %v792
        %v794 = vcombine.high %v786, %v786
        %795 = vrot.lane.b32.xlu0 %v752, 127
        %v796 = vpop.permute.xlu0 %795
        %797 = vrot.lane.b32.xlu0 %v760, 127
        %v798 = vpop.permute.xlu0 %797
        %799 = vrot.lane.b32.xlu0 %v759, 127
        %v800 = vpop.permute.xlu0 %799
        %801 = vrot.lane.b32.xlu0 %v761, 127
        %v802 = vpop.permute.xlu0 %801
        %803 = vrot.lane.b32.xlu0 %v769, 127
        %v804 = vpop.permute.xlu0 %803
        %805 = vrot.lane.b32.xlu0 %v777, 127
        %v806 = vpop.permute.xlu0 %805
        %807 = vrot.lane.b32.xlu0 %v776, 127
        %v808 = vpop.permute.xlu0 %807
        %809 = vrot.lane.b32.xlu0 %v778, 127
        %v810 = vpop.permute.xlu0 %809
        %811 = vrot.lane.b32.xlu0 %v786, 127
        %v812 = vpop.permute.xlu0 %811
        %813 = vrot.lane.b32.xlu0 %v794, 127
        %v814 = vpop.permute.xlu0 %813
        %815 = vrot.lane.b32.xlu0 %v793, 127
        %v816 = vpop.permute.xlu0 %815
        %vm817 = vcmask 1039360
        %v818 = vsel %vm817, %v796, %v798
        %v819 = vsel %vm817, %v798, %v800
        %v820 = vsel %vm817, %v800, %v802
        %v821 = vsel %vm817, %v802, %v804
        %v822 = vsel %vm817, %v804, %v806
        %v823 = vsel %vm817, %v806, %v808
        %v824 = vsel %vm817, %v808, %v810
        %v825 = vsel %vm817, %v810, %v812
        %v826 = vsel %vm817, %v812, %v814
        %v827 = vsel %vm817, %v814, %v816
        %vm828 = vcmask 31744
        %v830 = vsel %vm828, %v740, 0
        %v833 = vsel %vm643, %v818, 0
        %v836 = vsel %vm643, %v819, 0
        %v839 = vsel %vm643, %v820, 0
        %v842 = vsel %vm643, %v821, 0
        %v845 = vsel %vm643, %v822, 0
        %v848 = vsel %vm643, %v823, 0
        %v851 = vsel %vm643, %v824, 0
        %v854 = vsel %vm643, %v825, 0
        %v857 = vsel %vm643, %v826, 0
        %v860 = vsel %vm643, %v827, 0
        %862 = vmatprep.subr.bf16.mxu0 0
        %863 = vmatpush1.bf16.msra.mxu0 0
        %864 = vmatprep.subr.bf16.mxu0 0
        %865 = vmatpush1.bf16.msra.mxu0 0
        %866 = vmatprep.subr.bf16.mxu0 0
        %867 = vmatpush1.bf16.msra.mxu0 0
        %868 = vmatprep.subr.bf16.mxu0 0
        %869 = vmatpush1.bf16.msra.mxu0 0
        %870 = vmatprep.subr.bf16.mxu0 0
        %871 = vmatpush1.bf16.msra.mxu0 0
        %872 = vmatprep.subr.bf16.mxu0 0
        %873 = vmatpush1.bf16.msra.mxu0 0
        %874 = vmatprep.subr.bf16.mxu0 0
        %875 = vmatpush1.bf16.msra.mxu0 0
        %876 = vmatprep.subr.bf16.mxu0 %v836
        %877 = vmatpush1.bf16.msra.mxu0 %v833
        %878 = vmatprep.subr.bf16.mxu0 0
        %879 = vmatpush2.bf16.msra.mxu0 0
        %880 = vmatprep.subr.bf16.mxu0 0
        %881 = vmatpush2.bf16.msra.mxu0 0
        %882 = vmatprep.subr.bf16.mxu0 0
        %883 = vmatpush2.bf16.msra.mxu0 0
        %884 = vmatprep.subr.bf16.mxu0 0
        %885 = vmatpush2.bf16.msra.mxu0 0
        %886 = vmatprep.subr.bf16.mxu0 0
        %887 = vmatpush2.bf16.msra.mxu0 0
        %888 = vmatprep.subr.bf16.mxu0 0
        %889 = vmatpush2.bf16.msra.mxu0 0
        %890 = vmatprep.subr.bf16.mxu0 0
        %891 = vmatpush2.bf16.msra.mxu0 0
        %892 = vmatprep.subr.bf16.mxu0 0
        %893 = vmatpush2.bf16.msra.mxu0 0
        %894 = vmatprep.mubr.bf16.mxu0 0
        %895 = vmatmul.mubr.bf16.gmra.mxu0 %v830
        %v896 = vpop.f32.mrf.mxu0
        %v897 = vadd.f32 0.0, %v896
        %v898 = vpop.f32.mrf.mxu0
        %v899 = vadd.f32 0.0, %v898
        %v900 = vpop.f32.mrf.mxu0
        %v901 = vpop.f32.mrf.mxu0
        %902 = vdwg.mxu0
        %903 = vmatprep.subr.bf16.mxu0 0
        %904 = vmatpush1.bf16.msra.mxu0 0
        %905 = vmatprep.subr.bf16.mxu0 0
        %906 = vmatpush1.bf16.msra.mxu0 0
        %907 = vmatprep.subr.bf16.mxu0 0
        %908 = vmatpush1.bf16.msra.mxu0 0
        %909 = vmatprep.subr.bf16.mxu0 0
        %910 = vmatpush1.bf16.msra.mxu0 0
        %911 = vmatprep.subr.bf16.mxu0 0
        %912 = vmatpush1.bf16.msra.mxu0 0
        %913 = vmatprep.subr.bf16.mxu0 0
        %914 = vmatpush1.bf16.msra.mxu0 0
        %915 = vmatprep.subr.bf16.mxu0 0
        %916 = vmatpush1.bf16.msra.mxu0 0
        %917 = vmatprep.subr.bf16.mxu0 %v842
        %918 = vmatpush1.bf16.msra.mxu0 %v839
        %919 = vmatprep.subr.bf16.mxu0 0
        %920 = vmatpush2.bf16.msra.mxu0 0
        %921 = vmatprep.subr.bf16.mxu0 0
        %922 = vmatpush2.bf16.msra.mxu0 0
        %923 = vmatprep.subr.bf16.mxu0 0
        %924 = vmatpush2.bf16.msra.mxu0 0
        %925 = vmatprep.subr.bf16.mxu0 0
        %926 = vmatpush2.bf16.msra.mxu0 0
        %927 = vmatprep.subr.bf16.mxu0 0
        %928 = vmatpush2.bf16.msra.mxu0 0
        %929 = vmatprep.subr.bf16.mxu0 0
        %930 = vmatpush2.bf16.msra.mxu0 0
        %931 = vmatprep.subr.bf16.mxu0 0
        %932 = vmatpush2.bf16.msra.mxu0 0
        %933 = vmatprep.subr.bf16.mxu0 0
        %934 = vmatpush2.bf16.msra.mxu0 0
        %935 = vmatprep.mubr.bf16.mxu0 0
        %936 = vmatmul.mubr.bf16.gmra.mxu0 %v830
        %v937 = vpop.f32.mrf.mxu0
        %v938 = vadd.f32 0.0, %v937
        %v939 = vpop.f32.mrf.mxu0
        %v940 = vadd.f32 0.0, %v939
        %v941 = vpop.f32.mrf.mxu0
        %v942 = vpop.f32.mrf.mxu0
        %943 = vdwg.mxu0
        %944 = vmatprep.subr.bf16.mxu0 0
        %945 = vmatpush1.bf16.msra.mxu0 0
        %946 = vmatprep.subr.bf16.mxu0 0
        %947 = vmatpush1.bf16.msra.mxu0 0
        %948 = vmatprep.subr.bf16.mxu0 0
        %949 = vmatpush1.bf16.msra.mxu0 0
        %950 = vmatprep.subr.bf16.mxu0 0
        %951 = vmatpush1.bf16.msra.mxu0 0
        %952 = vmatprep.subr.bf16.mxu0 0
        %953 = vmatpush1.bf16.msra.mxu0 0
        %954 = vmatprep.subr.bf16.mxu0 0
        %955 = vmatpush1.bf16.msra.mxu0 0
        %956 = vmatprep.subr.bf16.mxu0 0
        %957 = vmatpush1.bf16.msra.mxu0 0
        %958 = vmatprep.subr.bf16.mxu0 %v848
        %959 = vmatpush1.bf16.msra.mxu0 %v845
        %960 = vmatprep.subr.bf16.mxu0 0
        %961 = vmatpush2.bf16.msra.mxu0 0
        %962 = vmatprep.subr.bf16.mxu0 0
        %963 = vmatpush2.bf16.msra.mxu0 0
        %964 = vmatprep.subr.bf16.mxu0 0
        %965 = vmatpush2.bf16.msra.mxu0 0
        %966 = vmatprep.subr.bf16.mxu0 0
        %967 = vmatpush2.bf16.msra.mxu0 0
        %968 = vmatprep.subr.bf16.mxu0 0
        %969 = vmatpush2.bf16.msra.mxu0 0
        %970 = vmatprep.subr.bf16.mxu0 0
        %971 = vmatpush2.bf16.msra.mxu0 0
        %972 = vmatprep.subr.bf16.mxu0 0
        %973 = vmatpush2.bf16.msra.mxu0 0
        %974 = vmatprep.subr.bf16.mxu0 0
        %975 = vmatpush2.bf16.msra.mxu0 0
        %976 = vmatprep.mubr.bf16.mxu0 0
        %977 = vmatmul.mubr.bf16.gmra.mxu0 %v830
        %v978 = vpop.f32.mrf.mxu0
        %v979 = vadd.f32 0.0, %v978
        %v980 = vpop.f32.mrf.mxu0
        %v981 = vadd.f32 0.0, %v980
        %v982 = vpop.f32.mrf.mxu0
        %v983 = vpop.f32.mrf.mxu0
        %984 = vdwg.mxu0
        %985 = vmatprep.subr.bf16.mxu0 0
        %986 = vmatpush1.bf16.msra.mxu0 0
        %987 = vmatprep.subr.bf16.mxu0 0
        %988 = vmatpush1.bf16.msra.mxu0 0
        %989 = vmatprep.subr.bf16.mxu0 0
        %990 = vmatpush1.bf16.msra.mxu0 0
        %991 = vmatprep.subr.bf16.mxu0 0
        %992 = vmatpush1.bf16.msra.mxu0 0
        %993 = vmatprep.subr.bf16.mxu0 0
        %994 = vmatpush1.bf16.msra.mxu0 0
        %995 = vmatprep.subr.bf16.mxu0 0
        %996 = vmatpush1.bf16.msra.mxu0 0
        %997 = vmatprep.subr.bf16.mxu0 0
        %998 = vmatpush1.bf16.msra.mxu0 0
        %999 = vmatprep.subr.bf16.mxu0 %v854
        %1000 = vmatpush1.bf16.msra.mxu0 %v851
        %1001 = vmatprep.subr.bf16.mxu0 0
        %1002 = vmatpush2.bf16.msra.mxu0 0
        %1003 = vmatprep.subr.bf16.mxu0 0
        %1004 = vmatpush2.bf16.msra.mxu0 0
        %1005 = vmatprep.subr.bf16.mxu0 0
        %1006 = vmatpush2.bf16.msra.mxu0 0
        %1007 = vmatprep.subr.bf16.mxu0 0
        %1008 = vmatpush2.bf16.msra.mxu0 0
        %1009 = vmatprep.subr.bf16.mxu0 0
        %1010 = vmatpush2.bf16.msra.mxu0 0
        %1011 = vmatprep.subr.bf16.mxu0 0
        %1012 = vmatpush2.bf16.msra.mxu0 0
        %1013 = vmatprep.subr.bf16.mxu0 0
        %1014 = vmatpush2.bf16.msra.mxu0 0
        %1015 = vmatprep.subr.bf16.mxu0 0
        %1016 = vmatpush2.bf16.msra.mxu0 0
        %1017 = vmatprep.mubr.bf16.mxu0 0
        %1018 = vmatmul.mubr.bf16.gmra.mxu0 %v830
        %v1019 = vpop.f32.mrf.mxu0
        %v1020 = vadd.f32 0.0, %v1019
        %v1021 = vpop.f32.mrf.mxu0
        %v1022 = vadd.f32 0.0, %v1021
        %v1023 = vpop.f32.mrf.mxu0
        %v1024 = vpop.f32.mrf.mxu0
        %1025 = vdwg.mxu0
        %1026 = vmatprep.subr.bf16.mxu0 0
        %1027 = vmatpush1.bf16.msra.mxu0 0
        %1028 = vmatprep.subr.bf16.mxu0 0
        %1029 = vmatpush1.bf16.msra.mxu0 0
        %1030 = vmatprep.subr.bf16.mxu0 0
        %1031 = vmatpush1.bf16.msra.mxu0 0
        %1032 = vmatprep.subr.bf16.mxu0 0
        %1033 = vmatpush1.bf16.msra.mxu0 0
        %1034 = vmatprep.subr.bf16.mxu0 0
        %1035 = vmatpush1.bf16.msra.mxu0 0
        %1036 = vmatprep.subr.bf16.mxu0 0
        %1037 = vmatpush1.bf16.msra.mxu0 0
        %1038 = vmatprep.subr.bf16.mxu0 0
        %1039 = vmatpush1.bf16.msra.mxu0 0
        %1040 = vmatprep.subr.bf16.mxu0 %v860
        %1041 = vmatpush1.bf16.msra.mxu0 %v857
        %1042 = vmatprep.subr.bf16.mxu0 0
        %1043 = vmatpush2.bf16.msra.mxu0 0
        %1044 = vmatprep.subr.bf16.mxu0 0
        %1045 = vmatpush2.bf16.msra.mxu0 0
        %1046 = vmatprep.subr.bf16.mxu0 0
        %1047 = vmatpush2.bf16.msra.mxu0 0
        %1048 = vmatprep.subr.bf16.mxu0 0
        %1049 = vmatpush2.bf16.msra.mxu0 0
        %1050 = vmatprep.subr.bf16.mxu0 0
        %1051 = vmatpush2.bf16.msra.mxu0 0
        %1052 = vmatprep.subr.bf16.mxu0 0
        %1053 = vmatpush2.bf16.msra.mxu0 0
        %1054 = vmatprep.subr.bf16.mxu0 0
        %1055 = vmatpush2.bf16.msra.mxu0 0
        %1056 = vmatprep.subr.bf16.mxu0 0
        %1057 = vmatpush2.bf16.msra.mxu0 0
        %1058 = vmatprep.mubr.bf16.mxu0 0
        %1059 = vmatmul.mubr.bf16.gmra.mxu0 %v830
        %v1060 = vpop.f32.mrf.mxu0
        %v1061 = vadd.f32 0.0, %v1060
        %v1062 = vpop.f32.mrf.mxu0
        %v1063 = vadd.f32 0.0, %v1062
        %v1064 = vpop.f32.mrf.mxu0
        %v1065 = vpop.f32.mrf.mxu0
        %1066 = vdwg.mxu0
        %v1069 = vunpack.c.l.s4 1983009808
        %v1070 = vunpack.c.0.s8 %v1069
        %v1071 = vlaneseq
        %v1072 = vshrl.u32 %v1071, 7
        %v1073 = vsub.s32 %v1070, %v1072
        %v1074 = vrot.slane %v738, %v1073
        %v1075 = vcombine.high %v1074, %v1074
        %v1077 = vsel %vm828, %v735, 0
        %v1080 = vsel %vm643, %v752, 0
        %v1083 = vsel %vm643, %v760, 0
        %v1086 = vsel %vm643, %v759, 0
        %v1089 = vsel %vm643, %v761, 0
        %v1092 = vsel %vm643, %v769, 0
        %v1095 = vsel %vm643, %v777, 0
        %v1098 = vsel %vm643, %v776, 0
        %v1101 = vsel %vm643, %v778, 0
        %v1104 = vsel %vm643, %v1074, 0
        %v1107 = vsel %vm643, %v1075, 0
        %1109 = vmatprep.subr.bf16.mxu0 0
        %1110 = vmatpush1.bf16.msra.mxu0 0
        %1111 = vmatprep.subr.bf16.mxu0 0
        %1112 = vmatpush1.bf16.msra.mxu0 0
        %1113 = vmatprep.subr.bf16.mxu0 0
        %1114 = vmatpush1.bf16.msra.mxu0 0
        %1115 = vmatprep.subr.bf16.mxu0 0
        %1116 = vmatpush1.bf16.msra.mxu0 0
        %1117 = vmatprep.subr.bf16.mxu0 0
        %1118 = vmatpush1.bf16.msra.mxu0 0
        %1119 = vmatprep.subr.bf16.mxu0 0
        %1120 = vmatpush1.bf16.msra.mxu0 0
        %1121 = vmatprep.subr.bf16.mxu0 0
        %1122 = vmatpush1.bf16.msra.mxu0 0
        %1123 = vmatprep.subr.bf16.mxu0 %v1083
        %1124 = vmatpush1.bf16.msra.mxu0 %v1080
        %1125 = vmatprep.subr.bf16.mxu0 0
        %1126 = vmatpush2.bf16.msra.mxu0 0
        %1127 = vmatprep.subr.bf16.mxu0 0
        %1128 = vmatpush2.bf16.msra.mxu0 0
        %1129 = vmatprep.subr.bf16.mxu0 0
        %1130 = vmatpush2.bf16.msra.mxu0 0
        %1131 = vmatprep.subr.bf16.mxu0 0
        %1132 = vmatpush2.bf16.msra.mxu0 0
        %1133 = vmatprep.subr.bf16.mxu0 0
        %1134 = vmatpush2.bf16.msra.mxu0 0
        %1135 = vmatprep.subr.bf16.mxu0 0
        %1136 = vmatpush2.bf16.msra.mxu0 0
        %1137 = vmatprep.subr.bf16.mxu0 0
        %1138 = vmatpush2.bf16.msra.mxu0 0
        %1139 = vmatprep.subr.bf16.mxu0 0
        %1140 = vmatpush2.bf16.msra.mxu0 0
        %1141 = vmatprep.mubr.bf16.mxu0 0
        %1142 = vmatmul.mubr.bf16.gmra.mxu0 %v1077
        %v1143 = vpop.f32.mrf.mxu0
        %v1144 = vadd.f32 %v897, %v1143
        %v1145 = vpop.f32.mrf.mxu0
        %v1146 = vadd.f32 %v899, %v1145
        %v1147 = vpop.f32.mrf.mxu0
        %v1148 = vpop.f32.mrf.mxu0
        %1149 = vdwg.mxu0
        %1150 = vmatprep.subr.bf16.mxu0 0
        %1151 = vmatpush1.bf16.msra.mxu0 0
        %1152 = vmatprep.subr.bf16.mxu0 0
        %1153 = vmatpush1.bf16.msra.mxu0 0
        %1154 = vmatprep.subr.bf16.mxu0 0
        %1155 = vmatpush1.bf16.msra.mxu0 0
        %1156 = vmatprep.subr.bf16.mxu0 0
        %1157 = vmatpush1.bf16.msra.mxu0 0
        %1158 = vmatprep.subr.bf16.mxu0 0
        %1159 = vmatpush1.bf16.msra.mxu0 0
        %1160 = vmatprep.subr.bf16.mxu0 0
        %1161 = vmatpush1.bf16.msra.mxu0 0
        %1162 = vmatprep.subr.bf16.mxu0 0
        %1163 = vmatpush1.bf16.msra.mxu0 0
        %1164 = vmatprep.subr.bf16.mxu0 %v1089
        %1165 = vmatpush1.bf16.msra.mxu0 %v1086
        %1166 = vmatprep.subr.bf16.mxu0 0
        %1167 = vmatpush2.bf16.msra.mxu0 0
        %1168 = vmatprep.subr.bf16.mxu0 0
        %1169 = vmatpush2.bf16.msra.mxu0 0
        %1170 = vmatprep.subr.bf16.mxu0 0
        %1171 = vmatpush2.bf16.msra.mxu0 0
        %1172 = vmatprep.subr.bf16.mxu0 0
        %1173 = vmatpush2.bf16.msra.mxu0 0
        %1174 = vmatprep.subr.bf16.mxu0 0
        %1175 = vmatpush2.bf16.msra.mxu0 0
        %1176 = vmatprep.subr.bf16.mxu0 0
        %1177 = vmatpush2.bf16.msra.mxu0 0
        %1178 = vmatprep.subr.bf16.mxu0 0
        %1179 = vmatpush2.bf16.msra.mxu0 0
        %1180 = vmatprep.subr.bf16.mxu0 0
        %1181 = vmatpush2.bf16.msra.mxu0 0
        %1182 = vmatprep.mubr.bf16.mxu0 0
        %1183 = vmatmul.mubr.bf16.gmra.mxu0 %v1077
        %v1184 = vpop.f32.mrf.mxu0
        %v1185 = vadd.f32 %v938, %v1184
        %v1186 = vpop.f32.mrf.mxu0
        %v1187 = vadd.f32 %v940, %v1186
        %v1188 = vpop.f32.mrf.mxu0
        %v1189 = vpop.f32.mrf.mxu0
        %1190 = vdwg.mxu0
        %1191 = vmatprep.subr.bf16.mxu0 0
        %1192 = vmatpush1.bf16.msra.mxu0 0
        %1193 = vmatprep.subr.bf16.mxu0 0
        %1194 = vmatpush1.bf16.msra.mxu0 0
        %1195 = vmatprep.subr.bf16.mxu0 0
        %1196 = vmatpush1.bf16.msra.mxu0 0
        %1197 = vmatprep.subr.bf16.mxu0 0
        %1198 = vmatpush1.bf16.msra.mxu0 0
        %1199 = vmatprep.subr.bf16.mxu0 0
        %1200 = vmatpush1.bf16.msra.mxu0 0
        %1201 = vmatprep.subr.bf16.mxu0 0
        %1202 = vmatpush1.bf16.msra.mxu0 0
        %1203 = vmatprep.subr.bf16.mxu0 0
        %1204 = vmatpush1.bf16.msra.mxu0 0
        %1205 = vmatprep.subr.bf16.mxu0 %v1095
        %1206 = vmatpush1.bf16.msra.mxu0 %v1092
        %1207 = vmatprep.subr.bf16.mxu0 0
        %1208 = vmatpush2.bf16.msra.mxu0 0
        %1209 = vmatprep.subr.bf16.mxu0 0
        %1210 = vmatpush2.bf16.msra.mxu0 0
        %1211 = vmatprep.subr.bf16.mxu0 0
        %1212 = vmatpush2.bf16.msra.mxu0 0
        %1213 = vmatprep.subr.bf16.mxu0 0
        %1214 = vmatpush2.bf16.msra.mxu0 0
        %1215 = vmatprep.subr.bf16.mxu0 0
        %1216 = vmatpush2.bf16.msra.mxu0 0
        %1217 = vmatprep.subr.bf16.mxu0 0
        %1218 = vmatpush2.bf16.msra.mxu0 0
        %1219 = vmatprep.subr.bf16.mxu0 0
        %1220 = vmatpush2.bf16.msra.mxu0 0
        %1221 = vmatprep.subr.bf16.mxu0 0
        %1222 = vmatpush2.bf16.msra.mxu0 0
        %1223 = vmatprep.mubr.bf16.mxu0 0
        %1224 = vmatmul.mubr.bf16.gmra.mxu0 %v1077
        %v1225 = vpop.f32.mrf.mxu0
        %v1226 = vadd.f32 %v979, %v1225
        %v1227 = vpop.f32.mrf.mxu0
        %v1228 = vadd.f32 %v981, %v1227
        %v1229 = vpop.f32.mrf.mxu0
        %v1230 = vpop.f32.mrf.mxu0
        %1231 = vdwg.mxu0
        %1232 = vmatprep.subr.bf16.mxu0 0
        %1233 = vmatpush1.bf16.msra.mxu0 0
        %1234 = vmatprep.subr.bf16.mxu0 0
        %1235 = vmatpush1.bf16.msra.mxu0 0
        %1236 = vmatprep.subr.bf16.mxu0 0
        %1237 = vmatpush1.bf16.msra.mxu0 0
        %1238 = vmatprep.subr.bf16.mxu0 0
        %1239 = vmatpush1.bf16.msra.mxu0 0
        %1240 = vmatprep.subr.bf16.mxu0 0
        %1241 = vmatpush1.bf16.msra.mxu0 0
        %1242 = vmatprep.subr.bf16.mxu0 0
        %1243 = vmatpush1.bf16.msra.mxu0 0
        %1244 = vmatprep.subr.bf16.mxu0 0
        %1245 = vmatpush1.bf16.msra.mxu0 0
        %1246 = vmatprep.subr.bf16.mxu0 %v1101
        %1247 = vmatpush1.bf16.msra.mxu0 %v1098
        %1248 = vmatprep.subr.bf16.mxu0 0
        %1249 = vmatpush2.bf16.msra.mxu0 0
        %1250 = vmatprep.subr.bf16.mxu0 0
        %1251 = vmatpush2.bf16.msra.mxu0 0
        %1252 = vmatprep.subr.bf16.mxu0 0
        %1253 = vmatpush2.bf16.msra.mxu0 0
        %1254 = vmatprep.subr.bf16.mxu0 0
        %1255 = vmatpush2.bf16.msra.mxu0 0
        %1256 = vmatprep.subr.bf16.mxu0 0
        %1257 = vmatpush2.bf16.msra.mxu0 0
        %1258 = vmatprep.subr.bf16.mxu0 0
        %1259 = vmatpush2.bf16.msra.mxu0 0
        %1260 = vmatprep.subr.bf16.mxu0 0
        %1261 = vmatpush2.bf16.msra.mxu0 0
        %1262 = vmatprep.subr.bf16.mxu0 0
        %1263 = vmatpush2.bf16.msra.mxu0 0
        %1264 = vmatprep.mubr.bf16.mxu0 0
        %1265 = vmatmul.mubr.bf16.gmra.mxu0 %v1077
        %v1266 = vpop.f32.mrf.mxu0
        %v1267 = vadd.f32 %v1020, %v1266
        %v1268 = vpop.f32.mrf.mxu0
        %v1269 = vadd.f32 %v1022, %v1268
        %v1270 = vpop.f32.mrf.mxu0
        %v1271 = vpop.f32.mrf.mxu0
        %1272 = vdwg.mxu0
        %1273 = vmatprep.subr.bf16.mxu0 0
        %1274 = vmatpush1.bf16.msra.mxu0 0
        %1275 = vmatprep.subr.bf16.mxu0 0
        %1276 = vmatpush1.bf16.msra.mxu0 0
        %1277 = vmatprep.subr.bf16.mxu0 0
        %1278 = vmatpush1.bf16.msra.mxu0 0
        %1279 = vmatprep.subr.bf16.mxu0 0
        %1280 = vmatpush1.bf16.msra.mxu0 0
        %1281 = vmatprep.subr.bf16.mxu0 0
        %1282 = vmatpush1.bf16.msra.mxu0 0
        %1283 = vmatprep.subr.bf16.mxu0 0
        %1284 = vmatpush1.bf16.msra.mxu0 0
        %1285 = vmatprep.subr.bf16.mxu0 0
        %1286 = vmatpush1.bf16.msra.mxu0 0
        %1287 = vmatprep.subr.bf16.mxu0 %v1107
        %1288 = vmatpush1.bf16.msra.mxu0 %v1104
        %1289 = vmatprep.subr.bf16.mxu0 0
        %1290 = vmatpush2.bf16.msra.mxu0 0
        %1291 = vmatprep.subr.bf16.mxu0 0
        %1292 = vmatpush2.bf16.msra.mxu0 0
        %1293 = vmatprep.subr.bf16.mxu0 0
        %1294 = vmatpush2.bf16.msra.mxu0 0
        %1295 = vmatprep.subr.bf16.mxu0 0
        %1296 = vmatpush2.bf16.msra.mxu0 0
        %1297 = vmatprep.subr.bf16.mxu0 0
        %1298 = vmatpush2.bf16.msra.mxu0 0
        %1299 = vmatprep.subr.bf16.mxu0 0
        %1300 = vmatpush2.bf16.msra.mxu0 0
        %1301 = vmatprep.subr.bf16.mxu0 0
        %1302 = vmatpush2.bf16.msra.mxu0 0
        %1303 = vmatprep.subr.bf16.mxu0 0
        %1304 = vmatpush2.bf16.msra.mxu0 0
        %1305 = vmatprep.mubr.bf16.mxu0 0
        %1306 = vmatmul.mubr.bf16.gmra.mxu0 %v1077
        %v1307 = vpop.f32.mrf.mxu0
        %v1308 = vadd.f32 %v1061, %v1307
        %v1309 = vpop.f32.mrf.mxu0
        %v1310 = vadd.f32 %v1063, %v1309
        %v1311 = vpop.f32.mrf.mxu0
        %v1312 = vpop.f32.mrf.mxu0
        %1313 = vdwg.mxu0
        %s1314 = scalar_lea.vmem %s0, 8
        %v1315 = vld [vmem:[%s1314] sm:$0xf]
        %v1316 = vld [vmem:[#allocation2] sm:$0xff]
        %v1317 = vld [vmem:[#allocation2 + $0x8] sm:$0xff]
        %v1318 = vld [vmem:[#allocation2 + $0x10] sm:$0x3f]
        %v1322 = vcombine.high %v1316, %v1316
        %v1324 = vunpack.c.l.s4 1983009808
        %v1325 = vunpack.c.0.s8 %v1324
        %v1326 = vlaneseq
        %v1327 = vshrl.u32 %v1326, 7
        %v1328 = vsub.s32 %v1325, %v1327
        %v1329 = vrot.slane %v1316, %v1328
        %v1331 = vunpack.c.l.s4 1983009808
        %v1332 = vunpack.c.0.s8 %v1331
        %v1333 = vlaneseq
        %v1334 = vshrl.u32 %v1333, 7
        %v1335 = vsub.s32 %v1332, %v1334
        %v1336 = vrot.slane %v1322, %v1335
        %v1337 = vcombine.high %v1329, %v1329
        %v1338 = vcombine.high %v1336, %v1336
        %v1339 = vcombine.high %v1317, %v1317
        %v1341 = vunpack.c.l.s4 1983009808
        %v1342 = vunpack.c.0.s8 %v1341
        %v1343 = vlaneseq
        %v1344 = vshrl.u32 %v1343, 7
        %v1345 = vsub.s32 %v1342, %v1344
        %v1346 = vrot.slane %v1317, %v1345
        %v1348 = vunpack.c.l.s4 1983009808
        %v1349 = vunpack.c.0.s8 %v1348
        %v1350 = vlaneseq
        %v1351 = vshrl.u32 %v1350, 7
        %v1352 = vsub.s32 %v1349, %v1351
        %v1353 = vrot.slane %v1339, %v1352
        %v1354 = vcombine.high %v1346, %v1346
        %v1355 = vcombine.high %v1353, %v1353
        %v1356 = vcombine.high %v1318, %v1318
        %v1358 = vunpack.c.l.s4 1983009808
        %v1359 = vunpack.c.0.s8 %v1358
        %v1360 = vlaneseq
        %v1361 = vshrl.u32 %v1360, 7
        %v1362 = vsub.s32 %v1359, %v1361
        %v1363 = vrot.slane %v1318, %v1362
        %v1365 = vunpack.c.l.s4 1983009808
        %v1366 = vunpack.c.0.s8 %v1365
        %v1367 = vlaneseq
        %v1368 = vshrl.u32 %v1367, 7
        %v1369 = vsub.s32 %v1366, %v1368
        %v1370 = vrot.slane %v1356, %v1369
        %v1371 = vcombine.high %v1363, %v1363
        %1372 = vrot.lane.b32.xlu0 %v1329, 126
        %v1373 = vpop.permute.xlu0 %1372
        %1374 = vrot.lane.b32.xlu0 %v1337, 126
        %v1375 = vpop.permute.xlu0 %1374
        %1376 = vrot.lane.b32.xlu0 %v1336, 126
        %v1377 = vpop.permute.xlu0 %1376
        %1378 = vrot.lane.b32.xlu0 %v1338, 126
        %v1379 = vpop.permute.xlu0 %1378
        %1380 = vrot.lane.b32.xlu0 %v1346, 126
        %v1381 = vpop.permute.xlu0 %1380
        %1382 = vrot.lane.b32.xlu0 %v1354, 126
        %v1383 = vpop.permute.xlu0 %1382
        %1384 = vrot.lane.b32.xlu0 %v1353, 126
        %v1385 = vpop.permute.xlu0 %1384
        %1386 = vrot.lane.b32.xlu0 %v1355, 126
        %v1387 = vpop.permute.xlu0 %1386
        %1388 = vrot.lane.b32.xlu0 %v1363, 126
        %v1389 = vpop.permute.xlu0 %1388
        %1390 = vrot.lane.b32.xlu0 %v1371, 126
        %v1391 = vpop.permute.xlu0 %1390
        %1392 = vrot.lane.b32.xlu0 %v1370, 126
        %v1393 = vpop.permute.xlu0 %1392
        %vm1394 = vcmask 1031168
        %v1395 = vsel %vm1394, %v1373, %v1375
        %v1396 = vsel %vm1394, %v1375, %v1377
        %v1397 = vsel %vm1394, %v1377, %v1379
        %v1398 = vsel %vm1394, %v1379, %v1381
        %v1399 = vsel %vm1394, %v1381, %v1383
        %v1400 = vsel %vm1394, %v1383, %v1385
        %v1401 = vsel %vm1394, %v1385, %v1387
        %v1402 = vsel %vm1394, %v1387, %v1389
        %v1403 = vsel %vm1394, %v1389, %v1391
        %v1404 = vsel %vm1394, %v1391, %v1393
        %v1406 = vsel %vm828, %v1315, 0
        %v1409 = vsel %vm643, %v1395, 0
        %v1412 = vsel %vm643, %v1396, 0
        %v1415 = vsel %vm643, %v1397, 0
        %v1418 = vsel %vm643, %v1398, 0
        %v1421 = vsel %vm643, %v1399, 0
        %v1424 = vsel %vm643, %v1400, 0
        %v1427 = vsel %vm643, %v1401, 0
        %v1430 = vsel %vm643, %v1402, 0
        %v1433 = vsel %vm643, %v1403, 0
        %v1436 = vsel %vm643, %v1404, 0
        %1438 = vmatprep.subr.bf16.mxu0 0
        %1439 = vmatpush1.bf16.msra.mxu0 0
        %1440 = vmatprep.subr.bf16.mxu0 0
        %1441 = vmatpush1.bf16.msra.mxu0 0
        %1442 = vmatprep.subr.bf16.mxu0 0
        %1443 = vmatpush1.bf16.msra.mxu0 0
        %1444 = vmatprep.subr.bf16.mxu0 0
        %1445 = vmatpush1.bf16.msra.mxu0 0
        %1446 = vmatprep.subr.bf16.mxu0 0
        %1447 = vmatpush1.bf16.msra.mxu0 0
        %1448 = vmatprep.subr.bf16.mxu0 0
        %1449 = vmatpush1.bf16.msra.mxu0 0
        %1450 = vmatprep.subr.bf16.mxu0 0
        %1451 = vmatpush1.bf16.msra.mxu0 0
        %1452 = vmatprep.subr.bf16.mxu0 %v1412
        %1453 = vmatpush1.bf16.msra.mxu0 %v1409
        %1454 = vmatprep.subr.bf16.mxu0 0
        %1455 = vmatpush2.bf16.msra.mxu0 0
        %1456 = vmatprep.subr.bf16.mxu0 0
        %1457 = vmatpush2.bf16.msra.mxu0 0
        %1458 = vmatprep.subr.bf16.mxu0 0
        %1459 = vmatpush2.bf16.msra.mxu0 0
        %1460 = vmatprep.subr.bf16.mxu0 0
        %1461 = vmatpush2.bf16.msra.mxu0 0
        %1462 = vmatprep.subr.bf16.mxu0 0
        %1463 = vmatpush2.bf16.msra.mxu0 0
        %1464 = vmatprep.subr.bf16.mxu0 0
        %1465 = vmatpush2.bf16.msra.mxu0 0
        %1466 = vmatprep.subr.bf16.mxu0 0
        %1467 = vmatpush2.bf16.msra.mxu0 0
        %1468 = vmatprep.subr.bf16.mxu0 0
        %1469 = vmatpush2.bf16.msra.mxu0 0
        %1470 = vmatprep.mubr.bf16.mxu0 0
        %1471 = vmatmul.mubr.bf16.gmra.mxu0 %v1406
        %v1472 = vpop.f32.mrf.mxu0
        %v1473 = vadd.f32 0.0, %v1472
        %v1474 = vpop.f32.mrf.mxu0
        %v1475 = vadd.f32 0.0, %v1474
        %v1476 = vpop.f32.mrf.mxu0
        %v1477 = vpop.f32.mrf.mxu0
        %1478 = vdwg.mxu0
        %1479 = vmatprep.subr.bf16.mxu0 0
        %1480 = vmatpush1.bf16.msra.mxu0 0
        %1481 = vmatprep.subr.bf16.mxu0 0
        %1482 = vmatpush1.bf16.msra.mxu0 0
        %1483 = vmatprep.subr.bf16.mxu0 0
        %1484 = vmatpush1.bf16.msra.mxu0 0
        %1485 = vmatprep.subr.bf16.mxu0 0
        %1486 = vmatpush1.bf16.msra.mxu0 0
        %1487 = vmatprep.subr.bf16.mxu0 0
        %1488 = vmatpush1.bf16.msra.mxu0 0
        %1489 = vmatprep.subr.bf16.mxu0 0
        %1490 = vmatpush1.bf16.msra.mxu0 0
        %1491 = vmatprep.subr.bf16.mxu0 0
        %1492 = vmatpush1.bf16.msra.mxu0 0
        %1493 = vmatprep.subr.bf16.mxu0 %v1418
        %1494 = vmatpush1.bf16.msra.mxu0 %v1415
        %1495 = vmatprep.subr.bf16.mxu0 0
        %1496 = vmatpush2.bf16.msra.mxu0 0
        %1497 = vmatprep.subr.bf16.mxu0 0
        %1498 = vmatpush2.bf16.msra.mxu0 0
        %1499 = vmatprep.subr.bf16.mxu0 0
        %1500 = vmatpush2.bf16.msra.mxu0 0
        %1501 = vmatprep.subr.bf16.mxu0 0
        %1502 = vmatpush2.bf16.msra.mxu0 0
        %1503 = vmatprep.subr.bf16.mxu0 0
        %1504 = vmatpush2.bf16.msra.mxu0 0
        %1505 = vmatprep.subr.bf16.mxu0 0
        %1506 = vmatpush2.bf16.msra.mxu0 0
        %1507 = vmatprep.subr.bf16.mxu0 0
        %1508 = vmatpush2.bf16.msra.mxu0 0
        %1509 = vmatprep.subr.bf16.mxu0 0
        %1510 = vmatpush2.bf16.msra.mxu0 0
        %1511 = vmatprep.mubr.bf16.mxu0 0
        %1512 = vmatmul.mubr.bf16.gmra.mxu0 %v1406
        %v1513 = vpop.f32.mrf.mxu0
        %v1514 = vadd.f32 0.0, %v1513
        %v1515 = vpop.f32.mrf.mxu0
        %v1516 = vadd.f32 0.0, %v1515
        %v1517 = vpop.f32.mrf.mxu0
        %v1518 = vpop.f32.mrf.mxu0
        %1519 = vdwg.mxu0
        %1520 = vmatprep.subr.bf16.mxu0 0
        %1521 = vmatpush1.bf16.msra.mxu0 0
        %1522 = vmatprep.subr.bf16.mxu0 0
        %1523 = vmatpush1.bf16.msra.mxu0 0
        %1524 = vmatprep.subr.bf16.mxu0 0
        %1525 = vmatpush1.bf16.msra.mxu0 0
        %1526 = vmatprep.subr.bf16.mxu0 0
        %1527 = vmatpush1.bf16.msra.mxu0 0
        %1528 = vmatprep.subr.bf16.mxu0 0
        %1529 = vmatpush1.bf16.msra.mxu0 0
        %1530 = vmatprep.subr.bf16.mxu0 0
        %1531 = vmatpush1.bf16.msra.mxu0 0
        %1532 = vmatprep.subr.bf16.mxu0 0
        %1533 = vmatpush1.bf16.msra.mxu0 0
        %1534 = vmatprep.subr.bf16.mxu0 %v1424
        %1535 = vmatpush1.bf16.msra.mxu0 %v1421
        %1536 = vmatprep.subr.bf16.mxu0 0
        %1537 = vmatpush2.bf16.msra.mxu0 0
        %1538 = vmatprep.subr.bf16.mxu0 0
        %1539 = vmatpush2.bf16.msra.mxu0 0
        %1540 = vmatprep.subr.bf16.mxu0 0
        %1541 = vmatpush2.bf16.msra.mxu0 0
        %1542 = vmatprep.subr.bf16.mxu0 0
        %1543 = vmatpush2.bf16.msra.mxu0 0
        %1544 = vmatprep.subr.bf16.mxu0 0
        %1545 = vmatpush2.bf16.msra.mxu0 0
        %1546 = vmatprep.subr.bf16.mxu0 0
        %1547 = vmatpush2.bf16.msra.mxu0 0
        %1548 = vmatprep.subr.bf16.mxu0 0
        %1549 = vmatpush2.bf16.msra.mxu0 0
        %1550 = vmatprep.subr.bf16.mxu0 0
        %1551 = vmatpush2.bf16.msra.mxu0 0
        %1552 = vmatprep.mubr.bf16.mxu0 0
        %1553 = vmatmul.mubr.bf16.gmra.mxu0 %v1406
        %v1554 = vpop.f32.mrf.mxu0
        %v1555 = vadd.f32 0.0, %v1554
        %v1556 = vpop.f32.mrf.mxu0
        %v1557 = vadd.f32 0.0, %v1556
        %v1558 = vpop.f32.mrf.mxu0
        %v1559 = vpop.f32.mrf.mxu0
        %1560 = vdwg.mxu0
        %1561 = vmatprep.subr.bf16.mxu0 0
        %1562 = vmatpush1.bf16.msra.mxu0 0
        %1563 = vmatprep.subr.bf16.mxu0 0
        %1564 = vmatpush1.bf16.msra.mxu0 0
        %1565 = vmatprep.subr.bf16.mxu0 0
        %1566 = vmatpush1.bf16.msra.mxu0 0
        %1567 = vmatprep.subr.bf16.mxu0 0
        %1568 = vmatpush1.bf16.msra.mxu0 0
        %1569 = vmatprep.subr.bf16.mxu0 0
        %1570 = vmatpush1.bf16.msra.mxu0 0
        %1571 = vmatprep.subr.bf16.mxu0 0
        %1572 = vmatpush1.bf16.msra.mxu0 0
        %1573 = vmatprep.subr.bf16.mxu0 0
        %1574 = vmatpush1.bf16.msra.mxu0 0
        %1575 = vmatprep.subr.bf16.mxu0 %v1430
        %1576 = vmatpush1.bf16.msra.mxu0 %v1427
        %1577 = vmatprep.subr.bf16.mxu0 0
        %1578 = vmatpush2.bf16.msra.mxu0 0
        %1579 = vmatprep.subr.bf16.mxu0 0
        %1580 = vmatpush2.bf16.msra.mxu0 0
        %1581 = vmatprep.subr.bf16.mxu0 0
        %1582 = vmatpush2.bf16.msra.mxu0 0
        %1583 = vmatprep.subr.bf16.mxu0 0
        %1584 = vmatpush2.bf16.msra.mxu0 0
        %1585 = vmatprep.subr.bf16.mxu0 0
        %1586 = vmatpush2.bf16.msra.mxu0 0
        %1587 = vmatprep.subr.bf16.mxu0 0
        %1588 = vmatpush2.bf16.msra.mxu0 0
        %1589 = vmatprep.subr.bf16.mxu0 0
        %1590 = vmatpush2.bf16.msra.mxu0 0
        %1591 = vmatprep.subr.bf16.mxu0 0
        %1592 = vmatpush2.bf16.msra.mxu0 0
        %1593 = vmatprep.mubr.bf16.mxu0 0
        %1594 = vmatmul.mubr.bf16.gmra.mxu0 %v1406
        %v1595 = vpop.f32.mrf.mxu0
        %v1596 = vadd.f32 0.0, %v1595
        %v1597 = vpop.f32.mrf.mxu0
        %v1598 = vadd.f32 0.0, %v1597
        %v1599 = vpop.f32.mrf.mxu0
        %v1600 = vpop.f32.mrf.mxu0
        %1601 = vdwg.mxu0
        %1602 = vmatprep.subr.bf16.mxu0 0
        %1603 = vmatpush1.bf16.msra.mxu0 0
        %1604 = vmatprep.subr.bf16.mxu0 0
        %1605 = vmatpush1.bf16.msra.mxu0 0
        %1606 = vmatprep.subr.bf16.mxu0 0
        %1607 = vmatpush1.bf16.msra.mxu0 0
        %1608 = vmatprep.subr.bf16.mxu0 0
        %1609 = vmatpush1.bf16.msra.mxu0 0
        %1610 = vmatprep.subr.bf16.mxu0 0
        %1611 = vmatpush1.bf16.msra.mxu0 0
        %1612 = vmatprep.subr.bf16.mxu0 0
        %1613 = vmatpush1.bf16.msra.mxu0 0
        %1614 = vmatprep.subr.bf16.mxu0 0
        %1615 = vmatpush1.bf16.msra.mxu0 0
        %1616 = vmatprep.subr.bf16.mxu0 %v1436
        %1617 = vmatpush1.bf16.msra.mxu0 %v1433
        %1618 = vmatprep.subr.bf16.mxu0 0
        %1619 = vmatpush2.bf16.msra.mxu0 0
        %1620 = vmatprep.subr.bf16.mxu0 0
        %1621 = vmatpush2.bf16.msra.mxu0 0
        %1622 = vmatprep.subr.bf16.mxu0 0
        %1623 = vmatpush2.bf16.msra.mxu0 0
        %1624 = vmatprep.subr.bf16.mxu0 0
        %1625 = vmatpush2.bf16.msra.mxu0 0
        %1626 = vmatprep.subr.bf16.mxu0 0
        %1627 = vmatpush2.bf16.msra.mxu0 0
        %1628 = vmatprep.subr.bf16.mxu0 0
        %1629 = vmatpush2.bf16.msra.mxu0 0
        %1630 = vmatprep.subr.bf16.mxu0 0
        %1631 = vmatpush2.bf16.msra.mxu0 0
        %1632 = vmatprep.subr.bf16.mxu0 0
        %1633 = vmatpush2.bf16.msra.mxu0 0
        %1634 = vmatprep.mubr.bf16.mxu0 0
        %1635 = vmatmul.mubr.bf16.gmra.mxu0 %v1406
        %v1636 = vpop.f32.mrf.mxu0
        %v1637 = vadd.f32 0.0, %v1636
        %v1638 = vpop.f32.mrf.mxu0
        %v1639 = vadd.f32 0.0, %v1638
        %v1640 = vpop.f32.mrf.mxu0
        %v1641 = vpop.f32.mrf.mxu0
        %1642 = vdwg.mxu0
        %v1643 = vadd.f32 %v1144, %v1473
        %v1644 = vadd.f32 %v1146, %v1475
        %v1645 = vadd.f32 %v1185, %v1514
        %v1646 = vadd.f32 %v1187, %v1516
        %v1647 = vadd.f32 %v1226, %v1555
        %v1648 = vadd.f32 %v1228, %v1557
        %v1649 = vadd.f32 %v1267, %v1596
        %v1650 = vadd.f32 %v1269, %v1598
        %v1651 = vadd.f32 %v1308, %v1637
        %v1652 = vadd.f32 %v1310, %v1639
        %s1653 = scalar_lea.vmem %s0, 12
        %v1654 = vld [vmem:[%s1653] sm:$0xf]
        %v1655 = vld [vmem:[#allocation2] sm:$0xff]
        %v1656 = vld [vmem:[#allocation2 + $0x8] sm:$0xff]
        %v1657 = vld [vmem:[#allocation2 + $0x10] sm:$0x3f]
        %v1661 = vcombine.high %v1655, %v1655
        %v1663 = vunpack.c.l.s4 1983009808
        %v1664 = vunpack.c.0.s8 %v1663
        %v1665 = vlaneseq
        %v1666 = vshrl.u32 %v1665, 7
        %v1667 = vsub.s32 %v1664, %v1666
        %v1668 = vrot.slane %v1655, %v1667
        %v1670 = vunpack.c.l.s4 1983009808
        %v1671 = vunpack.c.0.s8 %v1670
        %v1672 = vlaneseq
        %v1673 = vshrl.u32 %v1672, 7
        %v1674 = vsub.s32 %v1671, %v1673
        %v1675 = vrot.slane %v1661, %v1674
        %v1676 = vcombine.high %v1668, %v1668
        %v1677 = vcombine.high %v1675, %v1675
        %v1678 = vcombine.high %v1656, %v1656
        %v1680 = vunpack.c.l.s4 1983009808
        %v1681 = vunpack.c.0.s8 %v1680
        %v1682 = vlaneseq
        %v1683 = vshrl.u32 %v1682, 7
        %v1684 = vsub.s32 %v1681, %v1683
        %v1685 = vrot.slane %v1656, %v1684
        %v1687 = vunpack.c.l.s4 1983009808
        %v1688 = vunpack.c.0.s8 %v1687
        %v1689 = vlaneseq
        %v1690 = vshrl.u32 %v1689, 7
        %v1691 = vsub.s32 %v1688, %v1690
        %v1692 = vrot.slane %v1678, %v1691
        %v1693 = vcombine.high %v1685, %v1685
        %v1694 = vcombine.high %v1692, %v1692
        %v1695 = vcombine.high %v1657, %v1657
        %v1697 = vunpack.c.l.s4 1983009808
        %v1698 = vunpack.c.0.s8 %v1697
        %v1699 = vlaneseq
        %v1700 = vshrl.u32 %v1699, 7
        %v1701 = vsub.s32 %v1698, %v1700
        %v1702 = vrot.slane %v1657, %v1701
        %v1704 = vunpack.c.l.s4 1983009808
        %v1705 = vunpack.c.0.s8 %v1704
        %v1706 = vlaneseq
        %v1707 = vshrl.u32 %v1706, 7
        %v1708 = vsub.s32 %v1705, %v1707
        %v1709 = vrot.slane %v1695, %v1708
        %v1710 = vcombine.high %v1702, %v1702
        %1711 = vrot.lane.b32.xlu0 %v1668, 88
        %v1712 = vpop.permute.xlu0 %1711
        %1713 = vrot.lane.b32.xlu0 %v1676, 88
        %v1714 = vpop.permute.xlu0 %1713
        %1715 = vrot.lane.b32.xlu0 %v1675, 88
        %v1716 = vpop.permute.xlu0 %1715
        %1717 = vrot.lane.b32.xlu0 %v1677, 88
        %v1718 = vpop.permute.xlu0 %1717
        %1719 = vrot.lane.b32.xlu0 %v1685, 88
        %v1720 = vpop.permute.xlu0 %1719
        %1721 = vrot.lane.b32.xlu0 %v1693, 88
        %v1722 = vpop.permute.xlu0 %1721
        %1723 = vrot.lane.b32.xlu0 %v1692, 88
        %v1724 = vpop.permute.xlu0 %1723
        %1725 = vrot.lane.b32.xlu0 %v1694, 88
        %v1726 = vpop.permute.xlu0 %1725
        %1727 = vrot.lane.b32.xlu0 %v1702, 88
        %v1728 = vpop.permute.xlu0 %1727
        %1729 = vrot.lane.b32.xlu0 %v1710, 88
        %v1730 = vpop.permute.xlu0 %1729
        %1731 = vrot.lane.b32.xlu0 %v1709, 88
        %v1732 = vpop.permute.xlu0 %1731
        %vm1733 = vcmask 719872
        %v1734 = vsel %vm1733, %v1712, %v1714
        %v1735 = vsel %vm1733, %v1714, %v1716
        %v1736 = vsel %vm1733, %v1716, %v1718
        %v1737 = vsel %vm1733, %v1718, %v1720
        %v1738 = vsel %vm1733, %v1720, %v1722
        %v1739 = vsel %vm1733, %v1722, %v1724
        %v1740 = vsel %vm1733, %v1724, %v1726
        %v1741 = vsel %vm1733, %v1726, %v1728
        %v1742 = vsel %vm1733, %v1728, %v1730
        %v1743 = vsel %vm1733, %v1730, %v1732
        %v1745 = vsel %vm828, %v1654, 0
        %v1748 = vsel %vm643, %v1734, 0
        %v1751 = vsel %vm643, %v1735, 0
        %v1754 = vsel %vm643, %v1736, 0
        %v1757 = vsel %vm643, %v1737, 0
        %v1760 = vsel %vm643, %v1738, 0
        %v1763 = vsel %vm643, %v1739, 0
        %v1766 = vsel %vm643, %v1740, 0
        %v1769 = vsel %vm643, %v1741, 0
        %v1772 = vsel %vm643, %v1742, 0
        %v1775 = vsel %vm643, %v1743, 0
        %1777 = vmatprep.subr.bf16.mxu0 0
        %1778 = vmatpush1.bf16.msra.mxu0 0
        %1779 = vmatprep.subr.bf16.mxu0 0
        %1780 = vmatpush1.bf16.msra.mxu0 0
        %1781 = vmatprep.subr.bf16.mxu0 0
        %1782 = vmatpush1.bf16.msra.mxu0 0
        %1783 = vmatprep.subr.bf16.mxu0 0
        %1784 = vmatpush1.bf16.msra.mxu0 0
        %1785 = vmatprep.subr.bf16.mxu0 0
        %1786 = vmatpush1.bf16.msra.mxu0 0
        %1787 = vmatprep.subr.bf16.mxu0 0
        %1788 = vmatpush1.bf16.msra.mxu0 0
        %1789 = vmatprep.subr.bf16.mxu0 0
        %1790 = vmatpush1.bf16.msra.mxu0 0
        %1791 = vmatprep.subr.bf16.mxu0 %v1751
        %1792 = vmatpush1.bf16.msra.mxu0 %v1748
        %1793 = vmatprep.subr.bf16.mxu0 0
        %1794 = vmatpush2.bf16.msra.mxu0 0
        %1795 = vmatprep.subr.bf16.mxu0 0
        %1796 = vmatpush2.bf16.msra.mxu0 0
        %1797 = vmatprep.subr.bf16.mxu0 0
        %1798 = vmatpush2.bf16.msra.mxu0 0
        %1799 = vmatprep.subr.bf16.mxu0 0
        %1800 = vmatpush2.bf16.msra.mxu0 0
        %1801 = vmatprep.subr.bf16.mxu0 0
        %1802 = vmatpush2.bf16.msra.mxu0 0
        %1803 = vmatprep.subr.bf16.mxu0 0
        %1804 = vmatpush2.bf16.msra.mxu0 0
        %1805 = vmatprep.subr.bf16.mxu0 0
        %1806 = vmatpush2.bf16.msra.mxu0 0
        %1807 = vmatprep.subr.bf16.mxu0 0
        %1808 = vmatpush2.bf16.msra.mxu0 0
        %1809 = vmatprep.mubr.bf16.mxu0 0
        %1810 = vmatmul.mubr.bf16.gmra.mxu0 %v1745
        %v1811 = vpop.f32.mrf.mxu0
        %v1812 = vadd.f32 0.0, %v1811
        %v1813 = vpop.f32.mrf.mxu0
        %v1814 = vadd.f32 0.0, %v1813
        %v1815 = vpop.f32.mrf.mxu0
        %v1816 = vpop.f32.mrf.mxu0
        %1817 = vdwg.mxu0
        %1818 = vmatprep.subr.bf16.mxu0 0
        %1819 = vmatpush1.bf16.msra.mxu0 0
        %1820 = vmatprep.subr.bf16.mxu0 0
        %1821 = vmatpush1.bf16.msra.mxu0 0
        %1822 = vmatprep.subr.bf16.mxu0 0
        %1823 = vmatpush1.bf16.msra.mxu0 0
        %1824 = vmatprep.subr.bf16.mxu0 0
        %1825 = vmatpush1.bf16.msra.mxu0 0
        %1826 = vmatprep.subr.bf16.mxu0 0
        %1827 = vmatpush1.bf16.msra.mxu0 0
        %1828 = vmatprep.subr.bf16.mxu0 0
        %1829 = vmatpush1.bf16.msra.mxu0 0
        %1830 = vmatprep.subr.bf16.mxu0 0
        %1831 = vmatpush1.bf16.msra.mxu0 0
        %1832 = vmatprep.subr.bf16.mxu0 %v1757
        %1833 = vmatpush1.bf16.msra.mxu0 %v1754
        %1834 = vmatprep.subr.bf16.mxu0 0
        %1835 = vmatpush2.bf16.msra.mxu0 0
        %1836 = vmatprep.subr.bf16.mxu0 0
        %1837 = vmatpush2.bf16.msra.mxu0 0
        %1838 = vmatprep.subr.bf16.mxu0 0
        %1839 = vmatpush2.bf16.msra.mxu0 0
        %1840 = vmatprep.subr.bf16.mxu0 0
        %1841 = vmatpush2.bf16.msra.mxu0 0
        %1842 = vmatprep.subr.bf16.mxu0 0
        %1843 = vmatpush2.bf16.msra.mxu0 0
        %1844 = vmatprep.subr.bf16.mxu0 0
        %1845 = vmatpush2.bf16.msra.mxu0 0
        %1846 = vmatprep.subr.bf16.mxu0 0
        %1847 = vmatpush2.bf16.msra.mxu0 0
        %1848 = vmatprep.subr.bf16.mxu0 0
        %1849 = vmatpush2.bf16.msra.mxu0 0
        %1850 = vmatprep.mubr.bf16.mxu0 0
        %1851 = vmatmul.mubr.bf16.gmra.mxu0 %v1745
        %v1852 = vpop.f32.mrf.mxu0
        %v1853 = vadd.f32 0.0, %v1852
        %v1854 = vpop.f32.mrf.mxu0
        %v1855 = vadd.f32 0.0, %v1854
        %v1856 = vpop.f32.mrf.mxu0
        %v1857 = vpop.f32.mrf.mxu0
        %1858 = vdwg.mxu0
        %1859 = vmatprep.subr.bf16.mxu0 0
        %1860 = vmatpush1.bf16.msra.mxu0 0
        %1861 = vmatprep.subr.bf16.mxu0 0
        %1862 = vmatpush1.bf16.msra.mxu0 0
        %1863 = vmatprep.subr.bf16.mxu0 0
        %1864 = vmatpush1.bf16.msra.mxu0 0
        %1865 = vmatprep.subr.bf16.mxu0 0
        %1866 = vmatpush1.bf16.msra.mxu0 0
        %1867 = vmatprep.subr.bf16.mxu0 0
        %1868 = vmatpush1.bf16.msra.mxu0 0
        %1869 = vmatprep.subr.bf16.mxu0 0
        %1870 = vmatpush1.bf16.msra.mxu0 0
        %1871 = vmatprep.subr.bf16.mxu0 0
        %1872 = vmatpush1.bf16.msra.mxu0 0
        %1873 = vmatprep.subr.bf16.mxu0 %v1763
        %1874 = vmatpush1.bf16.msra.mxu0 %v1760
        %1875 = vmatprep.subr.bf16.mxu0 0
        %1876 = vmatpush2.bf16.msra.mxu0 0
        %1877 = vmatprep.subr.bf16.mxu0 0
        %1878 = vmatpush2.bf16.msra.mxu0 0
        %1879 = vmatprep.subr.bf16.mxu0 0
        %1880 = vmatpush2.bf16.msra.mxu0 0
        %1881 = vmatprep.subr.bf16.mxu0 0
        %1882 = vmatpush2.bf16.msra.mxu0 0
        %1883 = vmatprep.subr.bf16.mxu0 0
        %1884 = vmatpush2.bf16.msra.mxu0 0
        %1885 = vmatprep.subr.bf16.mxu0 0
        %1886 = vmatpush2.bf16.msra.mxu0 0
        %1887 = vmatprep.subr.bf16.mxu0 0
        %1888 = vmatpush2.bf16.msra.mxu0 0
        %1889 = vmatprep.subr.bf16.mxu0 0
        %1890 = vmatpush2.bf16.msra.mxu0 0
        %1891 = vmatprep.mubr.bf16.mxu0 0
        %1892 = vmatmul.mubr.bf16.gmra.mxu0 %v1745
        %v1893 = vpop.f32.mrf.mxu0
        %v1894 = vadd.f32 0.0, %v1893
        %v1895 = vpop.f32.mrf.mxu0
        %v1896 = vadd.f32 0.0, %v1895
        %v1897 = vpop.f32.mrf.mxu0
        %v1898 = vpop.f32.mrf.mxu0
        %1899 = vdwg.mxu0
        %1900 = vmatprep.subr.bf16.mxu0 0
        %1901 = vmatpush1.bf16.msra.mxu0 0
        %1902 = vmatprep.subr.bf16.mxu0 0
        %1903 = vmatpush1.bf16.msra.mxu0 0
        %1904 = vmatprep.subr.bf16.mxu0 0
        %1905 = vmatpush1.bf16.msra.mxu0 0
        %1906 = vmatprep.subr.bf16.mxu0 0
        %1907 = vmatpush1.bf16.msra.mxu0 0
        %1908 = vmatprep.subr.bf16.mxu0 0
        %1909 = vmatpush1.bf16.msra.mxu0 0
        %1910 = vmatprep.subr.bf16.mxu0 0
        %1911 = vmatpush1.bf16.msra.mxu0 0
        %1912 = vmatprep.subr.bf16.mxu0 0
        %1913 = vmatpush1.bf16.msra.mxu0 0
        %1914 = vmatprep.subr.bf16.mxu0 %v1769
        %1915 = vmatpush1.bf16.msra.mxu0 %v1766
        %1916 = vmatprep.subr.bf16.mxu0 0
        %1917 = vmatpush2.bf16.msra.mxu0 0
        %1918 = vmatprep.subr.bf16.mxu0 0
        %1919 = vmatpush2.bf16.msra.mxu0 0
        %1920 = vmatprep.subr.bf16.mxu0 0
        %1921 = vmatpush2.bf16.msra.mxu0 0
        %1922 = vmatprep.subr.bf16.mxu0 0
        %1923 = vmatpush2.bf16.msra.mxu0 0
        %1924 = vmatprep.subr.bf16.mxu0 0
        %1925 = vmatpush2.bf16.msra.mxu0 0
        %1926 = vmatprep.subr.bf16.mxu0 0
        %1927 = vmatpush2.bf16.msra.mxu0 0
        %1928 = vmatprep.subr.bf16.mxu0 0
        %1929 = vmatpush2.bf16.msra.mxu0 0
        %1930 = vmatprep.subr.bf16.mxu0 0
        %1931 = vmatpush2.bf16.msra.mxu0 0
        %1932 = vmatprep.mubr.bf16.mxu0 0
        %1933 = vmatmul.mubr.bf16.gmra.mxu0 %v1745
        %v1934 = vpop.f32.mrf.mxu0
        %v1935 = vadd.f32 0.0, %v1934
        %v1936 = vpop.f32.mrf.mxu0
        %v1937 = vadd.f32 0.0, %v1936
        %v1938 = vpop.f32.mrf.mxu0
        %v1939 = vpop.f32.mrf.mxu0
        %1940 = vdwg.mxu0
        %1941 = vmatprep.subr.bf16.mxu0 0
        %1942 = vmatpush1.bf16.msra.mxu0 0
        %1943 = vmatprep.subr.bf16.mxu0 0
        %1944 = vmatpush1.bf16.msra.mxu0 0
        %1945 = vmatprep.subr.bf16.mxu0 0
        %1946 = vmatpush1.bf16.msra.mxu0 0
        %1947 = vmatprep.subr.bf16.mxu0 0
        %1948 = vmatpush1.bf16.msra.mxu0 0
        %1949 = vmatprep.subr.bf16.mxu0 0
        %1950 = vmatpush1.bf16.msra.mxu0 0
        %1951 = vmatprep.subr.bf16.mxu0 0
        %1952 = vmatpush1.bf16.msra.mxu0 0
        %1953 = vmatprep.subr.bf16.mxu0 0
        %1954 = vmatpush1.bf16.msra.mxu0 0
        %1955 = vmatprep.subr.bf16.mxu0 %v1775
        %1956 = vmatpush1.bf16.msra.mxu0 %v1772
        %1957 = vmatprep.subr.bf16.mxu0 0
        %1958 = vmatpush2.bf16.msra.mxu0 0
        %1959 = vmatprep.subr.bf16.mxu0 0
        %1960 = vmatpush2.bf16.msra.mxu0 0
        %1961 = vmatprep.subr.bf16.mxu0 0
        %1962 = vmatpush2.bf16.msra.mxu0 0
        %1963 = vmatprep.subr.bf16.mxu0 0
        %1964 = vmatpush2.bf16.msra.mxu0 0
        %1965 = vmatprep.subr.bf16.mxu0 0
        %1966 = vmatpush2.bf16.msra.mxu0 0
        %1967 = vmatprep.subr.bf16.mxu0 0
        %1968 = vmatpush2.bf16.msra.mxu0 0
        %1969 = vmatprep.subr.bf16.mxu0 0
        %1970 = vmatpush2.bf16.msra.mxu0 0
        %1971 = vmatprep.subr.bf16.mxu0 0
        %1972 = vmatpush2.bf16.msra.mxu0 0
        %1973 = vmatprep.mubr.bf16.mxu0 0
        %1974 = vmatmul.mubr.bf16.gmra.mxu0 %v1745
        %v1975 = vpop.f32.mrf.mxu0
        %v1976 = vadd.f32 0.0, %v1975
        %v1977 = vpop.f32.mrf.mxu0
        %v1978 = vadd.f32 0.0, %v1977
        %v1979 = vpop.f32.mrf.mxu0
        %v1980 = vpop.f32.mrf.mxu0
        %1981 = vdwg.mxu0
        %v1982 = vadd.f32 %v1643, %v1812
        %v1983 = vadd.f32 %v1644, %v1814
        %v1984 = vadd.f32 %v1645, %v1853
        %v1985 = vadd.f32 %v1646, %v1855
        %v1986 = vadd.f32 %v1647, %v1894
        %v1987 = vadd.f32 %v1648, %v1896
        %v1988 = vadd.f32 %v1649, %v1935
        %v1989 = vadd.f32 %v1650, %v1937
        %v1990 = vadd.f32 %v1651, %v1976
        %v1991 = vadd.f32 %v1652, %v1978
        %s1992 = scalar_lea.vmem %s0, 16
        %v1993 = vld [vmem:[%s1992] sm:$0xf]
        %v1994 = vld [vmem:[#allocation2] sm:$0xff]
        %v1995 = vld [vmem:[#allocation2 + $0x8] sm:$0xff]
        %v1996 = vld [vmem:[#allocation2 + $0x10] sm:$0x3f]
        %v2000 = vcombine.high %v1994, %v1994
        %v2002 = vunpack.c.l.s4 1983009808
        %v2003 = vunpack.c.0.s8 %v2002
        %v2004 = vlaneseq
        %v2005 = vshrl.u32 %v2004, 7
        %v2006 = vsub.s32 %v2003, %v2005
        %v2007 = vrot.slane %v1994, %v2006
        %v2009 = vunpack.c.l.s4 1983009808
        %v2010 = vunpack.c.0.s8 %v2009
        %v2011 = vlaneseq
        %v2012 = vshrl.u32 %v2011, 7
        %v2013 = vsub.s32 %v2010, %v2012
        %v2014 = vrot.slane %v2000, %v2013
        %v2015 = vcombine.high %v2007, %v2007
        %v2016 = vcombine.high %v2014, %v2014
        %v2017 = vcombine.high %v1995, %v1995
        %v2019 = vunpack.c.l.s4 1983009808
        %v2020 = vunpack.c.0.s8 %v2019
        %v2021 = vlaneseq
        %v2022 = vshrl.u32 %v2021, 7
        %v2023 = vsub.s32 %v2020, %v2022
        %v2024 = vrot.slane %v1995, %v2023
        %v2026 = vunpack.c.l.s4 1983009808
        %v2027 = vunpack.c.0.s8 %v2026
        %v2028 = vlaneseq
        %v2029 = vshrl.u32 %v2028, 7
        %v2030 = vsub.s32 %v2027, %v2029
        %v2031 = vrot.slane %v2017, %v2030
        %v2032 = vcombine.high %v2024, %v2024
        %v2033 = vcombine.high %v2031, %v2031
        %v2034 = vcombine.high %v1996, %v1996
        %v2036 = vunpack.c.l.s4 1983009808
        %v2037 = vunpack.c.0.s8 %v2036
        %v2038 = vlaneseq
        %v2039 = vshrl.u32 %v2038, 7
        %v2040 = vsub.s32 %v2037, %v2039
        %v2041 = vrot.slane %v1996, %v2040
        %v2043 = vunpack.c.l.s4 1983009808
        %v2044 = vunpack.c.0.s8 %v2043
        %v2045 = vlaneseq
        %v2046 = vshrl.u32 %v2045, 7
        %v2047 = vsub.s32 %v2044, %v2046
        %v2048 = vrot.slane %v2034, %v2047
        %v2049 = vcombine.high %v2041, %v2041
        %2050 = vrot.lane.b32.xlu0 %v2007, 87
        %v2051 = vpop.permute.xlu0 %2050
        %2052 = vrot.lane.b32.xlu0 %v2015, 87
        %v2053 = vpop.permute.xlu0 %2052
        %2054 = vrot.lane.b32.xlu0 %v2014, 87
        %v2055 = vpop.permute.xlu0 %2054
        %2056 = vrot.lane.b32.xlu0 %v2016, 87
        %v2057 = vpop.permute.xlu0 %2056
        %2058 = vrot.lane.b32.xlu0 %v2024, 87
        %v2059 = vpop.permute.xlu0 %2058
        %2060 = vrot.lane.b32.xlu0 %v2032, 87
        %v2061 = vpop.permute.xlu0 %2060
        %2062 = vrot.lane.b32.xlu0 %v2031, 87
        %v2063 = vpop.permute.xlu0 %2062
        %2064 = vrot.lane.b32.xlu0 %v2033, 87
        %v2065 = vpop.permute.xlu0 %2064
        %2066 = vrot.lane.b32.xlu0 %v2041, 87
        %v2067 = vpop.permute.xlu0 %2066
        %2068 = vrot.lane.b32.xlu0 %v2049, 87
        %v2069 = vpop.permute.xlu0 %2068
        %2070 = vrot.lane.b32.xlu0 %v2048, 87
        %v2071 = vpop.permute.xlu0 %2070
        %vm2072 = vcmask 711680
        %v2073 = vsel %vm2072, %v2051, %v2053
        %v2074 = vsel %vm2072, %v2053, %v2055
        %v2075 = vsel %vm2072, %v2055, %v2057
        %v2076 = vsel %vm2072, %v2057, %v2059
        %v2077 = vsel %vm2072, %v2059, %v2061
        %v2078 = vsel %vm2072, %v2061, %v2063
        %v2079 = vsel %vm2072, %v2063, %v2065
        %v2080 = vsel %vm2072, %v2065, %v2067
        %v2081 = vsel %vm2072, %v2067, %v2069
        %v2082 = vsel %vm2072, %v2069, %v2071
        %v2084 = vsel %vm828, %v1993, 0
        %v2087 = vsel %vm643, %v2073, 0
        %v2090 = vsel %vm643, %v2074, 0
        %v2093 = vsel %vm643, %v2075, 0
        %v2096 = vsel %vm643, %v2076, 0
        %v2099 = vsel %vm643, %v2077, 0
        %v2102 = vsel %vm643, %v2078, 0
        %v2105 = vsel %vm643, %v2079, 0
        %v2108 = vsel %vm643, %v2080, 0
        %v2111 = vsel %vm643, %v2081, 0
        %v2114 = vsel %vm643, %v2082, 0
        %2116 = vmatprep.subr.bf16.mxu0 0
        %2117 = vmatpush1.bf16.msra.mxu0 0
        %2118 = vmatprep.subr.bf16.mxu0 0
        %2119 = vmatpush1.bf16.msra.mxu0 0
        %2120 = vmatprep.subr.bf16.mxu0 0
        %2121 = vmatpush1.bf16.msra.mxu0 0
        %2122 = vmatprep.subr.bf16.mxu0 0
        %2123 = vmatpush1.bf16.msra.mxu0 0
        %2124 = vmatprep.subr.bf16.mxu0 0
        %2125 = vmatpush1.bf16.msra.mxu0 0
        %2126 = vmatprep.subr.bf16.mxu0 0
        %2127 = vmatpush1.bf16.msra.mxu0 0
        %2128 = vmatprep.subr.bf16.mxu0 0
        %2129 = vmatpush1.bf16.msra.mxu0 0
        %2130 = vmatprep.subr.bf16.mxu0 %v2090
        %2131 = vmatpush1.bf16.msra.mxu0 %v2087
        %2132 = vmatprep.subr.bf16.mxu0 0
        %2133 = vmatpush2.bf16.msra.mxu0 0
        %2134 = vmatprep.subr.bf16.mxu0 0
        %2135 = vmatpush2.bf16.msra.mxu0 0
        %2136 = vmatprep.subr.bf16.mxu0 0
        %2137 = vmatpush2.bf16.msra.mxu0 0
        %2138 = vmatprep.subr.bf16.mxu0 0
        %2139 = vmatpush2.bf16.msra.mxu0 0
        %2140 = vmatprep.subr.bf16.mxu0 0
        %2141 = vmatpush2.bf16.msra.mxu0 0
        %2142 = vmatprep.subr.bf16.mxu0 0
        %2143 = vmatpush2.bf16.msra.mxu0 0
        %2144 = vmatprep.subr.bf16.mxu0 0
        %2145 = vmatpush2.bf16.msra.mxu0 0
        %2146 = vmatprep.subr.bf16.mxu0 0
        %2147 = vmatpush2.bf16.msra.mxu0 0
        %2148 = vmatprep.mubr.bf16.mxu0 0
        %2149 = vmatmul.mubr.bf16.gmra.mxu0 %v2084
        %v2150 = vpop.f32.mrf.mxu0
        %v2151 = vadd.f32 0.0, %v2150
        %v2152 = vpop.f32.mrf.mxu0
        %v2153 = vadd.f32 0.0, %v2152
        %v2154 = vpop.f32.mrf.mxu0
        %v2155 = vpop.f32.mrf.mxu0
        %2156 = vdwg.mxu0
        %2157 = vmatprep.subr.bf16.mxu0 0
        %2158 = vmatpush1.bf16.msra.mxu0 0
        %2159 = vmatprep.subr.bf16.mxu0 0
        %2160 = vmatpush1.bf16.msra.mxu0 0
        %2161 = vmatprep.subr.bf16.mxu0 0
        %2162 = vmatpush1.bf16.msra.mxu0 0
        %2163 = vmatprep.subr.bf16.mxu0 0
        %2164 = vmatpush1.bf16.msra.mxu0 0
        %2165 = vmatprep.subr.bf16.mxu0 0
        %2166 = vmatpush1.bf16.msra.mxu0 0
        %2167 = vmatprep.subr.bf16.mxu0 0
        %2168 = vmatpush1.bf16.msra.mxu0 0
        %2169 = vmatprep.subr.bf16.mxu0 0
        %2170 = vmatpush1.bf16.msra.mxu0 0
        %2171 = vmatprep.subr.bf16.mxu0 %v2096
        %2172 = vmatpush1.bf16.msra.mxu0 %v2093
        %2173 = vmatprep.subr.bf16.mxu0 0
        %2174 = vmatpush2.bf16.msra.mxu0 0
        %2175 = vmatprep.subr.bf16.mxu0 0
        %2176 = vmatpush2.bf16.msra.mxu0 0
        %2177 = vmatprep.subr.bf16.mxu0 0
        %2178 = vmatpush2.bf16.msra.mxu0 0
        %2179 = vmatprep.subr.bf16.mxu0 0
        %2180 = vmatpush2.bf16.msra.mxu0 0
        %2181 = vmatprep.subr.bf16.mxu0 0
        %2182 = vmatpush2.bf16.msra.mxu0 0
        %2183 = vmatprep.subr.bf16.mxu0 0
        %2184 = vmatpush2.bf16.msra.mxu0 0
        %2185 = vmatprep.subr.bf16.mxu0 0
        %2186 = vmatpush2.bf16.msra.mxu0 0
        %2187 = vmatprep.subr.bf16.mxu0 0
        %2188 = vmatpush2.bf16.msra.mxu0 0
        %2189 = vmatprep.mubr.bf16.mxu0 0
        %2190 = vmatmul.mubr.bf16.gmra.mxu0 %v2084
        %v2191 = vpop.f32.mrf.mxu0
        %v2192 = vadd.f32 0.0, %v2191
        %v2193 = vpop.f32.mrf.mxu0
        %v2194 = vadd.f32 0.0, %v2193
        %v2195 = vpop.f32.mrf.mxu0
        %v2196 = vpop.f32.mrf.mxu0
        %2197 = vdwg.mxu0
        %2198 = vmatprep.subr.bf16.mxu0 0
        %2199 = vmatpush1.bf16.msra.mxu0 0
        %2200 = vmatprep.subr.bf16.mxu0 0
        %2201 = vmatpush1.bf16.msra.mxu0 0
        %2202 = vmatprep.subr.bf16.mxu0 0
        %2203 = vmatpush1.bf16.msra.mxu0 0
        %2204 = vmatprep.subr.bf16.mxu0 0
        %2205 = vmatpush1.bf16.msra.mxu0 0
        %2206 = vmatprep.subr.bf16.mxu0 0
        %2207 = vmatpush1.bf16.msra.mxu0 0
        %2208 = vmatprep.subr.bf16.mxu0 0
        %2209 = vmatpush1.bf16.msra.mxu0 0
        %2210 = vmatprep.subr.bf16.mxu0 0
        %2211 = vmatpush1.bf16.msra.mxu0 0
        %2212 = vmatprep.subr.bf16.mxu0 %v2102
        %2213 = vmatpush1.bf16.msra.mxu0 %v2099
        %2214 = vmatprep.subr.bf16.mxu0 0
        %2215 = vmatpush2.bf16.msra.mxu0 0
        %2216 = vmatprep.subr.bf16.mxu0 0
        %2217 = vmatpush2.bf16.msra.mxu0 0
        %2218 = vmatprep.subr.bf16.mxu0 0
        %2219 = vmatpush2.bf16.msra.mxu0 0
        %2220 = vmatprep.subr.bf16.mxu0 0
        %2221 = vmatpush2.bf16.msra.mxu0 0
        %2222 = vmatprep.subr.bf16.mxu0 0
        %2223 = vmatpush2.bf16.msra.mxu0 0
        %2224 = vmatprep.subr.bf16.mxu0 0
        %2225 = vmatpush2.bf16.msra.mxu0 0
        %2226 = vmatprep.subr.bf16.mxu0 0
        %2227 = vmatpush2.bf16.msra.mxu0 0
        %2228 = vmatprep.subr.bf16.mxu0 0
        %2229 = vmatpush2.bf16.msra.mxu0 0
        %2230 = vmatprep.mubr.bf16.mxu0 0
        %2231 = vmatmul.mubr.bf16.gmra.mxu0 %v2084
        %v2232 = vpop.f32.mrf.mxu0
        %v2233 = vadd.f32 0.0, %v2232
        %v2234 = vpop.f32.mrf.mxu0
        %v2235 = vadd.f32 0.0, %v2234
        %v2236 = vpop.f32.mrf.mxu0
        %v2237 = vpop.f32.mrf.mxu0
        %2238 = vdwg.mxu0
        %2239 = vmatprep.subr.bf16.mxu0 0
        %2240 = vmatpush1.bf16.msra.mxu0 0
        %2241 = vmatprep.subr.bf16.mxu0 0
        %2242 = vmatpush1.bf16.msra.mxu0 0
        %2243 = vmatprep.subr.bf16.mxu0 0
        %2244 = vmatpush1.bf16.msra.mxu0 0
        %2245 = vmatprep.subr.bf16.mxu0 0
        %2246 = vmatpush1.bf16.msra.mxu0 0
        %2247 = vmatprep.subr.bf16.mxu0 0
        %2248 = vmatpush1.bf16.msra.mxu0 0
        %2249 = vmatprep.subr.bf16.mxu0 0
        %2250 = vmatpush1.bf16.msra.mxu0 0
        %2251 = vmatprep.subr.bf16.mxu0 0
        %2252 = vmatpush1.bf16.msra.mxu0 0
        %2253 = vmatprep.subr.bf16.mxu0 %v2108
        %2254 = vmatpush1.bf16.msra.mxu0 %v2105
        %2255 = vmatprep.subr.bf16.mxu0 0
        %2256 = vmatpush2.bf16.msra.mxu0 0
        %2257 = vmatprep.subr.bf16.mxu0 0
        %2258 = vmatpush2.bf16.msra.mxu0 0
        %2259 = vmatprep.subr.bf16.mxu0 0
        %2260 = vmatpush2.bf16.msra.mxu0 0
        %2261 = vmatprep.subr.bf16.mxu0 0
        %2262 = vmatpush2.bf16.msra.mxu0 0
        %2263 = vmatprep.subr.bf16.mxu0 0
        %2264 = vmatpush2.bf16.msra.mxu0 0
        %2265 = vmatprep.subr.bf16.mxu0 0
        %2266 = vmatpush2.bf16.msra.mxu0 0
        %2267 = vmatprep.subr.bf16.mxu0 0
        %2268 = vmatpush2.bf16.msra.mxu0 0
        %2269 = vmatprep.subr.bf16.mxu0 0
        %2270 = vmatpush2.bf16.msra.mxu0 0
        %2271 = vmatprep.mubr.bf16.mxu0 0
        %2272 = vmatmul.mubr.bf16.gmra.mxu0 %v2084
        %v2273 = vpop.f32.mrf.mxu0
        %v2274 = vadd.f32 0.0, %v2273
        %v2275 = vpop.f32.mrf.mxu0
        %v2276 = vadd.f32 0.0, %v2275
        %v2277 = vpop.f32.mrf.mxu0
        %v2278 = vpop.f32.mrf.mxu0
        %2279 = vdwg.mxu0
        %2280 = vmatprep.subr.bf16.mxu0 0
        %2281 = vmatpush1.bf16.msra.mxu0 0
        %2282 = vmatprep.subr.bf16.mxu0 0
        %2283 = vmatpush1.bf16.msra.mxu0 0
        %2284 = vmatprep.subr.bf16.mxu0 0
        %2285 = vmatpush1.bf16.msra.mxu0 0
        %2286 = vmatprep.subr.bf16.mxu0 0
        %2287 = vmatpush1.bf16.msra.mxu0 0
        %2288 = vmatprep.subr.bf16.mxu0 0
        %2289 = vmatpush1.bf16.msra.mxu0 0
        %2290 = vmatprep.subr.bf16.mxu0 0
        %2291 = vmatpush1.bf16.msra.mxu0 0
        %2292 = vmatprep.subr.bf16.mxu0 0
        %2293 = vmatpush1.bf16.msra.mxu0 0
        %2294 = vmatprep.subr.bf16.mxu0 %v2114
        %2295 = vmatpush1.bf16.msra.mxu0 %v2111
        %2296 = vmatprep.subr.bf16.mxu0 0
        %2297 = vmatpush2.bf16.msra.mxu0 0
        %2298 = vmatprep.subr.bf16.mxu0 0
        %2299 = vmatpush2.bf16.msra.mxu0 0
        %2300 = vmatprep.subr.bf16.mxu0 0
        %2301 = vmatpush2.bf16.msra.mxu0 0
        %2302 = vmatprep.subr.bf16.mxu0 0
        %2303 = vmatpush2.bf16.msra.mxu0 0
        %2304 = vmatprep.subr.bf16.mxu0 0
        %2305 = vmatpush2.bf16.msra.mxu0 0
        %2306 = vmatprep.subr.bf16.mxu0 0
        %2307 = vmatpush2.bf16.msra.mxu0 0
        %2308 = vmatprep.subr.bf16.mxu0 0
        %2309 = vmatpush2.bf16.msra.mxu0 0
        %2310 = vmatprep.subr.bf16.mxu0 0
        %2311 = vmatpush2.bf16.msra.mxu0 0
        %2312 = vmatprep.mubr.bf16.mxu0 0
        %2313 = vmatmul.mubr.bf16.gmra.mxu0 %v2084
        %v2314 = vpop.f32.mrf.mxu0
        %v2315 = vadd.f32 0.0, %v2314
        %v2316 = vpop.f32.mrf.mxu0
        %v2317 = vadd.f32 0.0, %v2316
        %v2318 = vpop.f32.mrf.mxu0
        %v2319 = vpop.f32.mrf.mxu0
        %2320 = vdwg.mxu0
        %v2321 = vadd.f32 %v1982, %v2151
        %v2322 = vadd.f32 %v1983, %v2153
        %v2323 = vadd.f32 %v1984, %v2192
        %v2324 = vadd.f32 %v1985, %v2194
        %v2325 = vadd.f32 %v1986, %v2233
        %v2326 = vadd.f32 %v1987, %v2235
        %v2327 = vadd.f32 %v1988, %v2274
        %v2328 = vadd.f32 %v1989, %v2276
        %v2329 = vadd.f32 %v1990, %v2315
        %v2330 = vadd.f32 %v1991, %v2317
        %s2331 = scalar_lea.vmem %s0, 20
        %v2332 = vld [vmem:[%s2331] sm:$0xf]
        %v2333 = vld [vmem:[#allocation2] sm:$0xff]
        %v2334 = vld [vmem:[#allocation2 + $0x8] sm:$0xff]
        %v2335 = vld [vmem:[#allocation2 + $0x10] sm:$0x3f]
        %v2339 = vcombine.high %v2333, %v2333
        %v2341 = vunpack.c.l.s4 1983009808
        %v2342 = vunpack.c.0.s8 %v2341
        %v2343 = vlaneseq
        %v2344 = vshrl.u32 %v2343, 7
        %v2345 = vsub.s32 %v2342, %v2344
        %v2346 = vrot.slane %v2333, %v2345
        %v2348 = vunpack.c.l.s4 1983009808
        %v2349 = vunpack.c.0.s8 %v2348
        %v2350 = vlaneseq
        %v2351 = vshrl.u32 %v2350, 7
        %v2352 = vsub.s32 %v2349, %v2351
        %v2353 = vrot.slane %v2339, %v2352
        %v2354 = vcombine.high %v2346, %v2346
        %v2355 = vcombine.high %v2353, %v2353
        %v2356 = vcombine.high %v2334, %v2334
        %v2358 = vunpack.c.l.s4 1983009808
        %v2359 = vunpack.c.0.s8 %v2358
        %v2360 = vlaneseq
        %v2361 = vshrl.u32 %v2360, 7
        %v2362 = vsub.s32 %v2359, %v2361
        %v2363 = vrot.slane %v2334, %v2362
        %v2365 = vunpack.c.l.s4 1983009808
        %v2366 = vunpack.c.0.s8 %v2365
        %v2367 = vlaneseq
        %v2368 = vshrl.u32 %v2367, 7
        %v2369 = vsub.s32 %v2366, %v2368
        %v2370 = vrot.slane %v2356, %v2369
        %v2371 = vcombine.high %v2363, %v2363
        %v2372 = vcombine.high %v2370, %v2370
        %v2373 = vcombine.high %v2335, %v2335
        %v2375 = vunpack.c.l.s4 1983009808
        %v2376 = vunpack.c.0.s8 %v2375
        %v2377 = vlaneseq
        %v2378 = vshrl.u32 %v2377, 7
        %v2379 = vsub.s32 %v2376, %v2378
        %v2380 = vrot.slane %v2335, %v2379
        %v2382 = vunpack.c.l.s4 1983009808
        %v2383 = vunpack.c.0.s8 %v2382
        %v2384 = vlaneseq
        %v2385 = vshrl.u32 %v2384, 7
        %v2386 = vsub.s32 %v2383, %v2385
        %v2387 = vrot.slane %v2373, %v2386
        %v2388 = vcombine.high %v2380, %v2380
        %2389 = vrot.lane.b32.xlu0 %v2346, 86
        %v2390 = vpop.permute.xlu0 %2389
        %2391 = vrot.lane.b32.xlu0 %v2354, 86
        %v2392 = vpop.permute.xlu0 %2391
        %2393 = vrot.lane.b32.xlu0 %v2353, 86
        %v2394 = vpop.permute.xlu0 %2393
        %2395 = vrot.lane.b32.xlu0 %v2355, 86
        %v2396 = vpop.permute.xlu0 %2395
        %2397 = vrot.lane.b32.xlu0 %v2363, 86
        %v2398 = vpop.permute.xlu0 %2397
        %2399 = vrot.lane.b32.xlu0 %v2371, 86
        %v2400 = vpop.permute.xlu0 %2399
        %2401 = vrot.lane.b32.xlu0 %v2370, 86
        %v2402 = vpop.permute.xlu0 %2401
        %2403 = vrot.lane.b32.xlu0 %v2372, 86
        %v2404 = vpop.permute.xlu0 %2403
        %2405 = vrot.lane.b32.xlu0 %v2380, 86
        %v2406 = vpop.permute.xlu0 %2405
        %2407 = vrot.lane.b32.xlu0 %v2388, 86
        %v2408 = vpop.permute.xlu0 %2407
        %2409 = vrot.lane.b32.xlu0 %v2387, 86
        %v2410 = vpop.permute.xlu0 %2409
        %vm2411 = vcmask 703488
        %v2412 = vsel %vm2411, %v2390, %v2392
        %v2413 = vsel %vm2411, %v2392, %v2394
        %v2414 = vsel %vm2411, %v2394, %v2396
        %v2415 = vsel %vm2411, %v2396, %v2398
        %v2416 = vsel %vm2411, %v2398, %v2400
        %v2417 = vsel %vm2411, %v2400, %v2402
        %v2418 = vsel %vm2411, %v2402, %v2404
        %v2419 = vsel %vm2411, %v2404, %v2406
        %v2420 = vsel %vm2411, %v2406, %v2408
        %v2421 = vsel %vm2411, %v2408, %v2410
        %v2423 = vsel %vm828, %v2332, 0
        %v2426 = vsel %vm643, %v2412, 0
        %v2429 = vsel %vm643, %v2413, 0
        %v2432 = vsel %vm643, %v2414, 0
        %v2435 = vsel %vm643, %v2415, 0
        %v2438 = vsel %vm643, %v2416, 0
        %v2441 = vsel %vm643, %v2417, 0
        %v2444 = vsel %vm643, %v2418, 0
        %v2447 = vsel %vm643, %v2419, 0
        %v2450 = vsel %vm643, %v2420, 0
        %v2453 = vsel %vm643, %v2421, 0
        %2455 = vmatprep.subr.bf16.mxu0 0
        %2456 = vmatpush1.bf16.msra.mxu0 0
        %2457 = vmatprep.subr.bf16.mxu0 0
        %2458 = vmatpush1.bf16.msra.mxu0 0
        %2459 = vmatprep.subr.bf16.mxu0 0
        %2460 = vmatpush1.bf16.msra.mxu0 0
        %2461 = vmatprep.subr.bf16.mxu0 0
        %2462 = vmatpush1.bf16.msra.mxu0 0
        %2463 = vmatprep.subr.bf16.mxu0 0
        %2464 = vmatpush1.bf16.msra.mxu0 0
        %2465 = vmatprep.subr.bf16.mxu0 0
        %2466 = vmatpush1.bf16.msra.mxu0 0
        %2467 = vmatprep.subr.bf16.mxu0 0
        %2468 = vmatpush1.bf16.msra.mxu0 0
        %2469 = vmatprep.subr.bf16.mxu0 %v2429
        %2470 = vmatpush1.bf16.msra.mxu0 %v2426
        %2471 = vmatprep.subr.bf16.mxu0 0
        %2472 = vmatpush2.bf16.msra.mxu0 0
        %2473 = vmatprep.subr.bf16.mxu0 0
        %2474 = vmatpush2.bf16.msra.mxu0 0
        %2475 = vmatprep.subr.bf16.mxu0 0
        %2476 = vmatpush2.bf16.msra.mxu0 0
        %2477 = vmatprep.subr.bf16.mxu0 0
        %2478 = vmatpush2.bf16.msra.mxu0 0
        %2479 = vmatprep.subr.bf16.mxu0 0
        %2480 = vmatpush2.bf16.msra.mxu0 0
        %2481 = vmatprep.subr.bf16.mxu0 0
        %2482 = vmatpush2.bf16.msra.mxu0 0
        %2483 = vmatprep.subr.bf16.mxu0 0
        %2484 = vmatpush2.bf16.msra.mxu0 0
        %2485 = vmatprep.subr.bf16.mxu0 0
        %2486 = vmatpush2.bf16.msra.mxu0 0
        %2487 = vmatprep.mubr.bf16.mxu0 0
        %2488 = vmatmul.mubr.bf16.gmra.mxu0 %v2423
        %v2489 = vpop.f32.mrf.mxu0
        %v2490 = vadd.f32 0.0, %v2489
        %v2491 = vpop.f32.mrf.mxu0
        %v2492 = vadd.f32 0.0, %v2491
        %v2493 = vpop.f32.mrf.mxu0
        %v2494 = vpop.f32.mrf.mxu0
        %2495 = vdwg.mxu0
        %2496 = vmatprep.subr.bf16.mxu0 0
        %2497 = vmatpush1.bf16.msra.mxu0 0
        %2498 = vmatprep.subr.bf16.mxu0 0
        %2499 = vmatpush1.bf16.msra.mxu0 0
        %2500 = vmatprep.subr.bf16.mxu0 0
        %2501 = vmatpush1.bf16.msra.mxu0 0
        %2502 = vmatprep.subr.bf16.mxu0 0
        %2503 = vmatpush1.bf16.msra.mxu0 0
        %2504 = vmatprep.subr.bf16.mxu0 0
        %2505 = vmatpush1.bf16.msra.mxu0 0
        %2506 = vmatprep.subr.bf16.mxu0 0
        %2507 = vmatpush1.bf16.msra.mxu0 0
        %2508 = vmatprep.subr.bf16.mxu0 0
        %2509 = vmatpush1.bf16.msra.mxu0 0
        %2510 = vmatprep.subr.bf16.mxu0 %v2435
        %2511 = vmatpush1.bf16.msra.mxu0 %v2432
        %2512 = vmatprep.subr.bf16.mxu0 0
        %2513 = vmatpush2.bf16.msra.mxu0 0
        %2514 = vmatprep.subr.bf16.mxu0 0
        %2515 = vmatpush2.bf16.msra.mxu0 0
        %2516 = vmatprep.subr.bf16.mxu0 0
        %2517 = vmatpush2.bf16.msra.mxu0 0
        %2518 = vmatprep.subr.bf16.mxu0 0
        %2519 = vmatpush2.bf16.msra.mxu0 0
        %2520 = vmatprep.subr.bf16.mxu0 0
        %2521 = vmatpush2.bf16.msra.mxu0 0
        %2522 = vmatprep.subr.bf16.mxu0 0
        %2523 = vmatpush2.bf16.msra.mxu0 0
        %2524 = vmatprep.subr.bf16.mxu0 0
        %2525 = vmatpush2.bf16.msra.mxu0 0
        %2526 = vmatprep.subr.bf16.mxu0 0
        %2527 = vmatpush2.bf16.msra.mxu0 0
        %2528 = vmatprep.mubr.bf16.mxu0 0
        %2529 = vmatmul.mubr.bf16.gmra.mxu0 %v2423
        %v2530 = vpop.f32.mrf.mxu0
        %v2531 = vadd.f32 0.0, %v2530
        %v2532 = vpop.f32.mrf.mxu0
        %v2533 = vadd.f32 0.0, %v2532
        %v2534 = vpop.f32.mrf.mxu0
        %v2535 = vpop.f32.mrf.mxu0
        %2536 = vdwg.mxu0
        %2537 = vmatprep.subr.bf16.mxu0 0
        %2538 = vmatpush1.bf16.msra.mxu0 0
        %2539 = vmatprep.subr.bf16.mxu0 0
        %2540 = vmatpush1.bf16.msra.mxu0 0
        %2541 = vmatprep.subr.bf16.mxu0 0
        %2542 = vmatpush1.bf16.msra.mxu0 0
        %2543 = vmatprep.subr.bf16.mxu0 0
        %2544 = vmatpush1.bf16.msra.mxu0 0
        %2545 = vmatprep.subr.bf16.mxu0 0
        %2546 = vmatpush1.bf16.msra.mxu0 0
        %2547 = vmatprep.subr.bf16.mxu0 0
        %2548 = vmatpush1.bf16.msra.mxu0 0
        %2549 = vmatprep.subr.bf16.mxu0 0
        %2550 = vmatpush1.bf16.msra.mxu0 0
        %2551 = vmatprep.subr.bf16.mxu0 %v2441
        %2552 = vmatpush1.bf16.msra.mxu0 %v2438
        %2553 = vmatprep.subr.bf16.mxu0 0
        %2554 = vmatpush2.bf16.msra.mxu0 0
        %2555 = vmatprep.subr.bf16.mxu0 0
        %2556 = vmatpush2.bf16.msra.mxu0 0
        %2557 = vmatprep.subr.bf16.mxu0 0
        %2558 = vmatpush2.bf16.msra.mxu0 0
        %2559 = vmatprep.subr.bf16.mxu0 0
        %2560 = vmatpush2.bf16.msra.mxu0 0
        %2561 = vmatprep.subr.bf16.mxu0 0
        %2562 = vmatpush2.bf16.msra.mxu0 0
        %2563 = vmatprep.subr.bf16.mxu0 0
        %2564 = vmatpush2.bf16.msra.mxu0 0
        %2565 = vmatprep.subr.bf16.mxu0 0
        %2566 = vmatpush2.bf16.msra.mxu0 0
        %2567 = vmatprep.subr.bf16.mxu0 0
        %2568 = vmatpush2.bf16.msra.mxu0 0
        %2569 = vmatprep.mubr.bf16.mxu0 0
        %2570 = vmatmul.mubr.bf16.gmra.mxu0 %v2423
        %v2571 = vpop.f32.mrf.mxu0
        %v2572 = vadd.f32 0.0, %v2571
        %v2573 = vpop.f32.mrf.mxu0
        %v2574 = vadd.f32 0.0, %v2573
        %v2575 = vpop.f32.mrf.mxu0
        %v2576 = vpop.f32.mrf.mxu0
        %2577 = vdwg.mxu0
        %2578 = vmatprep.subr.bf16.mxu0 0
        %2579 = vmatpush1.bf16.msra.mxu0 0
        %2580 = vmatprep.subr.bf16.mxu0 0
        %2581 = vmatpush1.bf16.msra.mxu0 0
        %2582 = vmatprep.subr.bf16.mxu0 0
        %2583 = vmatpush1.bf16.msra.mxu0 0
        %2584 = vmatprep.subr.bf16.mxu0 0
        %2585 = vmatpush1.bf16.msra.mxu0 0
        %2586 = vmatprep.subr.bf16.mxu0 0
        %2587 = vmatpush1.bf16.msra.mxu0 0
        %2588 = vmatprep.subr.bf16.mxu0 0
        %2589 = vmatpush1.bf16.msra.mxu0 0
        %2590 = vmatprep.subr.bf16.mxu0 0
        %2591 = vmatpush1.bf16.msra.mxu0 0
        %2592 = vmatprep.subr.bf16.mxu0 %v2447
        %2593 = vmatpush1.bf16.msra.mxu0 %v2444
        %2594 = vmatprep.subr.bf16.mxu0 0
        %2595 = vmatpush2.bf16.msra.mxu0 0
        %2596 = vmatprep.subr.bf16.mxu0 0
        %2597 = vmatpush2.bf16.msra.mxu0 0
        %2598 = vmatprep.subr.bf16.mxu0 0
        %2599 = vmatpush2.bf16.msra.mxu0 0
        %2600 = vmatprep.subr.bf16.mxu0 0
        %2601 = vmatpush2.bf16.msra.mxu0 0
        %2602 = vmatprep.subr.bf16.mxu0 0
        %2603 = vmatpush2.bf16.msra.mxu0 0
        %2604 = vmatprep.subr.bf16.mxu0 0
        %2605 = vmatpush2.bf16.msra.mxu0 0
        %2606 = vmatprep.subr.bf16.mxu0 0
        %2607 = vmatpush2.bf16.msra.mxu0 0
        %2608 = vmatprep.subr.bf16.mxu0 0
        %2609 = vmatpush2.bf16.msra.mxu0 0
        %2610 = vmatprep.mubr.bf16.mxu0 0
        %2611 = vmatmul.mubr.bf16.gmra.mxu0 %v2423
        %v2612 = vpop.f32.mrf.mxu0
        %v2613 = vadd.f32 0.0, %v2612
        %v2614 = vpop.f32.mrf.mxu0
        %v2615 = vadd.f32 0.0, %v2614
        %v2616 = vpop.f32.mrf.mxu0
        %v2617 = vpop.f32.mrf.mxu0
        %2618 = vdwg.mxu0
        %2619 = vmatprep.subr.bf16.mxu0 0
        %2620 = vmatpush1.bf16.msra.mxu0 0
        %2621 = vmatprep.subr.bf16.mxu0 0
        %2622 = vmatpush1.bf16.msra.mxu0 0
        %2623 = vmatprep.subr.bf16.mxu0 0
        %2624 = vmatpush1.bf16.msra.mxu0 0
        %2625 = vmatprep.subr.bf16.mxu0 0
        %2626 = vmatpush1.bf16.msra.mxu0 0
        %2627 = vmatprep.subr.bf16.mxu0 0
        %2628 = vmatpush1.bf16.msra.mxu0 0
        %2629 = vmatprep.subr.bf16.mxu0 0
        %2630 = vmatpush1.bf16.msra.mxu0 0
        %2631 = vmatprep.subr.bf16.mxu0 0
        %2632 = vmatpush1.bf16.msra.mxu0 0
        %2633 = vmatprep.subr.bf16.mxu0 %v2453
        %2634 = vmatpush1.bf16.msra.mxu0 %v2450
        %2635 = vmatprep.subr.bf16.mxu0 0
        %2636 = vmatpush2.bf16.msra.mxu0 0
        %2637 = vmatprep.subr.bf16.mxu0 0
        %2638 = vmatpush2.bf16.msra.mxu0 0
        %2639 = vmatprep.subr.bf16.mxu0 0
        %2640 = vmatpush2.bf16.msra.mxu0 0
        %2641 = vmatprep.subr.bf16.mxu0 0
        %2642 = vmatpush2.bf16.msra.mxu0 0
        %2643 = vmatprep.subr.bf16.mxu0 0
        %2644 = vmatpush2.bf16.msra.mxu0 0
        %2645 = vmatprep.subr.bf16.mxu0 0
        %2646 = vmatpush2.bf16.msra.mxu0 0
        %2647 = vmatprep.subr.bf16.mxu0 0
        %2648 = vmatpush2.bf16.msra.mxu0 0
        %2649 = vmatprep.subr.bf16.mxu0 0
        %2650 = vmatpush2.bf16.msra.mxu0 0
        %2651 = vmatprep.mubr.bf16.mxu0 0
        %2652 = vmatmul.mubr.bf16.gmra.mxu0 %v2423
        %v2653 = vpop.f32.mrf.mxu0
        %v2654 = vadd.f32 0.0, %v2653
        %v2655 = vpop.f32.mrf.mxu0
        %v2656 = vadd.f32 0.0, %v2655
        %v2657 = vpop.f32.mrf.mxu0
        %v2658 = vpop.f32.mrf.mxu0
        %2659 = vdwg.mxu0
        %v2660 = vadd.f32 %v2321, %v2490
        %v2661 = vadd.f32 %v2322, %v2492
        %v2662 = vadd.f32 %v2323, %v2531
        %v2663 = vadd.f32 %v2324, %v2533
        %v2664 = vadd.f32 %v2325, %v2572
        %v2665 = vadd.f32 %v2326, %v2574
        %v2666 = vadd.f32 %v2327, %v2613
        %v2667 = vadd.f32 %v2328, %v2615
        %v2668 = vadd.f32 %v2329, %v2654
        %v2669 = vadd.f32 %v2330, %v2656
        %s2670 = scalar_lea.vmem %s0, 24
        %v2671 = vld [vmem:[%s2670] sm:$0xf]
        %v2672 = vld [vmem:[#allocation2] sm:$0xff]
        %v2673 = vld [vmem:[#allocation2 + $0x8] sm:$0xff]
        %v2674 = vld [vmem:[#allocation2 + $0x10] sm:$0x3f]
        %v2678 = vcombine.high %v2672, %v2672
        %v2680 = vunpack.c.l.s4 1983009808
        %v2681 = vunpack.c.0.s8 %v2680
        %v2682 = vlaneseq
        %v2683 = vshrl.u32 %v2682, 7
        %v2684 = vsub.s32 %v2681, %v2683
        %v2685 = vrot.slane %v2672, %v2684
        %v2687 = vunpack.c.l.s4 1983009808
        %v2688 = vunpack.c.0.s8 %v2687
        %v2689 = vlaneseq
        %v2690 = vshrl.u32 %v2689, 7
        %v2691 = vsub.s32 %v2688, %v2690
        %v2692 = vrot.slane %v2678, %v2691
        %v2693 = vcombine.high %v2685, %v2685
        %v2694 = vcombine.high %v2692, %v2692
        %v2695 = vcombine.high %v2673, %v2673
        %v2697 = vunpack.c.l.s4 1983009808
        %v2698 = vunpack.c.0.s8 %v2697
        %v2699 = vlaneseq
        %v2700 = vshrl.u32 %v2699, 7
        %v2701 = vsub.s32 %v2698, %v2700
        %v2702 = vrot.slane %v2673, %v2701
        %v2704 = vunpack.c.l.s4 1983009808
        %v2705 = vunpack.c.0.s8 %v2704
        %v2706 = vlaneseq
        %v2707 = vshrl.u32 %v2706, 7
        %v2708 = vsub.s32 %v2705, %v2707
        %v2709 = vrot.slane %v2695, %v2708
        %v2710 = vcombine.high %v2702, %v2702
        %v2711 = vcombine.high %v2709, %v2709
        %v2712 = vcombine.high %v2674, %v2674
        %v2714 = vunpack.c.l.s4 1983009808
        %v2715 = vunpack.c.0.s8 %v2714
        %v2716 = vlaneseq
        %v2717 = vshrl.u32 %v2716, 7
        %v2718 = vsub.s32 %v2715, %v2717
        %v2719 = vrot.slane %v2674, %v2718
        %v2721 = vunpack.c.l.s4 1983009808
        %v2722 = vunpack.c.0.s8 %v2721
        %v2723 = vlaneseq
        %v2724 = vshrl.u32 %v2723, 7
        %v2725 = vsub.s32 %v2722, %v2724
        %v2726 = vrot.slane %v2712, %v2725
        %v2727 = vcombine.high %v2719, %v2719
        %2728 = vrot.lane.b32.xlu0 %v2685, 48
        %v2729 = vpop.permute.xlu0 %2728
        %2730 = vrot.lane.b32.xlu0 %v2693, 48
        %v2731 = vpop.permute.xlu0 %2730
        %2732 = vrot.lane.b32.xlu0 %v2692, 48
        %v2733 = vpop.permute.xlu0 %2732
        %2734 = vrot.lane.b32.xlu0 %v2694, 48
        %v2735 = vpop.permute.xlu0 %2734
        %2736 = vrot.lane.b32.xlu0 %v2702, 48
        %v2737 = vpop.permute.xlu0 %2736
        %2738 = vrot.lane.b32.xlu0 %v2710, 48
        %v2739 = vpop.permute.xlu0 %2738
        %2740 = vrot.lane.b32.xlu0 %v2709, 48
        %v2741 = vpop.permute.xlu0 %2740
        %2742 = vrot.lane.b32.xlu0 %v2711, 48
        %v2743 = vpop.permute.xlu0 %2742
        %2744 = vrot.lane.b32.xlu0 %v2719, 48
        %v2745 = vpop.permute.xlu0 %2744
        %2746 = vrot.lane.b32.xlu0 %v2727, 48
        %v2747 = vpop.permute.xlu0 %2746
        %2748 = vrot.lane.b32.xlu0 %v2726, 48
        %v2749 = vpop.permute.xlu0 %2748
        %vm2750 = vcmask 392192
        %v2751 = vsel %vm2750, %v2729, %v2731
        %v2752 = vsel %vm2750, %v2731, %v2733
        %v2753 = vsel %vm2750, %v2733, %v2735
        %v2754 = vsel %vm2750, %v2735, %v2737
        %v2755 = vsel %vm2750, %v2737, %v2739
        %v2756 = vsel %vm2750, %v2739, %v2741
        %v2757 = vsel %vm2750, %v2741, %v2743
        %v2758 = vsel %vm2750, %v2743, %v2745
        %v2759 = vsel %vm2750, %v2745, %v2747
        %v2760 = vsel %vm2750, %v2747, %v2749
        %v2762 = vsel %vm828, %v2671, 0
        %v2765 = vsel %vm643, %v2751, 0
        %v2768 = vsel %vm643, %v2752, 0
        %v2771 = vsel %vm643, %v2753, 0
        %v2774 = vsel %vm643, %v2754, 0
        %v2777 = vsel %vm643, %v2755, 0
        %v2780 = vsel %vm643, %v2756, 0
        %v2783 = vsel %vm643, %v2757, 0
        %v2786 = vsel %vm643, %v2758, 0
        %v2789 = vsel %vm643, %v2759, 0
        %v2792 = vsel %vm643, %v2760, 0
        %2794 = vmatprep.subr.bf16.mxu0 0
        %2795 = vmatpush1.bf16.msra.mxu0 0
        %2796 = vmatprep.subr.bf16.mxu0 0
        %2797 = vmatpush1.bf16.msra.mxu0 0
        %2798 = vmatprep.subr.bf16.mxu0 0
        %2799 = vmatpush1.bf16.msra.mxu0 0
        %2800 = vmatprep.subr.bf16.mxu0 0
        %2801 = vmatpush1.bf16.msra.mxu0 0
        %2802 = vmatprep.subr.bf16.mxu0 0
        %2803 = vmatpush1.bf16.msra.mxu0 0
        %2804 = vmatprep.subr.bf16.mxu0 0
        %2805 = vmatpush1.bf16.msra.mxu0 0
        %2806 = vmatprep.subr.bf16.mxu0 0
        %2807 = vmatpush1.bf16.msra.mxu0 0
        %2808 = vmatprep.subr.bf16.mxu0 %v2768
        %2809 = vmatpush1.bf16.msra.mxu0 %v2765
        %2810 = vmatprep.subr.bf16.mxu0 0
        %2811 = vmatpush2.bf16.msra.mxu0 0
        %2812 = vmatprep.subr.bf16.mxu0 0
        %2813 = vmatpush2.bf16.msra.mxu0 0
        %2814 = vmatprep.subr.bf16.mxu0 0
        %2815 = vmatpush2.bf16.msra.mxu0 0
        %2816 = vmatprep.subr.bf16.mxu0 0
        %2817 = vmatpush2.bf16.msra.mxu0 0
        %2818 = vmatprep.subr.bf16.mxu0 0
        %2819 = vmatpush2.bf16.msra.mxu0 0
        %2820 = vmatprep.subr.bf16.mxu0 0
        %2821 = vmatpush2.bf16.msra.mxu0 0
        %2822 = vmatprep.subr.bf16.mxu0 0
        %2823 = vmatpush2.bf16.msra.mxu0 0
        %2824 = vmatprep.subr.bf16.mxu0 0
        %2825 = vmatpush2.bf16.msra.mxu0 0
        %2826 = vmatprep.mubr.bf16.mxu0 0
        %2827 = vmatmul.mubr.bf16.gmra.mxu0 %v2762
        %v2828 = vpop.f32.mrf.mxu0
        %v2829 = vadd.f32 0.0, %v2828
        %v2830 = vpop.f32.mrf.mxu0
        %v2831 = vadd.f32 0.0, %v2830
        %v2832 = vpop.f32.mrf.mxu0
        %v2833 = vpop.f32.mrf.mxu0
        %2834 = vdwg.mxu0
        %2835 = vmatprep.subr.bf16.mxu0 0
        %2836 = vmatpush1.bf16.msra.mxu0 0
        %2837 = vmatprep.subr.bf16.mxu0 0
        %2838 = vmatpush1.bf16.msra.mxu0 0
        %2839 = vmatprep.subr.bf16.mxu0 0
        %2840 = vmatpush1.bf16.msra.mxu0 0
        %2841 = vmatprep.subr.bf16.mxu0 0
        %2842 = vmatpush1.bf16.msra.mxu0 0
        %2843 = vmatprep.subr.bf16.mxu0 0
        %2844 = vmatpush1.bf16.msra.mxu0 0
        %2845 = vmatprep.subr.bf16.mxu0 0
        %2846 = vmatpush1.bf16.msra.mxu0 0
        %2847 = vmatprep.subr.bf16.mxu0 0
        %2848 = vmatpush1.bf16.msra.mxu0 0
        %2849 = vmatprep.subr.bf16.mxu0 %v2774
        %2850 = vmatpush1.bf16.msra.mxu0 %v2771
        %2851 = vmatprep.subr.bf16.mxu0 0
        %2852 = vmatpush2.bf16.msra.mxu0 0
        %2853 = vmatprep.subr.bf16.mxu0 0
        %2854 = vmatpush2.bf16.msra.mxu0 0
        %2855 = vmatprep.subr.bf16.mxu0 0
        %2856 = vmatpush2.bf16.msra.mxu0 0
        %2857 = vmatprep.subr.bf16.mxu0 0
        %2858 = vmatpush2.bf16.msra.mxu0 0
        %2859 = vmatprep.subr.bf16.mxu0 0
        %2860 = vmatpush2.bf16.msra.mxu0 0
        %2861 = vmatprep.subr.bf16.mxu0 0
        %2862 = vmatpush2.bf16.msra.mxu0 0
        %2863 = vmatprep.subr.bf16.mxu0 0
        %2864 = vmatpush2.bf16.msra.mxu0 0
        %2865 = vmatprep.subr.bf16.mxu0 0
        %2866 = vmatpush2.bf16.msra.mxu0 0
        %2867 = vmatprep.mubr.bf16.mxu0 0
        %2868 = vmatmul.mubr.bf16.gmra.mxu0 %v2762
        %v2869 = vpop.f32.mrf.mxu0
        %v2870 = vadd.f32 0.0, %v2869
        %v2871 = vpop.f32.mrf.mxu0
        %v2872 = vadd.f32 0.0, %v2871
        %v2873 = vpop.f32.mrf.mxu0
        %v2874 = vpop.f32.mrf.mxu0
        %2875 = vdwg.mxu0
        %2876 = vmatprep.subr.bf16.mxu0 0
        %2877 = vmatpush1.bf16.msra.mxu0 0
        %2878 = vmatprep.subr.bf16.mxu0 0
        %2879 = vmatpush1.bf16.msra.mxu0 0
        %2880 = vmatprep.subr.bf16.mxu0 0
        %2881 = vmatpush1.bf16.msra.mxu0 0
        %2882 = vmatprep.subr.bf16.mxu0 0
        %2883 = vmatpush1.bf16.msra.mxu0 0
        %2884 = vmatprep.subr.bf16.mxu0 0
        %2885 = vmatpush1.bf16.msra.mxu0 0
        %2886 = vmatprep.subr.bf16.mxu0 0
        %2887 = vmatpush1.bf16.msra.mxu0 0
        %2888 = vmatprep.subr.bf16.mxu0 0
        %2889 = vmatpush1.bf16.msra.mxu0 0
        %2890 = vmatprep.subr.bf16.mxu0 %v2780
        %2891 = vmatpush1.bf16.msra.mxu0 %v2777
        %2892 = vmatprep.subr.bf16.mxu0 0
        %2893 = vmatpush2.bf16.msra.mxu0 0
        %2894 = vmatprep.subr.bf16.mxu0 0
        %2895 = vmatpush2.bf16.msra.mxu0 0
        %2896 = vmatprep.subr.bf16.mxu0 0
        %2897 = vmatpush2.bf16.msra.mxu0 0
        %2898 = vmatprep.subr.bf16.mxu0 0
        %2899 = vmatpush2.bf16.msra.mxu0 0
        %2900 = vmatprep.subr.bf16.mxu0 0
        %2901 = vmatpush2.bf16.msra.mxu0 0
        %2902 = vmatprep.subr.bf16.mxu0 0
        %2903 = vmatpush2.bf16.msra.mxu0 0
        %2904 = vmatprep.subr.bf16.mxu0 0
        %2905 = vmatpush2.bf16.msra.mxu0 0
        %2906 = vmatprep.subr.bf16.mxu0 0
        %2907 = vmatpush2.bf16.msra.mxu0 0
        %2908 = vmatprep.mubr.bf16.mxu0 0
        %2909 = vmatmul.mubr.bf16.gmra.mxu0 %v2762
        %v2910 = vpop.f32.mrf.mxu0
        %v2911 = vadd.f32 0.0, %v2910
        %v2912 = vpop.f32.mrf.mxu0
        %v2913 = vadd.f32 0.0, %v2912
        %v2914 = vpop.f32.mrf.mxu0
        %v2915 = vpop.f32.mrf.mxu0
        %2916 = vdwg.mxu0
        %2917 = vmatprep.subr.bf16.mxu0 0
        %2918 = vmatpush1.bf16.msra.mxu0 0
        %2919 = vmatprep.subr.bf16.mxu0 0
        %2920 = vmatpush1.bf16.msra.mxu0 0
        %2921 = vmatprep.subr.bf16.mxu0 0
        %2922 = vmatpush1.bf16.msra.mxu0 0
        %2923 = vmatprep.subr.bf16.mxu0 0
        %2924 = vmatpush1.bf16.msra.mxu0 0
        %2925 = vmatprep.subr.bf16.mxu0 0
        %2926 = vmatpush1.bf16.msra.mxu0 0
        %2927 = vmatprep.subr.bf16.mxu0 0
        %2928 = vmatpush1.bf16.msra.mxu0 0
        %2929 = vmatprep.subr.bf16.mxu0 0
        %2930 = vmatpush1.bf16.msra.mxu0 0
        %2931 = vmatprep.subr.bf16.mxu0 %v2786
        %2932 = vmatpush1.bf16.msra.mxu0 %v2783
        %2933 = vmatprep.subr.bf16.mxu0 0
        %2934 = vmatpush2.bf16.msra.mxu0 0
        %2935 = vmatprep.subr.bf16.mxu0 0
        %2936 = vmatpush2.bf16.msra.mxu0 0
        %2937 = vmatprep.subr.bf16.mxu0 0
        %2938 = vmatpush2.bf16.msra.mxu0 0
        %2939 = vmatprep.subr.bf16.mxu0 0
        %2940 = vmatpush2.bf16.msra.mxu0 0
        %2941 = vmatprep.subr.bf16.mxu0 0
        %2942 = vmatpush2.bf16.msra.mxu0 0
        %2943 = vmatprep.subr.bf16.mxu0 0
        %2944 = vmatpush2.bf16.msra.mxu0 0
        %2945 = vmatprep.subr.bf16.mxu0 0
        %2946 = vmatpush2.bf16.msra.mxu0 0
        %2947 = vmatprep.subr.bf16.mxu0 0
        %2948 = vmatpush2.bf16.msra.mxu0 0
        %2949 = vmatprep.mubr.bf16.mxu0 0
        %2950 = vmatmul.mubr.bf16.gmra.mxu0 %v2762
        %v2951 = vpop.f32.mrf.mxu0
        %v2952 = vadd.f32 0.0, %v2951
        %v2953 = vpop.f32.mrf.mxu0
        %v2954 = vadd.f32 0.0, %v2953
        %v2955 = vpop.f32.mrf.mxu0
        %v2956 = vpop.f32.mrf.mxu0
        %2957 = vdwg.mxu0
        %2958 = vmatprep.subr.bf16.mxu0 0
        %2959 = vmatpush1.bf16.msra.mxu0 0
        %2960 = vmatprep.subr.bf16.mxu0 0
        %2961 = vmatpush1.bf16.msra.mxu0 0
        %2962 = vmatprep.subr.bf16.mxu0 0
        %2963 = vmatpush1.bf16.msra.mxu0 0
        %2964 = vmatprep.subr.bf16.mxu0 0
        %2965 = vmatpush1.bf16.msra.mxu0 0
        %2966 = vmatprep.subr.bf16.mxu0 0
        %2967 = vmatpush1.bf16.msra.mxu0 0
        %2968 = vmatprep.subr.bf16.mxu0 0
        %2969 = vmatpush1.bf16.msra.mxu0 0
        %2970 = vmatprep.subr.bf16.mxu0 0
        %2971 = vmatpush1.bf16.msra.mxu0 0
        %2972 = vmatprep.subr.bf16.mxu0 %v2792
        %2973 = vmatpush1.bf16.msra.mxu0 %v2789
        %2974 = vmatprep.subr.bf16.mxu0 0
        %2975 = vmatpush2.bf16.msra.mxu0 0
        %2976 = vmatprep.subr.bf16.mxu0 0
        %2977 = vmatpush2.bf16.msra.mxu0 0
        %2978 = vmatprep.subr.bf16.mxu0 0
        %2979 = vmatpush2.bf16.msra.mxu0 0
        %2980 = vmatprep.subr.bf16.mxu0 0
        %2981 = vmatpush2.bf16.msra.mxu0 0
        %2982 = vmatprep.subr.bf16.mxu0 0
        %2983 = vmatpush2.bf16.msra.mxu0 0
        %2984 = vmatprep.subr.bf16.mxu0 0
        %2985 = vmatpush2.bf16.msra.mxu0 0
        %2986 = vmatprep.subr.bf16.mxu0 0
        %2987 = vmatpush2.bf16.msra.mxu0 0
        %2988 = vmatprep.subr.bf16.mxu0 0
        %2989 = vmatpush2.bf16.msra.mxu0 0
        %2990 = vmatprep.mubr.bf16.mxu0 0
        %2991 = vmatmul.mubr.bf16.gmra.mxu0 %v2762
        %v2992 = vpop.f32.mrf.mxu0
        %v2993 = vadd.f32 0.0, %v2992
        %v2994 = vpop.f32.mrf.mxu0
        %v2995 = vadd.f32 0.0, %v2994
        %v2996 = vpop.f32.mrf.mxu0
        %v2997 = vpop.f32.mrf.mxu0
        %2998 = vdwg.mxu0
        %v2999 = vadd.f32 %v2660, %v2829
        %v3000 = vadd.f32 %v2661, %v2831
        %v3001 = vadd.f32 %v2662, %v2870
        %v3002 = vadd.f32 %v2663, %v2872
        %v3003 = vadd.f32 %v2664, %v2911
        %v3004 = vadd.f32 %v2665, %v2913
        %v3005 = vadd.f32 %v2666, %v2952
        %v3006 = vadd.f32 %v2667, %v2954
        %v3007 = vadd.f32 %v2668, %v2993
        %v3008 = vadd.f32 %v2669, %v2995
        %s3009 = scalar_lea.vmem %s0, 28
        %v3010 = vld [vmem:[%s3009] sm:$0xf]
        %v3011 = vld [vmem:[#allocation2] sm:$0xff]
        %v3012 = vld [vmem:[#allocation2 + $0x8] sm:$0xff]
        %v3013 = vld [vmem:[#allocation2 + $0x10] sm:$0x3f]
        %v3017 = vcombine.high %v3011, %v3011
        %v3019 = vunpack.c.l.s4 1983009808
        %v3020 = vunpack.c.0.s8 %v3019
        %v3021 = vlaneseq
        %v3022 = vshrl.u32 %v3021, 7
        %v3023 = vsub.s32 %v3020, %v3022
        %v3024 = vrot.slane %v3011, %v3023
        %v3026 = vunpack.c.l.s4 1983009808
        %v3027 = vunpack.c.0.s8 %v3026
        %v3028 = vlaneseq
        %v3029 = vshrl.u32 %v3028, 7
        %v3030 = vsub.s32 %v3027, %v3029
        %v3031 = vrot.slane %v3017, %v3030
        %v3032 = vcombine.high %v3024, %v3024
        %v3033 = vcombine.high %v3031, %v3031
        %v3034 = vcombine.high %v3012, %v3012
        %v3036 = vunpack.c.l.s4 1983009808
        %v3037 = vunpack.c.0.s8 %v3036
        %v3038 = vlaneseq
        %v3039 = vshrl.u32 %v3038, 7
        %v3040 = vsub.s32 %v3037, %v3039
        %v3041 = vrot.slane %v3012, %v3040
        %v3043 = vunpack.c.l.s4 1983009808
        %v3044 = vunpack.c.0.s8 %v3043
        %v3045 = vlaneseq
        %v3046 = vshrl.u32 %v3045, 7
        %v3047 = vsub.s32 %v3044, %v3046
        %v3048 = vrot.slane %v3034, %v3047
        %v3049 = vcombine.high %v3041, %v3041
        %v3050 = vcombine.high %v3048, %v3048
        %v3051 = vcombine.high %v3013, %v3013
        %v3053 = vunpack.c.l.s4 1983009808
        %v3054 = vunpack.c.0.s8 %v3053
        %v3055 = vlaneseq
        %v3056 = vshrl.u32 %v3055, 7
        %v3057 = vsub.s32 %v3054, %v3056
        %v3058 = vrot.slane %v3013, %v3057
        %v3060 = vunpack.c.l.s4 1983009808
        %v3061 = vunpack.c.0.s8 %v3060
        %v3062 = vlaneseq
        %v3063 = vshrl.u32 %v3062, 7
        %v3064 = vsub.s32 %v3061, %v3063
        %v3065 = vrot.slane %v3051, %v3064
        %v3066 = vcombine.high %v3058, %v3058
        %3067 = vrot.lane.b32.xlu0 %v3024, 47
        %v3068 = vpop.permute.xlu0 %3067
        %3069 = vrot.lane.b32.xlu0 %v3032, 47
        %v3070 = vpop.permute.xlu0 %3069
        %3071 = vrot.lane.b32.xlu0 %v3031, 47
        %v3072 = vpop.permute.xlu0 %3071
        %3073 = vrot.lane.b32.xlu0 %v3033, 47
        %v3074 = vpop.permute.xlu0 %3073
        %3075 = vrot.lane.b32.xlu0 %v3041, 47
        %v3076 = vpop.permute.xlu0 %3075
        %3077 = vrot.lane.b32.xlu0 %v3049, 47
        %v3078 = vpop.permute.xlu0 %3077
        %3079 = vrot.lane.b32.xlu0 %v3048, 47
        %v3080 = vpop.permute.xlu0 %3079
        %3081 = vrot.lane.b32.xlu0 %v3050, 47
        %v3082 = vpop.permute.xlu0 %3081
        %3083 = vrot.lane.b32.xlu0 %v3058, 47
        %v3084 = vpop.permute.xlu0 %3083
        %3085 = vrot.lane.b32.xlu0 %v3066, 47
        %v3086 = vpop.permute.xlu0 %3085
        %3087 = vrot.lane.b32.xlu0 %v3065, 47
        %v3088 = vpop.permute.xlu0 %3087
        %vm3089 = vcmask 384000
        %v3090 = vsel %vm3089, %v3068, %v3070
        %v3091 = vsel %vm3089, %v3070, %v3072
        %v3092 = vsel %vm3089, %v3072, %v3074
        %v3093 = vsel %vm3089, %v3074, %v3076
        %v3094 = vsel %vm3089, %v3076, %v3078
        %v3095 = vsel %vm3089, %v3078, %v3080
        %v3096 = vsel %vm3089, %v3080, %v3082
        %v3097 = vsel %vm3089, %v3082, %v3084
        %v3098 = vsel %vm3089, %v3084, %v3086
        %v3099 = vsel %vm3089, %v3086, %v3088
        %v3101 = vsel %vm828, %v3010, 0
        %v3104 = vsel %vm643, %v3090, 0
        %v3107 = vsel %vm643, %v3091, 0
        %v3110 = vsel %vm643, %v3092, 0
        %v3113 = vsel %vm643, %v3093, 0
        %v3116 = vsel %vm643, %v3094, 0
        %v3119 = vsel %vm643, %v3095, 0
        %v3122 = vsel %vm643, %v3096, 0
        %v3125 = vsel %vm643, %v3097, 0
        %v3128 = vsel %vm643, %v3098, 0
        %v3131 = vsel %vm643, %v3099, 0
        %3133 = vmatprep.subr.bf16.mxu0 0
        %3134 = vmatpush1.bf16.msra.mxu0 0
        %3135 = vmatprep.subr.bf16.mxu0 0
        %3136 = vmatpush1.bf16.msra.mxu0 0
        %3137 = vmatprep.subr.bf16.mxu0 0
        %3138 = vmatpush1.bf16.msra.mxu0 0
        %3139 = vmatprep.subr.bf16.mxu0 0
        %3140 = vmatpush1.bf16.msra.mxu0 0
        %3141 = vmatprep.subr.bf16.mxu0 0
        %3142 = vmatpush1.bf16.msra.mxu0 0
        %3143 = vmatprep.subr.bf16.mxu0 0
        %3144 = vmatpush1.bf16.msra.mxu0 0
        %3145 = vmatprep.subr.bf16.mxu0 0
        %3146 = vmatpush1.bf16.msra.mxu0 0
        %3147 = vmatprep.subr.bf16.mxu0 %v3107
        %3148 = vmatpush1.bf16.msra.mxu0 %v3104
        %3149 = vmatprep.subr.bf16.mxu0 0
        %3150 = vmatpush2.bf16.msra.mxu0 0
        %3151 = vmatprep.subr.bf16.mxu0 0
        %3152 = vmatpush2.bf16.msra.mxu0 0
        %3153 = vmatprep.subr.bf16.mxu0 0
        %3154 = vmatpush2.bf16.msra.mxu0 0
        %3155 = vmatprep.subr.bf16.mxu0 0
        %3156 = vmatpush2.bf16.msra.mxu0 0
        %3157 = vmatprep.subr.bf16.mxu0 0
        %3158 = vmatpush2.bf16.msra.mxu0 0
        %3159 = vmatprep.subr.bf16.mxu0 0
        %3160 = vmatpush2.bf16.msra.mxu0 0
        %3161 = vmatprep.subr.bf16.mxu0 0
        %3162 = vmatpush2.bf16.msra.mxu0 0
        %3163 = vmatprep.subr.bf16.mxu0 0
        %3164 = vmatpush2.bf16.msra.mxu0 0
        %3165 = vmatprep.mubr.bf16.mxu0 0
        %3166 = vmatmul.mubr.bf16.gmra.mxu0 %v3101
        %v3167 = vpop.f32.mrf.mxu0
        %v3168 = vadd.f32 0.0, %v3167
        %v3169 = vpop.f32.mrf.mxu0
        %v3170 = vadd.f32 0.0, %v3169
        %v3171 = vpop.f32.mrf.mxu0
        %v3172 = vpop.f32.mrf.mxu0
        %3173 = vdwg.mxu0
        %3174 = vmatprep.subr.bf16.mxu0 0
        %3175 = vmatpush1.bf16.msra.mxu0 0
        %3176 = vmatprep.subr.bf16.mxu0 0
        %3177 = vmatpush1.bf16.msra.mxu0 0
        %3178 = vmatprep.subr.bf16.mxu0 0
        %3179 = vmatpush1.bf16.msra.mxu0 0
        %3180 = vmatprep.subr.bf16.mxu0 0
        %3181 = vmatpush1.bf16.msra.mxu0 0
        %3182 = vmatprep.subr.bf16.mxu0 0
        %3183 = vmatpush1.bf16.msra.mxu0 0
        %3184 = vmatprep.subr.bf16.mxu0 0
        %3185 = vmatpush1.bf16.msra.mxu0 0
        %3186 = vmatprep.subr.bf16.mxu0 0
        %3187 = vmatpush1.bf16.msra.mxu0 0
        %3188 = vmatprep.subr.bf16.mxu0 %v3113
        %3189 = vmatpush1.bf16.msra.mxu0 %v3110
        %3190 = vmatprep.subr.bf16.mxu0 0
        %3191 = vmatpush2.bf16.msra.mxu0 0
        %3192 = vmatprep.subr.bf16.mxu0 0
        %3193 = vmatpush2.bf16.msra.mxu0 0
        %3194 = vmatprep.subr.bf16.mxu0 0
        %3195 = vmatpush2.bf16.msra.mxu0 0
        %3196 = vmatprep.subr.bf16.mxu0 0
        %3197 = vmatpush2.bf16.msra.mxu0 0
        %3198 = vmatprep.subr.bf16.mxu0 0
        %3199 = vmatpush2.bf16.msra.mxu0 0
        %3200 = vmatprep.subr.bf16.mxu0 0
        %3201 = vmatpush2.bf16.msra.mxu0 0
        %3202 = vmatprep.subr.bf16.mxu0 0
        %3203 = vmatpush2.bf16.msra.mxu0 0
        %3204 = vmatprep.subr.bf16.mxu0 0
        %3205 = vmatpush2.bf16.msra.mxu0 0
        %3206 = vmatprep.mubr.bf16.mxu0 0
        %3207 = vmatmul.mubr.bf16.gmra.mxu0 %v3101
        %v3208 = vpop.f32.mrf.mxu0
        %v3209 = vadd.f32 0.0, %v3208
        %v3210 = vpop.f32.mrf.mxu0
        %v3211 = vadd.f32 0.0, %v3210
        %v3212 = vpop.f32.mrf.mxu0
        %v3213 = vpop.f32.mrf.mxu0
        %3214 = vdwg.mxu0
        %3215 = vmatprep.subr.bf16.mxu0 0
        %3216 = vmatpush1.bf16.msra.mxu0 0
        %3217 = vmatprep.subr.bf16.mxu0 0
        %3218 = vmatpush1.bf16.msra.mxu0 0
        %3219 = vmatprep.subr.bf16.mxu0 0
        %3220 = vmatpush1.bf16.msra.mxu0 0
        %3221 = vmatprep.subr.bf16.mxu0 0
        %3222 = vmatpush1.bf16.msra.mxu0 0
        %3223 = vmatprep.subr.bf16.mxu0 0
        %3224 = vmatpush1.bf16.msra.mxu0 0
        %3225 = vmatprep.subr.bf16.mxu0 0
        %3226 = vmatpush1.bf16.msra.mxu0 0
        %3227 = vmatprep.subr.bf16.mxu0 0
        %3228 = vmatpush1.bf16.msra.mxu0 0
        %3229 = vmatprep.subr.bf16.mxu0 %v3119
        %3230 = vmatpush1.bf16.msra.mxu0 %v3116
        %3231 = vmatprep.subr.bf16.mxu0 0
        %3232 = vmatpush2.bf16.msra.mxu0 0
        %3233 = vmatprep.subr.bf16.mxu0 0
        %3234 = vmatpush2.bf16.msra.mxu0 0
        %3235 = vmatprep.subr.bf16.mxu0 0
        %3236 = vmatpush2.bf16.msra.mxu0 0
        %3237 = vmatprep.subr.bf16.mxu0 0
        %3238 = vmatpush2.bf16.msra.mxu0 0
        %3239 = vmatprep.subr.bf16.mxu0 0
        %3240 = vmatpush2.bf16.msra.mxu0 0
        %3241 = vmatprep.subr.bf16.mxu0 0
        %3242 = vmatpush2.bf16.msra.mxu0 0
        %3243 = vmatprep.subr.bf16.mxu0 0
        %3244 = vmatpush2.bf16.msra.mxu0 0
        %3245 = vmatprep.subr.bf16.mxu0 0
        %3246 = vmatpush2.bf16.msra.mxu0 0
        %3247 = vmatprep.mubr.bf16.mxu0 0
        %3248 = vmatmul.mubr.bf16.gmra.mxu0 %v3101
        %v3249 = vpop.f32.mrf.mxu0
        %v3250 = vadd.f32 0.0, %v3249
        %v3251 = vpop.f32.mrf.mxu0
        %v3252 = vadd.f32 0.0, %v3251
        %v3253 = vpop.f32.mrf.mxu0
        %v3254 = vpop.f32.mrf.mxu0
        %3255 = vdwg.mxu0
        %3256 = vmatprep.subr.bf16.mxu0 0
        %3257 = vmatpush1.bf16.msra.mxu0 0
        %3258 = vmatprep.subr.bf16.mxu0 0
        %3259 = vmatpush1.bf16.msra.mxu0 0
        %3260 = vmatprep.subr.bf16.mxu0 0
        %3261 = vmatpush1.bf16.msra.mxu0 0
        %3262 = vmatprep.subr.bf16.mxu0 0
        %3263 = vmatpush1.bf16.msra.mxu0 0
        %3264 = vmatprep.subr.bf16.mxu0 0
        %3265 = vmatpush1.bf16.msra.mxu0 0
        %3266 = vmatprep.subr.bf16.mxu0 0
        %3267 = vmatpush1.bf16.msra.mxu0 0
        %3268 = vmatprep.subr.bf16.mxu0 0
        %3269 = vmatpush1.bf16.msra.mxu0 0
        %3270 = vmatprep.subr.bf16.mxu0 %v3125
        %3271 = vmatpush1.bf16.msra.mxu0 %v3122
        %3272 = vmatprep.subr.bf16.mxu0 0
        %3273 = vmatpush2.bf16.msra.mxu0 0
        %3274 = vmatprep.subr.bf16.mxu0 0
        %3275 = vmatpush2.bf16.msra.mxu0 0
        %3276 = vmatprep.subr.bf16.mxu0 0
        %3277 = vmatpush2.bf16.msra.mxu0 0
        %3278 = vmatprep.subr.bf16.mxu0 0
        %3279 = vmatpush2.bf16.msra.mxu0 0
        %3280 = vmatprep.subr.bf16.mxu0 0
        %3281 = vmatpush2.bf16.msra.mxu0 0
        %3282 = vmatprep.subr.bf16.mxu0 0
        %3283 = vmatpush2.bf16.msra.mxu0 0
        %3284 = vmatprep.subr.bf16.mxu0 0
        %3285 = vmatpush2.bf16.msra.mxu0 0
        %3286 = vmatprep.subr.bf16.mxu0 0
        %3287 = vmatpush2.bf16.msra.mxu0 0
        %3288 = vmatprep.mubr.bf16.mxu0 0
        %3289 = vmatmul.mubr.bf16.gmra.mxu0 %v3101
        %v3290 = vpop.f32.mrf.mxu0
        %v3291 = vadd.f32 0.0, %v3290
        %v3292 = vpop.f32.mrf.mxu0
        %v3293 = vadd.f32 0.0, %v3292
        %v3294 = vpop.f32.mrf.mxu0
        %v3295 = vpop.f32.mrf.mxu0
        %3296 = vdwg.mxu0
        %3297 = vmatprep.subr.bf16.mxu0 0
        %3298 = vmatpush1.bf16.msra.mxu0 0
        %3299 = vmatprep.subr.bf16.mxu0 0
        %3300 = vmatpush1.bf16.msra.mxu0 0
        %3301 = vmatprep.subr.bf16.mxu0 0
        %3302 = vmatpush1.bf16.msra.mxu0 0
        %3303 = vmatprep.subr.bf16.mxu0 0
        %3304 = vmatpush1.bf16.msra.mxu0 0
        %3305 = vmatprep.subr.bf16.mxu0 0
        %3306 = vmatpush1.bf16.msra.mxu0 0
        %3307 = vmatprep.subr.bf16.mxu0 0
        %3308 = vmatpush1.bf16.msra.mxu0 0
        %3309 = vmatprep.subr.bf16.mxu0 0
        %3310 = vmatpush1.bf16.msra.mxu0 0
        %3311 = vmatprep.subr.bf16.mxu0 %v3131
        %3312 = vmatpush1.bf16.msra.mxu0 %v3128
        %3313 = vmatprep.subr.bf16.mxu0 0
        %3314 = vmatpush2.bf16.msra.mxu0 0
        %3315 = vmatprep.subr.bf16.mxu0 0
        %3316 = vmatpush2.bf16.msra.mxu0 0
        %3317 = vmatprep.subr.bf16.mxu0 0
        %3318 = vmatpush2.bf16.msra.mxu0 0
        %3319 = vmatprep.subr.bf16.mxu0 0
        %3320 = vmatpush2.bf16.msra.mxu0 0
        %3321 = vmatprep.subr.bf16.mxu0 0
        %3322 = vmatpush2.bf16.msra.mxu0 0
        %3323 = vmatprep.subr.bf16.mxu0 0
        %3324 = vmatpush2.bf16.msra.mxu0 0
        %3325 = vmatprep.subr.bf16.mxu0 0
        %3326 = vmatpush2.bf16.msra.mxu0 0
        %3327 = vmatprep.subr.bf16.mxu0 0
        %3328 = vmatpush2.bf16.msra.mxu0 0
        %3329 = vmatprep.mubr.bf16.mxu0 0
        %3330 = vmatmul.mubr.bf16.gmra.mxu0 %v3101
        %v3331 = vpop.f32.mrf.mxu0
        %v3332 = vadd.f32 0.0, %v3331
        %v3333 = vpop.f32.mrf.mxu0
        %v3334 = vadd.f32 0.0, %v3333
        %v3335 = vpop.f32.mrf.mxu0
        %v3336 = vpop.f32.mrf.mxu0
        %3337 = vdwg.mxu0
        %v3338 = vadd.f32 %v2999, %v3168
        %v3339 = vadd.f32 %v3000, %v3170
        %v3340 = vadd.f32 %v3001, %v3209
        %v3341 = vadd.f32 %v3002, %v3211
        %v3342 = vadd.f32 %v3003, %v3250
        %v3343 = vadd.f32 %v3004, %v3252
        %v3344 = vadd.f32 %v3005, %v3291
        %v3345 = vadd.f32 %v3006, %v3293
        %v3346 = vadd.f32 %v3007, %v3332
        %v3347 = vadd.f32 %v3008, %v3334
        %s3348 = scalar_lea.vmem %s0, 32
        %v3349 = vld [vmem:[%s3348] sm:$0xf]
        %v3350 = vld [vmem:[#allocation2] sm:$0xff]
        %v3351 = vld [vmem:[#allocation2 + $0x8] sm:$0xff]
        %v3352 = vld [vmem:[#allocation2 + $0x10] sm:$0x3f]
        %v3356 = vcombine.high %v3350, %v3350
        %v3358 = vunpack.c.l.s4 1983009808
        %v3359 = vunpack.c.0.s8 %v3358
        %v3360 = vlaneseq
        %v3361 = vshrl.u32 %v3360, 7
        %v3362 = vsub.s32 %v3359, %v3361
        %v3363 = vrot.slane %v3350, %v3362
        %v3365 = vunpack.c.l.s4 1983009808
        %v3366 = vunpack.c.0.s8 %v3365
        %v3367 = vlaneseq
        %v3368 = vshrl.u32 %v3367, 7
        %v3369 = vsub.s32 %v3366, %v3368
        %v3370 = vrot.slane %v3356, %v3369
        %v3371 = vcombine.high %v3363, %v3363
        %v3372 = vcombine.high %v3370, %v3370
        %v3373 = vcombine.high %v3351, %v3351
        %v3375 = vunpack.c.l.s4 1983009808
        %v3376 = vunpack.c.0.s8 %v3375
        %v3377 = vlaneseq
        %v3378 = vshrl.u32 %v3377, 7
        %v3379 = vsub.s32 %v3376, %v3378
        %v3380 = vrot.slane %v3351, %v3379
        %v3382 = vunpack.c.l.s4 1983009808
        %v3383 = vunpack.c.0.s8 %v3382
        %v3384 = vlaneseq
        %v3385 = vshrl.u32 %v3384, 7
        %v3386 = vsub.s32 %v3383, %v3385
        %v3387 = vrot.slane %v3373, %v3386
        %v3388 = vcombine.high %v3380, %v3380
        %v3389 = vcombine.high %v3387, %v3387
        %v3390 = vcombine.high %v3352, %v3352
        %v3392 = vunpack.c.l.s4 1983009808
        %v3393 = vunpack.c.0.s8 %v3392
        %v3394 = vlaneseq
        %v3395 = vshrl.u32 %v3394, 7
        %v3396 = vsub.s32 %v3393, %v3395
        %v3397 = vrot.slane %v3352, %v3396
        %v3399 = vunpack.c.l.s4 1983009808
        %v3400 = vunpack.c.0.s8 %v3399
        %v3401 = vlaneseq
        %v3402 = vshrl.u32 %v3401, 7
        %v3403 = vsub.s32 %v3400, %v3402
        %v3404 = vrot.slane %v3390, %v3403
        %v3405 = vcombine.high %v3397, %v3397
        %3406 = vrot.lane.b32.xlu0 %v3363, 46
        %v3407 = vpop.permute.xlu0 %3406
        %3408 = vrot.lane.b32.xlu0 %v3371, 46
        %v3409 = vpop.permute.xlu0 %3408
        %3410 = vrot.lane.b32.xlu0 %v3370, 46
        %v3411 = vpop.permute.xlu0 %3410
        %3412 = vrot.lane.b32.xlu0 %v3372, 46
        %v3413 = vpop.permute.xlu0 %3412
        %3414 = vrot.lane.b32.xlu0 %v3380, 46
        %v3415 = vpop.permute.xlu0 %3414
        %3416 = vrot.lane.b32.xlu0 %v3388, 46
        %v3417 = vpop.permute.xlu0 %3416
        %3418 = vrot.lane.b32.xlu0 %v3387, 46
        %v3419 = vpop.permute.xlu0 %3418
        %3420 = vrot.lane.b32.xlu0 %v3389, 46
        %v3421 = vpop.permute.xlu0 %3420
        %3422 = vrot.lane.b32.xlu0 %v3397, 46
        %v3423 = vpop.permute.xlu0 %3422
        %3424 = vrot.lane.b32.xlu0 %v3405, 46
        %v3425 = vpop.permute.xlu0 %3424
        %3426 = vrot.lane.b32.xlu0 %v3404, 46
        %v3427 = vpop.permute.xlu0 %3426
        %vm3428 = vcmask 375808
        %v3429 = vsel %vm3428, %v3407, %v3409
        %v3430 = vsel %vm3428, %v3409, %v3411
        %v3431 = vsel %vm3428, %v3411, %v3413
        %v3432 = vsel %vm3428, %v3413, %v3415
        %v3433 = vsel %vm3428, %v3415, %v3417
        %v3434 = vsel %vm3428, %v3417, %v3419
        %v3435 = vsel %vm3428, %v3419, %v3421
        %v3436 = vsel %vm3428, %v3421, %v3423
        %v3437 = vsel %vm3428, %v3423, %v3425
        %v3438 = vsel %vm3428, %v3425, %v3427
        %v3440 = vsel %vm828, %v3349, 0
        %v3443 = vsel %vm643, %v3429, 0
        %v3446 = vsel %vm643, %v3430, 0
        %v3449 = vsel %vm643, %v3431, 0
        %v3452 = vsel %vm643, %v3432, 0
        %v3455 = vsel %vm643, %v3433, 0
        %v3458 = vsel %vm643, %v3434, 0
        %v3461 = vsel %vm643, %v3435, 0
        %v3464 = vsel %vm643, %v3436, 0
        %v3467 = vsel %vm643, %v3437, 0
        %v3470 = vsel %vm643, %v3438, 0
        %3472 = vmatprep.subr.bf16.mxu0 0
        %3473 = vmatpush1.bf16.msra.mxu0 0
        %3474 = vmatprep.subr.bf16.mxu0 0
        %3475 = vmatpush1.bf16.msra.mxu0 0
        %3476 = vmatprep.subr.bf16.mxu0 0
        %3477 = vmatpush1.bf16.msra.mxu0 0
        %3478 = vmatprep.subr.bf16.mxu0 0
        %3479 = vmatpush1.bf16.msra.mxu0 0
        %3480 = vmatprep.subr.bf16.mxu0 0
        %3481 = vmatpush1.bf16.msra.mxu0 0
        %3482 = vmatprep.subr.bf16.mxu0 0
        %3483 = vmatpush1.bf16.msra.mxu0 0
        %3484 = vmatprep.subr.bf16.mxu0 0
        %3485 = vmatpush1.bf16.msra.mxu0 0
        %3486 = vmatprep.subr.bf16.mxu0 %v3446
        %3487 = vmatpush1.bf16.msra.mxu0 %v3443
        %3488 = vmatprep.subr.bf16.mxu0 0
        %3489 = vmatpush2.bf16.msra.mxu0 0
        %3490 = vmatprep.subr.bf16.mxu0 0
        %3491 = vmatpush2.bf16.msra.mxu0 0
        %3492 = vmatprep.subr.bf16.mxu0 0
        %3493 = vmatpush2.bf16.msra.mxu0 0
        %3494 = vmatprep.subr.bf16.mxu0 0
        %3495 = vmatpush2.bf16.msra.mxu0 0
        %3496 = vmatprep.subr.bf16.mxu0 0
        %3497 = vmatpush2.bf16.msra.mxu0 0
        %3498 = vmatprep.subr.bf16.mxu0 0
        %3499 = vmatpush2.bf16.msra.mxu0 0
        %3500 = vmatprep.subr.bf16.mxu0 0
        %3501 = vmatpush2.bf16.msra.mxu0 0
        %3502 = vmatprep.subr.bf16.mxu0 0
        %3503 = vmatpush2.bf16.msra.mxu0 0
        %3504 = vmatprep.mubr.bf16.mxu0 0
        %3505 = vmatmul.mubr.bf16.gmra.mxu0 %v3440
        %v3506 = vpop.f32.mrf.mxu0
        %v3507 = vadd.f32 0.0, %v3506
        %v3508 = vpop.f32.mrf.mxu0
        %v3509 = vadd.f32 0.0, %v3508
        %v3510 = vpop.f32.mrf.mxu0
        %v3511 = vpop.f32.mrf.mxu0
        %3512 = vdwg.mxu0
        %3513 = vmatprep.subr.bf16.mxu0 0
        %3514 = vmatpush1.bf16.msra.mxu0 0
        %3515 = vmatprep.subr.bf16.mxu0 0
        %3516 = vmatpush1.bf16.msra.mxu0 0
        %3517 = vmatprep.subr.bf16.mxu0 0
        %3518 = vmatpush1.bf16.msra.mxu0 0
        %3519 = vmatprep.subr.bf16.mxu0 0
        %3520 = vmatpush1.bf16.msra.mxu0 0
        %3521 = vmatprep.subr.bf16.mxu0 0
        %3522 = vmatpush1.bf16.msra.mxu0 0
        %3523 = vmatprep.subr.bf16.mxu0 0
        %3524 = vmatpush1.bf16.msra.mxu0 0
        %3525 = vmatprep.subr.bf16.mxu0 0
        %3526 = vmatpush1.bf16.msra.mxu0 0
        %3527 = vmatprep.subr.bf16.mxu0 %v3452
        %3528 = vmatpush1.bf16.msra.mxu0 %v3449
        %3529 = vmatprep.subr.bf16.mxu0 0
        %3530 = vmatpush2.bf16.msra.mxu0 0
        %3531 = vmatprep.subr.bf16.mxu0 0
        %3532 = vmatpush2.bf16.msra.mxu0 0
        %3533 = vmatprep.subr.bf16.mxu0 0
        %3534 = vmatpush2.bf16.msra.mxu0 0
        %3535 = vmatprep.subr.bf16.mxu0 0
        %3536 = vmatpush2.bf16.msra.mxu0 0
        %3537 = vmatprep.subr.bf16.mxu0 0
        %3538 = vmatpush2.bf16.msra.mxu0 0
        %3539 = vmatprep.subr.bf16.mxu0 0
        %3540 = vmatpush2.bf16.msra.mxu0 0
        %3541 = vmatprep.subr.bf16.mxu0 0
        %3542 = vmatpush2.bf16.msra.mxu0 0
        %3543 = vmatprep.subr.bf16.mxu0 0
        %3544 = vmatpush2.bf16.msra.mxu0 0
        %3545 = vmatprep.mubr.bf16.mxu0 0
        %3546 = vmatmul.mubr.bf16.gmra.mxu0 %v3440
        %v3547 = vpop.f32.mrf.mxu0
        %v3548 = vadd.f32 0.0, %v3547
        %v3549 = vpop.f32.mrf.mxu0
        %v3550 = vadd.f32 0.0, %v3549
        %v3551 = vpop.f32.mrf.mxu0
        %v3552 = vpop.f32.mrf.mxu0
        %3553 = vdwg.mxu0
        %3554 = vmatprep.subr.bf16.mxu0 0
        %3555 = vmatpush1.bf16.msra.mxu0 0
        %3556 = vmatprep.subr.bf16.mxu0 0
        %3557 = vmatpush1.bf16.msra.mxu0 0
        %3558 = vmatprep.subr.bf16.mxu0 0
        %3559 = vmatpush1.bf16.msra.mxu0 0
        %3560 = vmatprep.subr.bf16.mxu0 0
        %3561 = vmatpush1.bf16.msra.mxu0 0
        %3562 = vmatprep.subr.bf16.mxu0 0
        %3563 = vmatpush1.bf16.msra.mxu0 0
        %3564 = vmatprep.subr.bf16.mxu0 0
        %3565 = vmatpush1.bf16.msra.mxu0 0
        %3566 = vmatprep.subr.bf16.mxu0 0
        %3567 = vmatpush1.bf16.msra.mxu0 0
        %3568 = vmatprep.subr.bf16.mxu0 %v3458
        %3569 = vmatpush1.bf16.msra.mxu0 %v3455
        %3570 = vmatprep.subr.bf16.mxu0 0
        %3571 = vmatpush2.bf16.msra.mxu0 0
        %3572 = vmatprep.subr.bf16.mxu0 0
        %3573 = vmatpush2.bf16.msra.mxu0 0
        %3574 = vmatprep.subr.bf16.mxu0 0
        %3575 = vmatpush2.bf16.msra.mxu0 0
        %3576 = vmatprep.subr.bf16.mxu0 0
        %3577 = vmatpush2.bf16.msra.mxu0 0
        %3578 = vmatprep.subr.bf16.mxu0 0
        %3579 = vmatpush2.bf16.msra.mxu0 0
        %3580 = vmatprep.subr.bf16.mxu0 0
        %3581 = vmatpush2.bf16.msra.mxu0 0
        %3582 = vmatprep.subr.bf16.mxu0 0
        %3583 = vmatpush2.bf16.msra.mxu0 0
        %3584 = vmatprep.subr.bf16.mxu0 0
        %3585 = vmatpush2.bf16.msra.mxu0 0
        %3586 = vmatprep.mubr.bf16.mxu0 0
        %3587 = vmatmul.mubr.bf16.gmra.mxu0 %v3440
        %v3588 = vpop.f32.mrf.mxu0
        %v3589 = vadd.f32 0.0, %v3588
        %v3590 = vpop.f32.mrf.mxu0
        %v3591 = vadd.f32 0.0, %v3590
        %v3592 = vpop.f32.mrf.mxu0
        %v3593 = vpop.f32.mrf.mxu0
        %3594 = vdwg.mxu0
        %3595 = vmatprep.subr.bf16.mxu0 0
        %3596 = vmatpush1.bf16.msra.mxu0 0
        %3597 = vmatprep.subr.bf16.mxu0 0
        %3598 = vmatpush1.bf16.msra.mxu0 0
        %3599 = vmatprep.subr.bf16.mxu0 0
        %3600 = vmatpush1.bf16.msra.mxu0 0
        %3601 = vmatprep.subr.bf16.mxu0 0
        %3602 = vmatpush1.bf16.msra.mxu0 0
        %3603 = vmatprep.subr.bf16.mxu0 0
        %3604 = vmatpush1.bf16.msra.mxu0 0
        %3605 = vmatprep.subr.bf16.mxu0 0
        %3606 = vmatpush1.bf16.msra.mxu0 0
        %3607 = vmatprep.subr.bf16.mxu0 0
        %3608 = vmatpush1.bf16.msra.mxu0 0
        %3609 = vmatprep.subr.bf16.mxu0 %v3464
        %3610 = vmatpush1.bf16.msra.mxu0 %v3461
        %3611 = vmatprep.subr.bf16.mxu0 0
        %3612 = vmatpush2.bf16.msra.mxu0 0
        %3613 = vmatprep.subr.bf16.mxu0 0
        %3614 = vmatpush2.bf16.msra.mxu0 0
        %3615 = vmatprep.subr.bf16.mxu0 0
        %3616 = vmatpush2.bf16.msra.mxu0 0
        %3617 = vmatprep.subr.bf16.mxu0 0
        %3618 = vmatpush2.bf16.msra.mxu0 0
        %3619 = vmatprep.subr.bf16.mxu0 0
        %3620 = vmatpush2.bf16.msra.mxu0 0
        %3621 = vmatprep.subr.bf16.mxu0 0
        %3622 = vmatpush2.bf16.msra.mxu0 0
        %3623 = vmatprep.subr.bf16.mxu0 0
        %3624 = vmatpush2.bf16.msra.mxu0 0
        %3625 = vmatprep.subr.bf16.mxu0 0
        %3626 = vmatpush2.bf16.msra.mxu0 0
        %3627 = vmatprep.mubr.bf16.mxu0 0
        %3628 = vmatmul.mubr.bf16.gmra.mxu0 %v3440
        %v3629 = vpop.f32.mrf.mxu0
        %v3630 = vadd.f32 0.0, %v3629
        %v3631 = vpop.f32.mrf.mxu0
        %v3632 = vadd.f32 0.0, %v3631
        %v3633 = vpop.f32.mrf.mxu0
        %v3634 = vpop.f32.mrf.mxu0
        %3635 = vdwg.mxu0
        %3636 = vmatprep.subr.bf16.mxu0 0
        %3637 = vmatpush1.bf16.msra.mxu0 0
        %3638 = vmatprep.subr.bf16.mxu0 0
        %3639 = vmatpush1.bf16.msra.mxu0 0
        %3640 = vmatprep.subr.bf16.mxu0 0
        %3641 = vmatpush1.bf16.msra.mxu0 0
        %3642 = vmatprep.subr.bf16.mxu0 0
        %3643 = vmatpush1.bf16.msra.mxu0 0
        %3644 = vmatprep.subr.bf16.mxu0 0
        %3645 = vmatpush1.bf16.msra.mxu0 0
        %3646 = vmatprep.subr.bf16.mxu0 0
        %3647 = vmatpush1.bf16.msra.mxu0 0
        %3648 = vmatprep.subr.bf16.mxu0 0
        %3649 = vmatpush1.bf16.msra.mxu0 0
        %3650 = vmatprep.subr.bf16.mxu0 %v3470
        %3651 = vmatpush1.bf16.msra.mxu0 %v3467
        %3652 = vmatprep.subr.bf16.mxu0 0
        %3653 = vmatpush2.bf16.msra.mxu0 0
        %3654 = vmatprep.subr.bf16.mxu0 0
        %3655 = vmatpush2.bf16.msra.mxu0 0
        %3656 = vmatprep.subr.bf16.mxu0 0
        %3657 = vmatpush2.bf16.msra.mxu0 0
        %3658 = vmatprep.subr.bf16.mxu0 0
        %3659 = vmatpush2.bf16.msra.mxu0 0
        %3660 = vmatprep.subr.bf16.mxu0 0
        %3661 = vmatpush2.bf16.msra.mxu0 0
        %3662 = vmatprep.subr.bf16.mxu0 0
        %3663 = vmatpush2.bf16.msra.mxu0 0
        %3664 = vmatprep.subr.bf16.mxu0 0
        %3665 = vmatpush2.bf16.msra.mxu0 0
        %3666 = vmatprep.subr.bf16.mxu0 0
        %3667 = vmatpush2.bf16.msra.mxu0 0
        %3668 = vmatprep.mubr.bf16.mxu0 0
        %3669 = vmatmul.mubr.bf16.gmra.mxu0 %v3440
        %v3670 = vpop.f32.mrf.mxu0
        %v3671 = vadd.f32 0.0, %v3670
        %v3672 = vpop.f32.mrf.mxu0
        %v3673 = vadd.f32 0.0, %v3672
        %v3674 = vpop.f32.mrf.mxu0
        %v3675 = vpop.f32.mrf.mxu0
        %3676 = vdwg.mxu0
        %v3677 = vadd.f32 %v3338, %v3507
        %v3678 = vadd.f32 %v3339, %v3509
        %v3679 = vadd.f32 %v3340, %v3548
        %v3680 = vadd.f32 %v3341, %v3550
        %v3681 = vadd.f32 %v3342, %v3589
        %v3682 = vadd.f32 %v3343, %v3591
        %v3683 = vadd.f32 %v3344, %v3630
        %v3684 = vadd.f32 %v3345, %v3632
        %v3685 = vadd.f32 %v3346, %v3671
        %v3686 = vadd.f32 %v3347, %v3673
        %3687 = vst [vmem:[%s491] sm:$0xff] %v3677
        %3688 = vst [vmem:[%s491 + $0x8] sm:$0xff] %v3678
        %3689 = vst [vmem:[%s491 + $0x10] sm:$0xff] %v3679
        %3690 = vst [vmem:[%s491 + $0x18] sm:$0xff] %v3680
        %3691 = vst [vmem:[%s491 + $0x20] sm:$0xff] %v3681
        %3692 = vst [vmem:[%s491 + $0x28] sm:$0xff] %v3682
        %3693 = vst [vmem:[%s491 + $0x30] sm:$0xff] %v3683
        %3694 = vst [vmem:[%s491 + $0x38] sm:$0xff] %v3684
        %3695 = vst [vmem:[%s491 + $0x40] sm:$0xff] %v3685
        %3696 = vst [vmem:[%s491 + $0x48] sm:$0xff] %v3686
        %v3697 = vld [vmem:[%s1] sm:$0xff]
        %v3698 = vld [vmem:[%s1 + $0x8] sm:$0x3]
        %v3701 = vlaneseq
        %v3702 = vshrl.u32 %v3701, 7
        %v3703 = vsub.s32 0, %v3702
        %v3704 = vrot.slane %v3697, %v3703
        %v3705 = vlaneseq
        %v3706 = vshrl.u32 %v3705, 7
        %v3707 = vsub.s32 1, %v3706
        %v3708 = vrot.slane %v3697, %v3707
        %v3709 = vlaneseq
        %v3710 = vshrl.u32 %v3709, 7
        %v3711 = vsub.s32 2, %v3710
        %v3712 = vrot.slane %v3697, %v3711
        %v3713 = vlaneseq
        %v3714 = vshrl.u32 %v3713, 7
        %v3715 = vsub.s32 3, %v3714
        %v3716 = vrot.slane %v3697, %v3715
        %v3717 = vlaneseq
        %v3718 = vshrl.u32 %v3717, 7
        %v3719 = vsub.s32 4, %v3718
        %v3720 = vrot.slane %v3697, %v3719
        %v3721 = vlaneseq
        %v3722 = vshrl.u32 %v3721, 7
        %v3723 = vsub.s32 5, %v3722
        %v3724 = vrot.slane %v3697, %v3723
        %v3725 = vlaneseq
        %v3726 = vshrl.u32 %v3725, 7
        %v3727 = vsub.s32 6, %v3726
        %v3728 = vrot.slane %v3697, %v3727
        %v3729 = vlaneseq
        %v3730 = vshrl.u32 %v3729, 7
        %v3731 = vsub.s32 7, %v3730
        %v3732 = vrot.slane %v3697, %v3731
        %v3733 = vlaneseq
        %v3734 = vshrl.u32 %v3733, 7
        %v3735 = vsub.s32 0, %v3734
        %v3736 = vrot.slane %v3698, %v3735
        %v3737 = vlaneseq
        %v3738 = vshrl.u32 %v3737, 7
        %v3739 = vsub.s32 1, %v3738
        %v3740 = vrot.slane %v3698, %v3739
        %v3751 = vmul.f32 %v3677, %v3704
        %v3752 = vmul.f32 %v3678, %v3708
        %v3753 = vmul.f32 %v3679, %v3712
        %v3754 = vmul.f32 %v3680, %v3716
        %v3755 = vmul.f32 %v3681, %v3720
        %v3756 = vmul.f32 %v3682, %v3724
        %v3757 = vmul.f32 %v3683, %v3728
        %v3758 = vmul.f32 %v3684, %v3732
        %v3759 = vmul.f32 %v3685, %v3736
        %v3760 = vmul.f32 %v3686, %v3740
        %v3761 = vadd.f32 %v3751, %v3752
        %v3762 = vadd.f32 %v3761, %v3753
        %v3763 = vadd.f32 %v3762, %v3754
        %v3764 = vadd.f32 %v3763, %v3755
        %v3765 = vadd.f32 %v3764, %v3756
        %v3766 = vadd.f32 %v3765, %v3757
        %v3767 = vadd.f32 %v3766, %v3758
        %v3768 = vadd.f32 %v3767, %v3759
        %v3769 = vadd.f32 %v3768, %v3760
        %3770 = vadd.xlane.f32.xlu0 %v3769
        %v3771 = vpop.xlane.xlu0 %3770
        %v3772 = vmul.f32 %v3751, %v3751
        %v3773 = vmul.f32 %v3752, %v3752
        %v3774 = vmul.f32 %v3753, %v3753
        %v3775 = vmul.f32 %v3754, %v3754
        %v3776 = vmul.f32 %v3755, %v3755
        %v3777 = vmul.f32 %v3756, %v3756
        %v3778 = vmul.f32 %v3757, %v3757
        %v3779 = vmul.f32 %v3758, %v3758
        %v3780 = vmul.f32 %v3759, %v3759
        %v3781 = vmul.f32 %v3760, %v3760
        %v3782 = vadd.f32 %v3772, %v3773
        %v3783 = vadd.f32 %v3782, %v3774
        %v3784 = vadd.f32 %v3783, %v3775
        %v3785 = vadd.f32 %v3784, %v3776
        %v3786 = vadd.f32 %v3785, %v3777
        %v3787 = vadd.f32 %v3786, %v3778
        %v3788 = vadd.f32 %v3787, %v3779
        %v3789 = vadd.f32 %v3788, %v3780
        %v3790 = vadd.f32 %v3789, %v3781
        %3791 = vadd.xlane.f32.xlu0 %v3790
        %v3792 = vpop.xlane.xlu0 %3791
        %vm3793 = vcmask 7168
        %v3794 = vsel %vm3793, %v3771, %v3792
        %vm3795 = vcmask 15360
        %3796 = vst.msk [vmem:[%s499] sm:$0xff] %vm3795, %v3794
        %s3797 = smul.u32 10, %s23
        %p3798 = scmp.lt.s32.totalorder %s22, 1
        %s3799 = scalar_select %p3798, %s22, 1
        %p3800 = scmp.lt.s32.totalorder %s3797, 9
        %s3801 = scalar_select %p3800, %s3797, 9
        %s3802 = smul.addr %s3799, 10
        %s3803 = sadd.s32 %s3801, %s3802
        %s3804 = smul.addr %s3803, 8
        %s3805 = scalar_lea.vmem %s5, %s3804
        %p3806 = scmp.lt.s32.totalorder %s22, 1
        %s3807 = scalar_select %p3806, %s22, 1
        %p3808 = scmp.lt.s32.totalorder %s23, 0
        %s3809 = scalar_select %p3808, %s23, 0
        %s3810 = sadd.s32 %s3809, %s3807
        %s3811 = smul.addr %s3810, 8
        %s3812 = scalar_lea.vmem %s6, %s3811
        // Predicated region
        $region123: #{up_conv_forward.4} parent=113 // pred_check
          %p3813 = pneg %p192
        $region124: #{up_conv_forward.4} parent=113 // pred_check_branch
          %3815 = sbr.rel (%p3813) target = $region126
        $region125: #{up_conv_forward.4} parent=113 // pred_region
          %s3816 = smul.u32 10, %s23
        $region126: #{up_conv_forward.4} parent=113 // pred_fallthru
          _
        // Predicated region
        $region127: #{up_conv_forward.4} parent=113 // pred_check
          %p3817 = pneg %p220
        $region128: #{up_conv_forward.4} parent=113 // pred_check_branch
          %3819 = sbr.rel (%p3817) target = $region130
        $region129: #{up_conv_forward.4} parent=113 // pred_region
          _
        $region130: #{up_conv_forward.4} parent=113 // pred_fallthru
          _
      $region114: #{up_conv_forward.4} parent=5 // pred_fallthru
        _
      %p3820 = scmp.le.s32.totalorder 2, %s13
      // Predicated region
      $region131: #{up_conv_forward.4} parent=5 // pred_check
        %p3821 = pneg %p3820
      $region132: #{up_conv_forward.4} parent=5 // pred_check_branch
        %3823 = sbr.rel (%p3821) target = $region134
      $region133: #{up_conv_forward.4} parent=5 // pred_region
        %s3824 = ssub.s32 %s13, 2
        // Predicated region
        $region135: #{up_conv_forward.4} parent=133 // pred_check
          %p3825 = pneg %p198
        $region136: #{up_conv_forward.4} parent=133 // pred_check_branch
          %3827 = sbr.rel (%p3825) target = $region138
        $region137: #{up_conv_forward.4} parent=133 // pred_region
          %s3828 = smul.u32 10, %s25
          %p3829 = scmp.lt.s32.totalorder %s24, 1
          %s3830 = scalar_select %p3829, %s24, 1
          %p3831 = scmp.lt.s32.totalorder %s3828, 9
          %s3832 = scalar_select %p3831, %s3828, 9
          %s3833 = smul.addr %s3830, 10
          %s3834 = sadd.s32 %s3832, %s3833
          %s3835 = smul.addr %s3834, 8
          %s3836 = scalar_lea.vmem %s5, %s3835
        $region138: #{up_conv_forward.4} parent=133 // pred_fallthru
          _
        // Predicated region
        $region139: #{up_conv_forward.4} parent=133 // pred_check
          %p3837 = pneg %p226
        $region140: #{up_conv_forward.4} parent=133 // pred_check_branch
          %3839 = sbr.rel (%p3837) target = $region142
        $region141: #{up_conv_forward.4} parent=133 // pred_region
          %p3840 = scmp.lt.s32.totalorder %s24, 1
          %s3841 = scalar_select %p3840, %s24, 1
          %p3842 = scmp.lt.s32.totalorder %s25, 0
          %s3843 = scalar_select %p3842, %s25, 0
          %s3844 = sadd.s32 %s3843, %s3841
          %s3845 = smul.addr %s3844, 8
          %s3846 = scalar_lea.vmem %s6, %s3845
        $region142: #{up_conv_forward.4} parent=133 // pred_fallthru
          _
      $region134: #{up_conv_forward.4} parent=5 // pred_fallthru
        _
    $region6: #{up_conv_forward.4} parent=1 // loop_footer
      %s17 = sadd.s32 1, %s13
    $region7: #{up_conv_forward.4} parent=1 // loop_footer_branch
      %12 = sbr.rel target = $region3
    $region8: #{up_conv_forward.4} parent=1 // loop_exit
      _

</llo_original>
